<compile_context>
chip_gen: v7x
topology: tpu7x:2x2x1
jax: 0.10.0
libtpu: 0.0.40
codegen_flags: <defaults>
</compile_context>

<pallas_src>
import numpy as np
import jax
import jax.numpy as jnp
from jax import lax
from jax.experimental import pallas as pl
from jax.experimental.pallas import tpu as pltpu


def _tap_tables(D, H, W):
    """Static flat-index offsets, mask indices and the 9 distinct (dh, dw) masks.

    d-axis overflow never needs a mask: with a zero margin >= max|delta| on the flat
    buffer, any tap whose d is out of range either reads the zero margin or (when the
    flat offset wraps back into the interior) also has h or w out of range, which the
    (dh, dw) mask already kills.
    """
    DHW = D * H * W
    j = np.arange(DHW)
    h_i = (j // W) % H
    w_i = j % W

    masks = np.zeros((9, DHW), np.float32)
    for kh in range(3):
        for kw in range(3):
            dh, dw = kh - 1, kw - 1
            ok = ((h_i + dh >= 0) & (h_i + dh < H) &
                  (w_i + dw >= 0) & (w_i + dw < W))
            masks[kh * 3 + kw] = ok

    deltas, mask_idx = [], []
    for kd in range(3):
        for kh in range(3):
            for kw in range(3):
                dd, dh, dw = kd - 1, kh - 1, kw - 1
                deltas.append(dd * H * W + dh * W + dw)
                mask_idx.append(kh * 3 + kw)
    return deltas, mask_idx, masks


def _make_kernel(DHW, C, n_stages, deltas, mask_idx, margin, taps_per_group):
    n_taps = len(deltas)                         # 27
    n_groups = -(-n_taps // taps_per_group)      # 7 for C=4
    rows_per_group = taps_per_group * C          # 16 rows = one bf16 sublane tile

    def kernel(x_ref, ws_ref, bs_ref, mask_ref, o_ref, flat_ref, col_ref):
        # Zero only the margins (interior is fully rewritten every stage).  Margins are
        # never written afterwards, so this is redundant after each core's first step,
        # but it is only 4 KiB and is megacore-safe (no program_id==0 gating).
        flat_ref[:, 0:margin] = jnp.zeros((C, margin), jnp.float32)
        flat_ref[:, margin + DHW:2 * margin + DHW] = jnp.zeros((C, margin), jnp.float32)

        x = x_ref[0]                             # (C, DHW) f32 -- also the residual
        h = x
        for s in range(n_stages):                # static unroll (n_stages is tiny)
            # Stage input into the zero-margined flat scratch (lane offset is 128-aligned).
            flat_ref[:, margin:margin + DHW] = h

            # im2col: shifted lane-windows, masked for h/w wrap, packed 4 taps per group
            # so each col store is a full, aligned (16, DHW) bf16 tile.
            for g in range(n_groups):
                parts = []
                for t in range(g * taps_per_group, (g + 1) * taps_per_group):
                    if t < n_taps:
                        d0 = margin + deltas[t]
                        tap = flat_ref[:, d0:d0 + DHW]          # (C, DHW) f32
                        m = mask_idx[t]
                        if m != 4:               # dh == dw == 0: mask is all-ones, skip
                            tap = tap * mask_ref[m:m + 1, :]
                        parts.append(tap)
                    else:                        # pad the last group with a zero tap
                        parts.append(jnp.zeros((C, DHW), jnp.float32))
                grp = jnp.concatenate(parts, axis=0)            # (16, DHW) f32
                col_ref[rows_per_group * g:rows_per_group * (g + 1), :] = (
                    grp.astype(jnp.bfloat16))

            y = jnp.dot(ws_ref[s], col_ref[...],
                        preferred_element_type=jnp.float32)     # (C, DHW) f32 on the MXU
            h = jnp.maximum(y + bs_ref[s], 0.0)                 # bias + ReLU in f32 (VPU)

        # Residual add, lane-dense store (last dim = DHW).
        o_ref[...] = (h + x).reshape(1, C, DHW).astype(o_ref.dtype)

    return kernel


def residual_conv_block(x, params):
    """Fused x = conv(x) + x, conv = [Conv3d(3x3x3, pad=1) -> ReLU] * n_stages.

    x      : (N, C, D, H, W) float32 (PyTorch NCDHW layout)
    params : list of (w, b) with w (Cout, Cin, 3, 3, 3) (PyTorch OIDHW) and b (Cout,)
    Requires Cin == Cout (needed for the residual; matches this module config).
    """
    N, C, D, H, W = x.shape
    DHW = D * H * W
    n_stages = len(params)
    for w, b in params:
        assert w.shape == (C, C, 3, 3, 3) and b.shape == (C,), \
            "fused kernel requires n_filters_in == n_filters_out"
    assert DHW % 128 == 0, "lane-dense layout assumes D*H*W is a multiple of 128"
    assert C <= 16 and 16 % C == 0, "tap grouping assumes C divides 16"

    taps_per_group = 16 // C                      # rows per group = one bf16 sublane tile
    n_groups = -(-27 // taps_per_group)           # 7 for C=4
    K = 27 * C                                    # 108
    K_pad = n_groups * taps_per_group * C         # 112 (sublane-aligned slab depth)

    # Weights -> (S, Cout, K_pad), rows ordered (kd, kh, kw, cin); bf16 for the MXU.
    ws = jnp.stack([jnp.transpose(w, (0, 2, 3, 4, 1)).reshape(C, K) for w, _ in params])
    ws = jnp.pad(ws, ((0, 0), (0, 0), (0, K_pad - K))).astype(jnp.bfloat16)
    bs = jnp.stack([b.reshape(C, 1) for _, b in params]).astype(jnp.float32)

    deltas, mask_idx, masks_np = _tap_tables(D, H, W)
    margin = -(-(H * W + W + 1) // 128) * 128     # >= max |flat offset|, lane-aligned
    masks = jnp.asarray(masks_np)                 # (9, DHW) f32 {0,1}

    kernel = _make_kernel(DHW, C, n_stages, deltas, mask_idx, margin, taps_per_group)

    flops = 2 * N * n_stages * C * K * DHW + 4 * N * n_stages * C * DHW
    bytes_accessed = (2 * N * C * DHW) * 4 + ws.size * 2 + bs.size * 4 + masks.size * 4

    out = pl.pallas_call(
        kernel,
        out_shape=jax.ShapeDtypeStruct((N, C, DHW), x.dtype),
        grid_spec=pltpu.PrefetchScalarGridSpec(
            num_scalar_prefetch=0,
            grid=(N,),                                                 # one batch elem / step
            in_specs=[
                pl.BlockSpec((1, C, DHW), lambda n: (n, 0, 0)),        # x (lane-dense)
                pl.BlockSpec((n_stages, C, K_pad), lambda n: (0, 0, 0)),  # conv weights bf16
                pl.BlockSpec((n_stages, C, 1), lambda n: (0, 0, 0)),   # conv biases f32
                pl.BlockSpec((9, DHW), lambda n: (0, 0)),              # 9 (dh,dw) masks
            ],
            out_specs=pl.BlockSpec((1, C, DHW), lambda n: (n, 0, 0)),
            scratch_shapes=[
                pltpu.VMEM((C, 2 * margin + DHW), jnp.float32),        # zero-margined flat act
                pltpu.VMEM((K_pad, DHW), jnp.bfloat16),                # bf16 im2col slab
            ],
        ),
        compiler_params=pltpu.CompilerParams(
            dimension_semantics=("parallel",),
        ),
        cost_estimate=pl.CostEstimate(
            flops=int(flops), transcendentals=0, bytes_accessed=int(bytes_accessed)),
    )(x.reshape(N, C, DHW), ws, bs, masks)
    return out.reshape(N, C, D, H, W)


def ref_residual_conv_block(x, params):
    """Pure-JAX/XLA f32 reference of the PyTorch module (NCDHW)."""
    dn = lax.conv_dimension_numbers(x.shape, params[0][0].shape,
                                    ("NCDHW", "OIDHW", "NCDHW"))
    h = x
    for w, b in params:
        h = lax.conv_general_dilated(h, w, window_strides=(1, 1, 1), padding="SAME",
                                     dimension_numbers=dn,
                                     precision=lax.Precision.HIGHEST)
        h = jax.nn.relu(h + b.reshape(1, -1, 1, 1, 1))
    return h + x


if __name__ == "__main__":
    # ResidualConvBlock(n_stages=2, n_filters_in=4, n_filters_out=4,
    #                   normalization='none', expand_chan=False)
    N, C, D, H, W = 2, 4, 8, 8, 8
    n_stages = 2

    key = jax.random.PRNGKey(0)
    keys = jax.random.split(key, 1 + 2 * n_stages)
    x = jax.random.normal(keys[0], (N, C, D, H, W), jnp.float32)       # NCDHW (PyTorch layout)

    params = []
    for i in range(n_stages):
        w = 0.1 * jax.random.normal(keys[1 + 2 * i], (C, C, 3, 3, 3), jnp.float32)  # OIDHW
        b = 0.1 * jax.random.normal(keys[2 + 2 * i], (C,), jnp.float32)
        params.append((w, b))

    out = jax.block_until_ready(residual_conv_block(x, params))

    ref = ref_residual_conv_block(x, params)
    err = float(jnp.max(jnp.abs(out - ref)))
    # bf16 MXU inputs with f32 accumulation -> loosened tolerance vs. the pure-f32 reference.
    assert jnp.allclose(out, ref, atol=5e-2, rtol=5e-2), f"max abs err = {err}"

    print("KERNEL_OK")
</pallas_src>

<mosaic_0001>
module attributes {stable_mosaic.version = 11 : i64} {
  func.func @kernel(%arg0: i32, %arg1: memref<1x4x512xf32, #tpu.memory_space<vmem>>, %arg2: memref<2x4x112xbf16, #tpu.memory_space<vmem>>, %arg3: memref<2x4x1xf32, #tpu.memory_space<vmem>>, %arg4: memref<9x512xf32, #tpu.memory_space<vmem>>, %arg5: memref<1x4x512xf32, #tpu.memory_space<vmem>>, %arg6: memref<4x768xf32, #tpu.memory_space<vmem>>, %arg7: memref<112x512xbf16, #tpu.memory_space<vmem>>) attributes {dimension_semantics = [#tpu.dimension_semantics<parallel>], iteration_bounds = array<i64: 2>, scalar_prefetch = 0 : i64, scratch_operands = 2 : i64, tpu.core_type = #tpu.core_type<tc>, window_params = [{transform_indices = @transform_0, window_bounds = array<i64: 1, 4, 512>}, {pipeline_mode = #tpu.pipeline_mode<synchronous>, transform_indices = @transform_1, window_bounds = array<i64: 2, 4, 112>}, {pipeline_mode = #tpu.pipeline_mode<synchronous>, transform_indices = @transform_2, window_bounds = array<i64: 2, 4, 1>}, {pipeline_mode = #tpu.pipeline_mode<synchronous>, transform_indices = @transform_3, window_bounds = array<i64: 9, 512>}, {transform_indices = @transform_4, window_bounds = array<i64: 1, 4, 512>}]} {
    %cst = arith.constant 0.000000e+00 : f32
    %0 = vector.broadcast %cst : f32 to vector<4x128xf32>
    %c0 = arith.constant 0 : index
    %c0_0 = arith.constant 0 : index
    %1 = vector.load %arg6[%c0, %c0_0] : memref<4x768xf32, #tpu.memory_space<vmem>>, vector<4x128xf32>
    tpu.vector_store %arg6[%c0, %c0_0], %0 {strides = array<i32>} : memref<4x768xf32, #tpu.memory_space<vmem>>, vector<4x128xf32>,
    %cst_1 = arith.constant 0.000000e+00 : f32
    %2 = vector.broadcast %cst_1 : f32 to vector<4x128xf32>
    %c0_2 = arith.constant 0 : index
    %c640 = arith.constant 640 : index
    %3 = vector.load %arg6[%c0_2, %c640] : memref<4x768xf32, #tpu.memory_space<vmem>>, vector<4x128xf32>
    tpu.vector_store %arg6[%c0_2, %c640], %2 {strides = array<i32>} : memref<4x768xf32, #tpu.memory_space<vmem>>, vector<4x128xf32>,
    %c0_3 = arith.constant 0 : index
    %c0_4 = arith.constant 0 : index
    %c0_5 = arith.constant 0 : index
    %4 = vector.load %arg1[%c0_3, %c0_4, %c0_5] : memref<1x4x512xf32, #tpu.memory_space<vmem>>, vector<1x4x512xf32>
    %5 = vector.shape_cast %4 : vector<1x4x512xf32> to vector<4x512xf32>
    %c0_6 = arith.constant 0 : index
    %c128 = arith.constant 128 : index
    %6 = vector.load %arg6[%c0_6, %c128] : memref<4x768xf32, #tpu.memory_space<vmem>>, vector<4x512xf32>
    tpu.vector_store %arg6[%c0_6, %c128], %5 {strides = array<i32>} : memref<4x768xf32, #tpu.memory_space<vmem>>, vector<4x512xf32>,
    %c0_7 = arith.constant 0 : index
    %c55 = arith.constant 55 : index
    %7 = vector.load %arg6[%c0_7, %c55] : memref<4x768xf32, #tpu.memory_space<vmem>>, vector<4x512xf32>
    %c0_8 = arith.constant 0 : index
    %c0_9 = arith.constant 0 : index
    %8 = vector.load %arg4[%c0_8, %c0_9] : memref<9x512xf32, #tpu.memory_space<vmem>>, vector<1x512xf32>
    %9 = vector.broadcast %8 : vector<1x512xf32> to vector<4x512xf32>
    %10 = arith.mulf %7, %9 : vector<4x512xf32>
    %c0_10 = arith.constant 0 : index
    %c56 = arith.constant 56 : index
    %11 = vector.load %arg6[%c0_10, %c56] : memref<4x768xf32, #tpu.memory_space<vmem>>, vector<4x512xf32>
    %c1 = arith.constant 1 : index
    %c0_11 = arith.constant 0 : index
    %12 = vector.load %arg4[%c1, %c0_11] : memref<9x512xf32, #tpu.memory_space<vmem>>, vector<1x512xf32>
    %13 = vector.broadcast %12 : vector<1x512xf32> to vector<4x512xf32>
    %14 = arith.mulf %11, %13 : vector<4x512xf32>
    %c0_12 = arith.constant 0 : index
    %c57 = arith.constant 57 : index
    %15 = vector.load %arg6[%c0_12, %c57] : memref<4x768xf32, #tpu.memory_space<vmem>>, vector<4x512xf32>
    %c2 = arith.constant 2 : index
    %c0_13 = arith.constant 0 : index
    %16 = vector.load %arg4[%c2, %c0_13] : memref<9x512xf32, #tpu.memory_space<vmem>>, vector<1x512xf32>
    %17 = vector.broadcast %16 : vector<1x512xf32> to vector<4x512xf32>
    %18 = arith.mulf %15, %17 : vector<4x512xf32>
    %c0_14 = arith.constant 0 : index
    %c63 = arith.constant 63 : index
    %19 = vector.load %arg6[%c0_14, %c63] : memref<4x768xf32, #tpu.memory_space<vmem>>, vector<4x512xf32>
    %c3 = arith.constant 3 : index
    %c0_15 = arith.constant 0 : index
    %20 = vector.load %arg4[%c3, %c0_15] : memref<9x512xf32, #tpu.memory_space<vmem>>, vector<1x512xf32>
    %21 = vector.broadcast %20 : vector<1x512xf32> to vector<4x512xf32>
    %22 = arith.mulf %19, %21 : vector<4x512xf32>
    %23 = tpu.concatenate %10, %14, %18, %22 in 0 : vector<4x512xf32>, vector<4x512xf32>, vector<4x512xf32>, vector<4x512xf32> -> vector<16x512xf32>
    %24 = arith.truncf %23 : vector<16x512xf32> to vector<16x512xbf16>
    %c0_16 = arith.constant 0 : index
    %c0_17 = arith.constant 0 : index
    %25 = vector.load %arg7[%c0_16, %c0_17] : memref<112x512xbf16, #tpu.memory_space<vmem>>, vector<16x512xbf16>
    tpu.vector_store %arg7[%c0_16, %c0_17], %24 {strides = array<i32>} : memref<112x512xbf16, #tpu.memory_space<vmem>>, vector<16x512xbf16>,
    %c0_18 = arith.constant 0 : index
    %c64 = arith.constant 64 : index
    %26 = vector.load %arg6[%c0_18, %c64] : memref<4x768xf32, #tpu.memory_space<vmem>>, vector<4x512xf32>
    %c0_19 = arith.constant 0 : index
    %c65 = arith.constant 65 : index
    %27 = vector.load %arg6[%c0_19, %c65] : memref<4x768xf32, #tpu.memory_space<vmem>>, vector<4x512xf32>
    %c5 = arith.constant 5 : index
    %c0_20 = arith.constant 0 : index
    %28 = vector.load %arg4[%c5, %c0_20] : memref<9x512xf32, #tpu.memory_space<vmem>>, vector<1x512xf32>
    %29 = vector.broadcast %28 : vector<1x512xf32> to vector<4x512xf32>
    %30 = arith.mulf %27, %29 : vector<4x512xf32>
    %c0_21 = arith.constant 0 : index
    %c71 = arith.constant 71 : index
    %31 = vector.load %arg6[%c0_21, %c71] : memref<4x768xf32, #tpu.memory_space<vmem>>, vector<4x512xf32>
    %c6 = arith.constant 6 : index
    %c0_22 = arith.constant 0 : index
    %32 = vector.load %arg4[%c6, %c0_22] : memref<9x512xf32, #tpu.memory_space<vmem>>, vector<1x512xf32>
    %33 = vector.broadcast %32 : vector<1x512xf32> to vector<4x512xf32>
    %34 = arith.mulf %31, %33 : vector<4x512xf32>
    %c0_23 = arith.constant 0 : index
    %c72 = arith.constant 72 : index
    %35 = vector.load %arg6[%c0_23, %c72] : memref<4x768xf32, #tpu.memory_space<vmem>>, vector<4x512xf32>
    %c7 = arith.constant 7 : index
    %c0_24 = arith.constant 0 : index
    %36 = vector.load %arg4[%c7, %c0_24] : memref<9x512xf32, #tpu.memory_space<vmem>>, vector<1x512xf32>
    %37 = vector.broadcast %36 : vector<1x512xf32> to vector<4x512xf32>
    %38 = arith.mulf %35, %37 : vector<4x512xf32>
    %39 = tpu.concatenate %26, %30, %34, %38 in 0 : vector<4x512xf32>, vector<4x512xf32>, vector<4x512xf32>, vector<4x512xf32> -> vector<16x512xf32>
    %40 = arith.truncf %39 : vector<16x512xf32> to vector<16x512xbf16>
    %c16 = arith.constant 16 : index
    %c0_25 = arith.constant 0 : index
    %41 = vector.load %arg7[%c16, %c0_25] : memref<112x512xbf16, #tpu.memory_space<vmem>>, vector<16x512xbf16>
    tpu.vector_store %arg7[%c16, %c0_25], %40 {strides = array<i32>} : memref<112x512xbf16, #tpu.memory_space<vmem>>, vector<16x512xbf16>,
    %c0_26 = arith.constant 0 : index
    %c73 = arith.constant 73 : index
    %42 = vector.load %arg6[%c0_26, %c73] : memref<4x768xf32, #tpu.memory_space<vmem>>, vector<4x512xf32>
    %c8 = arith.constant 8 : index
    %c0_27 = arith.constant 0 : index
    %43 = vector.load %arg4[%c8, %c0_27] : memref<9x512xf32, #tpu.memory_space<vmem>>, vector<1x512xf32>
    %44 = vector.broadcast %43 : vector<1x512xf32> to vector<4x512xf32>
    %45 = arith.mulf %42, %44 : vector<4x512xf32>
    %c0_28 = arith.constant 0 : index
    %c119 = arith.constant 119 : index
    %46 = vector.load %arg6[%c0_28, %c119] : memref<4x768xf32, #tpu.memory_space<vmem>>, vector<4x512xf32>
    %c0_29 = arith.constant 0 : index
    %c0_30 = arith.constant 0 : index
    %47 = vector.load %arg4[%c0_29, %c0_30] : memref<9x512xf32, #tpu.memory_space<vmem>>, vector<1x512xf32>
    %48 = vector.broadcast %47 : vector<1x512xf32> to vector<4x512xf32>
    %49 = arith.mulf %46, %48 : vector<4x512xf32>
    %c0_31 = arith.constant 0 : index
    %c120 = arith.constant 120 : index
    %50 = vector.load %arg6[%c0_31, %c120] : memref<4x768xf32, #tpu.memory_space<vmem>>, vector<4x512xf32>
    %c1_32 = arith.constant 1 : index
    %c0_33 = arith.constant 0 : index
    %51 = vector.load %arg4[%c1_32, %c0_33] : memref<9x512xf32, #tpu.memory_space<vmem>>, vector<1x512xf32>
    %52 = vector.broadcast %51 : vector<1x512xf32> to vector<4x512xf32>
    %53 = arith.mulf %50, %52 : vector<4x512xf32>
    %c0_34 = arith.constant 0 : index
    %c121 = arith.constant 121 : index
    %54 = vector.load %arg6[%c0_34, %c121] : memref<4x768xf32, #tpu.memory_space<vmem>>, vector<4x512xf32>
    %c2_35 = arith.constant 2 : index
    %c0_36 = arith.constant 0 : index
    %55 = vector.load %arg4[%c2_35, %c0_36] : memref<9x512xf32, #tpu.memory_space<vmem>>, vector<1x512xf32>
    %56 = vector.broadcast %55 : vector<1x512xf32> to vector<4x512xf32>
    %57 = arith.mulf %54, %56 : vector<4x512xf32>
    %58 = tpu.concatenate %45, %49, %53, %57 in 0 : vector<4x512xf32>, vector<4x512xf32>, vector<4x512xf32>, vector<4x512xf32> -> vector<16x512xf32>
    %59 = arith.truncf %58 : vector<16x512xf32> to vector<16x512xbf16>
    %c32 = arith.constant 32 : index
    %c0_37 = arith.constant 0 : index
    %60 = vector.load %arg7[%c32, %c0_37] : memref<112x512xbf16, #tpu.memory_space<vmem>>, vector<16x512xbf16>
    tpu.vector_store %arg7[%c32, %c0_37], %59 {strides = array<i32>} : memref<112x512xbf16, #tpu.memory_space<vmem>>, vector<16x512xbf16>,
    %c0_38 = arith.constant 0 : index
    %c127 = arith.constant 127 : index
    %61 = vector.load %arg6[%c0_38, %c127] : memref<4x768xf32, #tpu.memory_space<vmem>>, vector<4x512xf32>
    %c3_39 = arith.constant 3 : index
    %c0_40 = arith.constant 0 : index
    %62 = vector.load %arg4[%c3_39, %c0_40] : memref<9x512xf32, #tpu.memory_space<vmem>>, vector<1x512xf32>
    %63 = vector.broadcast %62 : vector<1x512xf32> to vector<4x512xf32>
    %64 = arith.mulf %61, %63 : vector<4x512xf32>
    %c0_41 = arith.constant 0 : index
    %c128_42 = arith.constant 128 : index
    %65 = vector.load %arg6[%c0_41, %c128_42] : memref<4x768xf32, #tpu.memory_space<vmem>>, vector<4x512xf32>
    %c0_43 = arith.constant 0 : index
    %c129 = arith.constant 129 : index
    %66 = vector.load %arg6[%c0_43, %c129] : memref<4x768xf32, #tpu.memory_space<vmem>>, vector<4x512xf32>
    %c5_44 = arith.constant 5 : index
    %c0_45 = arith.constant 0 : index
    %67 = vector.load %arg4[%c5_44, %c0_45] : memref<9x512xf32, #tpu.memory_space<vmem>>, vector<1x512xf32>
    %68 = vector.broadcast %67 : vector<1x512xf32> to vector<4x512xf32>
    %69 = arith.mulf %66, %68 : vector<4x512xf32>
    %c0_46 = arith.constant 0 : index
    %c135 = arith.constant 135 : index
    %70 = vector.load %arg6[%c0_46, %c135] : memref<4x768xf32, #tpu.memory_space<vmem>>, vector<4x512xf32>
    %c6_47 = arith.constant 6 : index
    %c0_48 = arith.constant 0 : index
    %71 = vector.load %arg4[%c6_47, %c0_48] : memref<9x512xf32, #tpu.memory_space<vmem>>, vector<1x512xf32>
    %72 = vector.broadcast %71 : vector<1x512xf32> to vector<4x512xf32>
    %73 = arith.mulf %70, %72 : vector<4x512xf32>
    %74 = tpu.concatenate %64, %65, %69, %73 in 0 : vector<4x512xf32>, vector<4x512xf32>, vector<4x512xf32>, vector<4x512xf32> -> vector<16x512xf32>
    %75 = arith.truncf %74 : vector<16x512xf32> to vector<16x512xbf16>
    %c48 = arith.constant 48 : index
    %c0_49 = arith.constant 0 : index
    %76 = vector.load %arg7[%c48, %c0_49] : memref<112x512xbf16, #tpu.memory_space<vmem>>, vector<16x512xbf16>
    tpu.vector_store %arg7[%c48, %c0_49], %75 {strides = array<i32>} : memref<112x512xbf16, #tpu.memory_space<vmem>>, vector<16x512xbf16>,
    %c0_50 = arith.constant 0 : index
    %c136 = arith.constant 136 : index
    %77 = vector.load %arg6[%c0_50, %c136] : memref<4x768xf32, #tpu.memory_space<vmem>>, vector<4x512xf32>
    %c7_51 = arith.constant 7 : index
    %c0_52 = arith.constant 0 : index
    %78 = vector.load %arg4[%c7_51, %c0_52] : memref<9x512xf32, #tpu.memory_space<vmem>>, vector<1x512xf32>
    %79 = vector.broadcast %78 : vector<1x512xf32> to vector<4x512xf32>
    %80 = arith.mulf %77, %79 : vector<4x512xf32>
    %c0_53 = arith.constant 0 : index
    %c137 = arith.constant 137 : index
    %81 = vector.load %arg6[%c0_53, %c137] : memref<4x768xf32, #tpu.memory_space<vmem>>, vector<4x512xf32>
    %c8_54 = arith.constant 8 : index
    %c0_55 = arith.constant 0 : index
    %82 = vector.load %arg4[%c8_54, %c0_55] : memref<9x512xf32, #tpu.memory_space<vmem>>, vector<1x512xf32>
    %83 = vector.broadcast %82 : vector<1x512xf32> to vector<4x512xf32>
    %84 = arith.mulf %81, %83 : vector<4x512xf32>
    %c0_56 = arith.constant 0 : index
    %c183 = arith.constant 183 : index
    %85 = vector.load %arg6[%c0_56, %c183] : memref<4x768xf32, #tpu.memory_space<vmem>>, vector<4x512xf32>
    %c0_57 = arith.constant 0 : index
    %c0_58 = arith.constant 0 : index
    %86 = vector.load %arg4[%c0_57, %c0_58] : memref<9x512xf32, #tpu.memory_space<vmem>>, vector<1x512xf32>
    %87 = vector.broadcast %86 : vector<1x512xf32> to vector<4x512xf32>
    %88 = arith.mulf %85, %87 : vector<4x512xf32>
    %c0_59 = arith.constant 0 : index
    %c184 = arith.constant 184 : index
    %89 = vector.load %arg6[%c0_59, %c184] : memref<4x768xf32, #tpu.memory_space<vmem>>, vector<4x512xf32>
    %c1_60 = arith.constant 1 : index
    %c0_61 = arith.constant 0 : index
    %90 = vector.load %arg4[%c1_60, %c0_61] : memref<9x512xf32, #tpu.memory_space<vmem>>, vector<1x512xf32>
    %91 = vector.broadcast %90 : vector<1x512xf32> to vector<4x512xf32>
    %92 = arith.mulf %89, %91 : vector<4x512xf32>
    %93 = tpu.concatenate %80, %84, %88, %92 in 0 : vector<4x512xf32>, vector<4x512xf32>, vector<4x512xf32>, vector<4x512xf32> -> vector<16x512xf32>
    %94 = arith.truncf %93 : vector<16x512xf32> to vector<16x512xbf16>
    %c64_62 = arith.constant 64 : index
    %c0_63 = arith.constant 0 : index
    %95 = vector.load %arg7[%c64_62, %c0_63] : memref<112x512xbf16, #tpu.memory_space<vmem>>, vector<16x512xbf16>
    tpu.vector_store %arg7[%c64_62, %c0_63], %94 {strides = array<i32>} : memref<112x512xbf16, #tpu.memory_space<vmem>>, vector<16x512xbf16>,
    %c0_64 = arith.constant 0 : index
    %c185 = arith.constant 185 : index
    %96 = vector.load %arg6[%c0_64, %c185] : memref<4x768xf32, #tpu.memory_space<vmem>>, vector<4x512xf32>
    %c2_65 = arith.constant 2 : index
    %c0_66 = arith.constant 0 : index
    %97 = vector.load %arg4[%c2_65, %c0_66] : memref<9x512xf32, #tpu.memory_space<vmem>>, vector<1x512xf32>
    %98 = vector.broadcast %97 : vector<1x512xf32> to vector<4x512xf32>
    %99 = arith.mulf %96, %98 : vector<4x512xf32>
    %c0_67 = arith.constant 0 : index
    %c191 = arith.constant 191 : index
    %100 = vector.load %arg6[%c0_67, %c191] : memref<4x768xf32, #tpu.memory_space<vmem>>, vector<4x512xf32>
    %c3_68 = arith.constant 3 : index
    %c0_69 = arith.constant 0 : index
    %101 = vector.load %arg4[%c3_68, %c0_69] : memref<9x512xf32, #tpu.memory_space<vmem>>, vector<1x512xf32>
    %102 = vector.broadcast %101 : vector<1x512xf32> to vector<4x512xf32>
    %103 = arith.mulf %100, %102 : vector<4x512xf32>
    %c0_70 = arith.constant 0 : index
    %c192 = arith.constant 192 : index
    %104 = vector.load %arg6[%c0_70, %c192] : memref<4x768xf32, #tpu.memory_space<vmem>>, vector<4x512xf32>
    %c0_71 = arith.constant 0 : index
    %c193 = arith.constant 193 : index
    %105 = vector.load %arg6[%c0_71, %c193] : memref<4x768xf32, #tpu.memory_space<vmem>>, vector<4x512xf32>
    %c5_72 = arith.constant 5 : index
    %c0_73 = arith.constant 0 : index
    %106 = vector.load %arg4[%c5_72, %c0_73] : memref<9x512xf32, #tpu.memory_space<vmem>>, vector<1x512xf32>
    %107 = vector.broadcast %106 : vector<1x512xf32> to vector<4x512xf32>
    %108 = arith.mulf %105, %107 : vector<4x512xf32>
    %109 = tpu.concatenate %99, %103, %104, %108 in 0 : vector<4x512xf32>, vector<4x512xf32>, vector<4x512xf32>, vector<4x512xf32> -> vector<16x512xf32>
    %110 = arith.truncf %109 : vector<16x512xf32> to vector<16x512xbf16>
    %c80 = arith.constant 80 : index
    %c0_74 = arith.constant 0 : index
    %111 = vector.load %arg7[%c80, %c0_74] : memref<112x512xbf16, #tpu.memory_space<vmem>>, vector<16x512xbf16>
    tpu.vector_store %arg7[%c80, %c0_74], %110 {strides = array<i32>} : memref<112x512xbf16, #tpu.memory_space<vmem>>, vector<16x512xbf16>,
    %c0_75 = arith.constant 0 : index
    %c199 = arith.constant 199 : index
    %112 = vector.load %arg6[%c0_75, %c199] : memref<4x768xf32, #tpu.memory_space<vmem>>, vector<4x512xf32>
    %c6_76 = arith.constant 6 : index
    %c0_77 = arith.constant 0 : index
    %113 = vector.load %arg4[%c6_76, %c0_77] : memref<9x512xf32, #tpu.memory_space<vmem>>, vector<1x512xf32>
    %114 = vector.broadcast %113 : vector<1x512xf32> to vector<4x512xf32>
    %115 = arith.mulf %112, %114 : vector<4x512xf32>
    %c0_78 = arith.constant 0 : index
    %c200 = arith.constant 200 : index
    %116 = vector.load %arg6[%c0_78, %c200] : memref<4x768xf32, #tpu.memory_space<vmem>>, vector<4x512xf32>
    %c7_79 = arith.constant 7 : index
    %c0_80 = arith.constant 0 : index
    %117 = vector.load %arg4[%c7_79, %c0_80] : memref<9x512xf32, #tpu.memory_space<vmem>>, vector<1x512xf32>
    %118 = vector.broadcast %117 : vector<1x512xf32> to vector<4x512xf32>
    %119 = arith.mulf %116, %118 : vector<4x512xf32>
    %c0_81 = arith.constant 0 : index
    %c201 = arith.constant 201 : index
    %120 = vector.load %arg6[%c0_81, %c201] : memref<4x768xf32, #tpu.memory_space<vmem>>, vector<4x512xf32>
    %c8_82 = arith.constant 8 : index
    %c0_83 = arith.constant 0 : index
    %121 = vector.load %arg4[%c8_82, %c0_83] : memref<9x512xf32, #tpu.memory_space<vmem>>, vector<1x512xf32>
    %122 = vector.broadcast %121 : vector<1x512xf32> to vector<4x512xf32>
    %123 = arith.mulf %120, %122 : vector<4x512xf32>
    %cst_84 = arith.constant 0.000000e+00 : f32
    %124 = vector.broadcast %cst_84 : f32 to vector<4x512xf32>
    %125 = tpu.concatenate %115, %119, %123, %124 in 0 : vector<4x512xf32>, vector<4x512xf32>, vector<4x512xf32>, vector<4x512xf32> -> vector<16x512xf32>
    %126 = arith.truncf %125 : vector<16x512xf32> to vector<16x512xbf16>
    %c96 = arith.constant 96 : index
    %c0_85 = arith.constant 0 : index
    %127 = vector.load %arg7[%c96, %c0_85] : memref<112x512xbf16, #tpu.memory_space<vmem>>, vector<16x512xbf16>
    tpu.vector_store %arg7[%c96, %c0_85], %126 {strides = array<i32>} : memref<112x512xbf16, #tpu.memory_space<vmem>>, vector<16x512xbf16>,
    %c0_86 = arith.constant 0 : index
    %c0_87 = arith.constant 0 : index
    %c0_88 = arith.constant 0 : index
    %128 = vector.load %arg2[%c0_86, %c0_87, %c0_88] : memref<2x4x112xbf16, #tpu.memory_space<vmem>>, vector<1x4x112xbf16>
    %129 = vector.shape_cast %128 : vector<1x4x112xbf16> to vector<4x112xbf16>
    %c0_89 = arith.constant 0 : index
    %c0_90 = arith.constant 0 : index
    %130 = vector.load %arg7[%c0_89, %c0_90] : memref<112x512xbf16, #tpu.memory_space<vmem>>, vector<112x512xbf16>
    %cst_91 = arith.constant dense<0.000000e+00> : vector<4x512xf32>
    %131 = tpu.matmul %129, %130, %cst_91 {dimension_numbers = #tpu.dot_dimension_numbers<[1], [0], [0], [1], [0, 0, 1, 1], [], []>} : vector<4x112xbf16>, vector<112x512xbf16>, vector<4x512xf32> -> vector<4x512xf32>
    %c0_92 = arith.constant 0 : index
    %c0_93 = arith.constant 0 : index
    %c0_94 = arith.constant 0 : index
    %132 = vector.load %arg3[%c0_92, %c0_93, %c0_94] : memref<2x4x1xf32, #tpu.memory_space<vmem>>, vector<1x4x1xf32>
    %133 = vector.shape_cast %132 : vector<1x4x1xf32> to vector<4x1xf32>
    %134 = vector.broadcast %133 : vector<4x1xf32> to vector<4x512xf32>
    %135 = arith.addf %131, %134 : vector<4x512xf32>
    %cst_95 = arith.constant 0.000000e+00 : f32
    %136 = vector.broadcast %cst_95 : f32 to vector<4x512xf32>
    %137 = arith.maximumf %135, %136 : vector<4x512xf32>
    %c0_96 = arith.constant 0 : index
    %c128_97 = arith.constant 128 : index
    %138 = vector.load %arg6[%c0_96, %c128_97] : memref<4x768xf32, #tpu.memory_space<vmem>>, vector<4x512xf32>
    tpu.vector_store %arg6[%c0_96, %c128_97], %137 {strides = array<i32>} : memref<4x768xf32, #tpu.memory_space<vmem>>, vector<4x512xf32>,
    %c0_98 = arith.constant 0 : index
    %c55_99 = arith.constant 55 : index
    %139 = vector.load %arg6[%c0_98, %c55_99] : memref<4x768xf32, #tpu.memory_space<vmem>>, vector<4x512xf32>
    %c0_100 = arith.constant 0 : index
    %c0_101 = arith.constant 0 : index
    %140 = vector.load %arg4[%c0_100, %c0_101] : memref<9x512xf32, #tpu.memory_space<vmem>>, vector<1x512xf32>
    %141 = vector.broadcast %140 : vector<1x512xf32> to vector<4x512xf32>
    %142 = arith.mulf %139, %141 : vector<4x512xf32>
    %c0_102 = arith.constant 0 : index
    %c56_103 = arith.constant 56 : index
    %143 = vector.load %arg6[%c0_102, %c56_103] : memref<4x768xf32, #tpu.memory_space<vmem>>, vector<4x512xf32>
    %c1_104 = arith.constant 1 : index
    %c0_105 = arith.constant 0 : index
    %144 = vector.load %arg4[%c1_104, %c0_105] : memref<9x512xf32, #tpu.memory_space<vmem>>, vector<1x512xf32>
    %145 = vector.broadcast %144 : vector<1x512xf32> to vector<4x512xf32>
    %146 = arith.mulf %143, %145 : vector<4x512xf32>
    %c0_106 = arith.constant 0 : index
    %c57_107 = arith.constant 57 : index
    %147 = vector.load %arg6[%c0_106, %c57_107] : memref<4x768xf32, #tpu.memory_space<vmem>>, vector<4x512xf32>
    %c2_108 = arith.constant 2 : index
    %c0_109 = arith.constant 0 : index
    %148 = vector.load %arg4[%c2_108, %c0_109] : memref<9x512xf32, #tpu.memory_space<vmem>>, vector<1x512xf32>
    %149 = vector.broadcast %148 : vector<1x512xf32> to vector<4x512xf32>
    %150 = arith.mulf %147, %149 : vector<4x512xf32>
    %c0_110 = arith.constant 0 : index
    %c63_111 = arith.constant 63 : index
    %151 = vector.load %arg6[%c0_110, %c63_111] : memref<4x768xf32, #tpu.memory_space<vmem>>, vector<4x512xf32>
    %c3_112 = arith.constant 3 : index
    %c0_113 = arith.constant 0 : index
    %152 = vector.load %arg4[%c3_112, %c0_113] : memref<9x512xf32, #tpu.memory_space<vmem>>, vector<1x512xf32>
    %153 = vector.broadcast %152 : vector<1x512xf32> to vector<4x512xf32>
    %154 = arith.mulf %151, %153 : vector<4x512xf32>
    %155 = tpu.concatenate %142, %146, %150, %154 in 0 : vector<4x512xf32>, vector<4x512xf32>, vector<4x512xf32>, vector<4x512xf32> -> vector<16x512xf32>
    %156 = arith.truncf %155 : vector<16x512xf32> to vector<16x512xbf16>
    %c0_114 = arith.constant 0 : index
    %c0_115 = arith.constant 0 : index
    %157 = vector.load %arg7[%c0_114, %c0_115] : memref<112x512xbf16, #tpu.memory_space<vmem>>, vector<16x512xbf16>
    tpu.vector_store %arg7[%c0_114, %c0_115], %156 {strides = array<i32>} : memref<112x512xbf16, #tpu.memory_space<vmem>>, vector<16x512xbf16>,
    %c0_116 = arith.constant 0 : index
    %c64_117 = arith.constant 64 : index
    %158 = vector.load %arg6[%c0_116, %c64_117] : memref<4x768xf32, #tpu.memory_space<vmem>>, vector<4x512xf32>
    %c0_118 = arith.constant 0 : index
    %c65_119 = arith.constant 65 : index
    %159 = vector.load %arg6[%c0_118, %c65_119] : memref<4x768xf32, #tpu.memory_space<vmem>>, vector<4x512xf32>
    %c5_120 = arith.constant 5 : index
    %c0_121 = arith.constant 0 : index
    %160 = vector.load %arg4[%c5_120, %c0_121] : memref<9x512xf32, #tpu.memory_space<vmem>>, vector<1x512xf32>
    %161 = vector.broadcast %160 : vector<1x512xf32> to vector<4x512xf32>
    %162 = arith.mulf %159, %161 : vector<4x512xf32>
    %c0_122 = arith.constant 0 : index
    %c71_123 = arith.constant 71 : index
    %163 = vector.load %arg6[%c0_122, %c71_123] : memref<4x768xf32, #tpu.memory_space<vmem>>, vector<4x512xf32>
    %c6_124 = arith.constant 6 : index
    %c0_125 = arith.constant 0 : index
    %164 = vector.load %arg4[%c6_124, %c0_125] : memref<9x512xf32, #tpu.memory_space<vmem>>, vector<1x512xf32>
    %165 = vector.broadcast %164 : vector<1x512xf32> to vector<4x512xf32>
    %166 = arith.mulf %163, %165 : vector<4x512xf32>
    %c0_126 = arith.constant 0 : index
    %c72_127 = arith.constant 72 : index
    %167 = vector.load %arg6[%c0_126, %c72_127] : memref<4x768xf32, #tpu.memory_space<vmem>>, vector<4x512xf32>
    %c7_128 = arith.constant 7 : index
    %c0_129 = arith.constant 0 : index
    %168 = vector.load %arg4[%c7_128, %c0_129] : memref<9x512xf32, #tpu.memory_space<vmem>>, vector<1x512xf32>
    %169 = vector.broadcast %168 : vector<1x512xf32> to vector<4x512xf32>
    %170 = arith.mulf %167, %169 : vector<4x512xf32>
    %171 = tpu.concatenate %158, %162, %166, %170 in 0 : vector<4x512xf32>, vector<4x512xf32>, vector<4x512xf32>, vector<4x512xf32> -> vector<16x512xf32>
    %172 = arith.truncf %171 : vector<16x512xf32> to vector<16x512xbf16>
    %c16_130 = arith.constant 16 : index
    %c0_131 = arith.constant 0 : index
    %173 = vector.load %arg7[%c16_130, %c0_131] : memref<112x512xbf16, #tpu.memory_space<vmem>>, vector<16x512xbf16>
    tpu.vector_store %arg7[%c16_130, %c0_131], %172 {strides = array<i32>} : memref<112x512xbf16, #tpu.memory_space<vmem>>, vector<16x512xbf16>,
    %c0_132 = arith.constant 0 : index
    %c73_133 = arith.constant 73 : index
    %174 = vector.load %arg6[%c0_132, %c73_133] : memref<4x768xf32, #tpu.memory_space<vmem>>, vector<4x512xf32>
    %c8_134 = arith.constant 8 : index
    %c0_135 = arith.constant 0 : index
    %175 = vector.load %arg4[%c8_134, %c0_135] : memref<9x512xf32, #tpu.memory_space<vmem>>, vector<1x512xf32>
    %176 = vector.broadcast %175 : vector<1x512xf32> to vector<4x512xf32>
    %177 = arith.mulf %174, %176 : vector<4x512xf32>
    %c0_136 = arith.constant 0 : index
    %c119_137 = arith.constant 119 : index
    %178 = vector.load %arg6[%c0_136, %c119_137] : memref<4x768xf32, #tpu.memory_space<vmem>>, vector<4x512xf32>
    %c0_138 = arith.constant 0 : index
    %c0_139 = arith.constant 0 : index
    %179 = vector.load %arg4[%c0_138, %c0_139] : memref<9x512xf32, #tpu.memory_space<vmem>>, vector<1x512xf32>
    %180 = vector.broadcast %179 : vector<1x512xf32> to vector<4x512xf32>
    %181 = arith.mulf %178, %180 : vector<4x512xf32>
    %c0_140 = arith.constant 0 : index
    %c120_141 = arith.constant 120 : index
    %182 = vector.load %arg6[%c0_140, %c120_141] : memref<4x768xf32, #tpu.memory_space<vmem>>, vector<4x512xf32>
    %c1_142 = arith.constant 1 : index
    %c0_143 = arith.constant 0 : index
    %183 = vector.load %arg4[%c1_142, %c0_143] : memref<9x512xf32, #tpu.memory_space<vmem>>, vector<1x512xf32>
    %184 = vector.broadcast %183 : vector<1x512xf32> to vector<4x512xf32>
    %185 = arith.mulf %182, %184 : vector<4x512xf32>
    %c0_144 = arith.constant 0 : index
    %c121_145 = arith.constant 121 : index
    %186 = vector.load %arg6[%c0_144, %c121_145] : memref<4x768xf32, #tpu.memory_space<vmem>>, vector<4x512xf32>
    %c2_146 = arith.constant 2 : index
    %c0_147 = arith.constant 0 : index
    %187 = vector.load %arg4[%c2_146, %c0_147] : memref<9x512xf32, #tpu.memory_space<vmem>>, vector<1x512xf32>
    %188 = vector.broadcast %187 : vector<1x512xf32> to vector<4x512xf32>
    %189 = arith.mulf %186, %188 : vector<4x512xf32>
    %190 = tpu.concatenate %177, %181, %185, %189 in 0 : vector<4x512xf32>, vector<4x512xf32>, vector<4x512xf32>, vector<4x512xf32> -> vector<16x512xf32>
    %191 = arith.truncf %190 : vector<16x512xf32> to vector<16x512xbf16>
    %c32_148 = arith.constant 32 : index
    %c0_149 = arith.constant 0 : index
    %192 = vector.load %arg7[%c32_148, %c0_149] : memref<112x512xbf16, #tpu.memory_space<vmem>>, vector<16x512xbf16>
    tpu.vector_store %arg7[%c32_148, %c0_149], %191 {strides = array<i32>} : memref<112x512xbf16, #tpu.memory_space<vmem>>, vector<16x512xbf16>,
    %c0_150 = arith.constant 0 : index
    %c127_151 = arith.constant 127 : index
    %193 = vector.load %arg6[%c0_150, %c127_151] : memref<4x768xf32, #tpu.memory_space<vmem>>, vector<4x512xf32>
    %c3_152 = arith.constant 3 : index
    %c0_153 = arith.constant 0 : index
    %194 = vector.load %arg4[%c3_152, %c0_153] : memref<9x512xf32, #tpu.memory_space<vmem>>, vector<1x512xf32>
    %195 = vector.broadcast %194 : vector<1x512xf32> to vector<4x512xf32>
    %196 = arith.mulf %193, %195 : vector<4x512xf32>
    %c0_154 = arith.constant 0 : index
    %c128_155 = arith.constant 128 : index
    %197 = vector.load %arg6[%c0_154, %c128_155] : memref<4x768xf32, #tpu.memory_space<vmem>>, vector<4x512xf32>
    %c0_156 = arith.constant 0 : index
    %c129_157 = arith.constant 129 : index
    %198 = vector.load %arg6[%c0_156, %c129_157] : memref<4x768xf32, #tpu.memory_space<vmem>>, vector<4x512xf32>
    %c5_158 = arith.constant 5 : index
    %c0_159 = arith.constant 0 : index
    %199 = vector.load %arg4[%c5_158, %c0_159] : memref<9x512xf32, #tpu.memory_space<vmem>>, vector<1x512xf32>
    %200 = vector.broadcast %199 : vector<1x512xf32> to vector<4x512xf32>
    %201 = arith.mulf %198, %200 : vector<4x512xf32>
    %c0_160 = arith.constant 0 : index
    %c135_161 = arith.constant 135 : index
    %202 = vector.load %arg6[%c0_160, %c135_161] : memref<4x768xf32, #tpu.memory_space<vmem>>, vector<4x512xf32>
    %c6_162 = arith.constant 6 : index
    %c0_163 = arith.constant 0 : index
    %203 = vector.load %arg4[%c6_162, %c0_163] : memref<9x512xf32, #tpu.memory_space<vmem>>, vector<1x512xf32>
    %204 = vector.broadcast %203 : vector<1x512xf32> to vector<4x512xf32>
    %205 = arith.mulf %202, %204 : vector<4x512xf32>
    %206 = tpu.concatenate %196, %197, %201, %205 in 0 : vector<4x512xf32>, vector<4x512xf32>, vector<4x512xf32>, vector<4x512xf32> -> vector<16x512xf32>
    %207 = arith.truncf %206 : vector<16x512xf32> to vector<16x512xbf16>
    %c48_164 = arith.constant 48 : index
    %c0_165 = arith.constant 0 : index
    %208 = vector.load %arg7[%c48_164, %c0_165] : memref<112x512xbf16, #tpu.memory_space<vmem>>, vector<16x512xbf16>
    tpu.vector_store %arg7[%c48_164, %c0_165], %207 {strides = array<i32>} : memref<112x512xbf16, #tpu.memory_space<vmem>>, vector<16x512xbf16>,
    %c0_166 = arith.constant 0 : index
    %c136_167 = arith.constant 136 : index
    %209 = vector.load %arg6[%c0_166, %c136_167] : memref<4x768xf32, #tpu.memory_space<vmem>>, vector<4x512xf32>
    %c7_168 = arith.constant 7 : index
    %c0_169 = arith.constant 0 : index
    %210 = vector.load %arg4[%c7_168, %c0_169] : memref<9x512xf32, #tpu.memory_space<vmem>>, vector<1x512xf32>
    %211 = vector.broadcast %210 : vector<1x512xf32> to vector<4x512xf32>
    %212 = arith.mulf %209, %211 : vector<4x512xf32>
    %c0_170 = arith.constant 0 : index
    %c137_171 = arith.constant 137 : index
    %213 = vector.load %arg6[%c0_170, %c137_171] : memref<4x768xf32, #tpu.memory_space<vmem>>, vector<4x512xf32>
    %c8_172 = arith.constant 8 : index
    %c0_173 = arith.constant 0 : index
    %214 = vector.load %arg4[%c8_172, %c0_173] : memref<9x512xf32, #tpu.memory_space<vmem>>, vector<1x512xf32>
    %215 = vector.broadcast %214 : vector<1x512xf32> to vector<4x512xf32>
    %216 = arith.mulf %213, %215 : vector<4x512xf32>
    %c0_174 = arith.constant 0 : index
    %c183_175 = arith.constant 183 : index
    %217 = vector.load %arg6[%c0_174, %c183_175] : memref<4x768xf32, #tpu.memory_space<vmem>>, vector<4x512xf32>
    %c0_176 = arith.constant 0 : index
    %c0_177 = arith.constant 0 : index
    %218 = vector.load %arg4[%c0_176, %c0_177] : memref<9x512xf32, #tpu.memory_space<vmem>>, vector<1x512xf32>
    %219 = vector.broadcast %218 : vector<1x512xf32> to vector<4x512xf32>
    %220 = arith.mulf %217, %219 : vector<4x512xf32>
    %c0_178 = arith.constant 0 : index
    %c184_179 = arith.constant 184 : index
    %221 = vector.load %arg6[%c0_178, %c184_179] : memref<4x768xf32, #tpu.memory_space<vmem>>, vector<4x512xf32>
    %c1_180 = arith.constant 1 : index
    %c0_181 = arith.constant 0 : index
    %222 = vector.load %arg4[%c1_180, %c0_181] : memref<9x512xf32, #tpu.memory_space<vmem>>, vector<1x512xf32>
    %223 = vector.broadcast %222 : vector<1x512xf32> to vector<4x512xf32>
    %224 = arith.mulf %221, %223 : vector<4x512xf32>
    %225 = tpu.concatenate %212, %216, %220, %224 in 0 : vector<4x512xf32>, vector<4x512xf32>, vector<4x512xf32>, vector<4x512xf32> -> vector<16x512xf32>
    %226 = arith.truncf %225 : vector<16x512xf32> to vector<16x512xbf16>
    %c64_182 = arith.constant 64 : index
    %c0_183 = arith.constant 0 : index
    %227 = vector.load %arg7[%c64_182, %c0_183] : memref<112x512xbf16, #tpu.memory_space<vmem>>, vector<16x512xbf16>
    tpu.vector_store %arg7[%c64_182, %c0_183], %226 {strides = array<i32>} : memref<112x512xbf16, #tpu.memory_space<vmem>>, vector<16x512xbf16>,
    %c0_184 = arith.constant 0 : index
    %c185_185 = arith.constant 185 : index
    %228 = vector.load %arg6[%c0_184, %c185_185] : memref<4x768xf32, #tpu.memory_space<vmem>>, vector<4x512xf32>
    %c2_186 = arith.constant 2 : index
    %c0_187 = arith.constant 0 : index
    %229 = vector.load %arg4[%c2_186, %c0_187] : memref<9x512xf32, #tpu.memory_space<vmem>>, vector<1x512xf32>
    %230 = vector.broadcast %229 : vector<1x512xf32> to vector<4x512xf32>
    %231 = arith.mulf %228, %230 : vector<4x512xf32>
    %c0_188 = arith.constant 0 : index
    %c191_189 = arith.constant 191 : index
    %232 = vector.load %arg6[%c0_188, %c191_189] : memref<4x768xf32, #tpu.memory_space<vmem>>, vector<4x512xf32>
    %c3_190 = arith.constant 3 : index
    %c0_191 = arith.constant 0 : index
    %233 = vector.load %arg4[%c3_190, %c0_191] : memref<9x512xf32, #tpu.memory_space<vmem>>, vector<1x512xf32>
    %234 = vector.broadcast %233 : vector<1x512xf32> to vector<4x512xf32>
    %235 = arith.mulf %232, %234 : vector<4x512xf32>
    %c0_192 = arith.constant 0 : index
    %c192_193 = arith.constant 192 : index
    %236 = vector.load %arg6[%c0_192, %c192_193] : memref<4x768xf32, #tpu.memory_space<vmem>>, vector<4x512xf32>
    %c0_194 = arith.constant 0 : index
    %c193_195 = arith.constant 193 : index
    %237 = vector.load %arg6[%c0_194, %c193_195] : memref<4x768xf32, #tpu.memory_space<vmem>>, vector<4x512xf32>
    %c5_196 = arith.constant 5 : index
    %c0_197 = arith.constant 0 : index
    %238 = vector.load %arg4[%c5_196, %c0_197] : memref<9x512xf32, #tpu.memory_space<vmem>>, vector<1x512xf32>
    %239 = vector.broadcast %238 : vector<1x512xf32> to vector<4x512xf32>
    %240 = arith.mulf %237, %239 : vector<4x512xf32>
    %241 = tpu.concatenate %231, %235, %236, %240 in 0 : vector<4x512xf32>, vector<4x512xf32>, vector<4x512xf32>, vector<4x512xf32> -> vector<16x512xf32>
    %242 = arith.truncf %241 : vector<16x512xf32> to vector<16x512xbf16>
    %c80_198 = arith.constant 80 : index
    %c0_199 = arith.constant 0 : index
    %243 = vector.load %arg7[%c80_198, %c0_199] : memref<112x512xbf16, #tpu.memory_space<vmem>>, vector<16x512xbf16>
    tpu.vector_store %arg7[%c80_198, %c0_199], %242 {strides = array<i32>} : memref<112x512xbf16, #tpu.memory_space<vmem>>, vector<16x512xbf16>,
    %c0_200 = arith.constant 0 : index
    %c199_201 = arith.constant 199 : index
    %244 = vector.load %arg6[%c0_200, %c199_201] : memref<4x768xf32, #tpu.memory_space<vmem>>, vector<4x512xf32>
    %c6_202 = arith.constant 6 : index
    %c0_203 = arith.constant 0 : index
    %245 = vector.load %arg4[%c6_202, %c0_203] : memref<9x512xf32, #tpu.memory_space<vmem>>, vector<1x512xf32>
    %246 = vector.broadcast %245 : vector<1x512xf32> to vector<4x512xf32>
    %247 = arith.mulf %244, %246 : vector<4x512xf32>
    %c0_204 = arith.constant 0 : index
    %c200_205 = arith.constant 200 : index
    %248 = vector.load %arg6[%c0_204, %c200_205] : memref<4x768xf32, #tpu.memory_space<vmem>>, vector<4x512xf32>
    %c7_206 = arith.constant 7 : index
    %c0_207 = arith.constant 0 : index
    %249 = vector.load %arg4[%c7_206, %c0_207] : memref<9x512xf32, #tpu.memory_space<vmem>>, vector<1x512xf32>
    %250 = vector.broadcast %249 : vector<1x512xf32> to vector<4x512xf32>
    %251 = arith.mulf %248, %250 : vector<4x512xf32>
    %c0_208 = arith.constant 0 : index
    %c201_209 = arith.constant 201 : index
    %252 = vector.load %arg6[%c0_208, %c201_209] : memref<4x768xf32, #tpu.memory_space<vmem>>, vector<4x512xf32>
    %c8_210 = arith.constant 8 : index
    %c0_211 = arith.constant 0 : index
    %253 = vector.load %arg4[%c8_210, %c0_211] : memref<9x512xf32, #tpu.memory_space<vmem>>, vector<1x512xf32>
    %254 = vector.broadcast %253 : vector<1x512xf32> to vector<4x512xf32>
    %255 = arith.mulf %252, %254 : vector<4x512xf32>
    %cst_212 = arith.constant 0.000000e+00 : f32
    %256 = vector.broadcast %cst_212 : f32 to vector<4x512xf32>
    %257 = tpu.concatenate %247, %251, %255, %256 in 0 : vector<4x512xf32>, vector<4x512xf32>, vector<4x512xf32>, vector<4x512xf32> -> vector<16x512xf32>
    %258 = arith.truncf %257 : vector<16x512xf32> to vector<16x512xbf16>
    %c96_213 = arith.constant 96 : index
    %c0_214 = arith.constant 0 : index
    %259 = vector.load %arg7[%c96_213, %c0_214] : memref<112x512xbf16, #tpu.memory_space<vmem>>, vector<16x512xbf16>
    tpu.vector_store %arg7[%c96_213, %c0_214], %258 {strides = array<i32>} : memref<112x512xbf16, #tpu.memory_space<vmem>>, vector<16x512xbf16>,
    %c1_215 = arith.constant 1 : index
    %c0_216 = arith.constant 0 : index
    %c0_217 = arith.constant 0 : index
    %260 = vector.load %arg2[%c1_215, %c0_216, %c0_217] : memref<2x4x112xbf16, #tpu.memory_space<vmem>>, vector<1x4x112xbf16>
    %261 = vector.shape_cast %260 : vector<1x4x112xbf16> to vector<4x112xbf16>
    %c0_218 = arith.constant 0 : index
    %c0_219 = arith.constant 0 : index
    %262 = vector.load %arg7[%c0_218, %c0_219] : memref<112x512xbf16, #tpu.memory_space<vmem>>, vector<112x512xbf16>
    %cst_220 = arith.constant dense<0.000000e+00> : vector<4x512xf32>
    %263 = tpu.matmul %261, %262, %cst_220 {dimension_numbers = #tpu.dot_dimension_numbers<[1], [0], [0], [1], [0, 0, 1, 1], [], []>} : vector<4x112xbf16>, vector<112x512xbf16>, vector<4x512xf32> -> vector<4x512xf32>
    %c1_221 = arith.constant 1 : index
    %c0_222 = arith.constant 0 : index
    %c0_223 = arith.constant 0 : index
    %264 = vector.load %arg3[%c1_221, %c0_222, %c0_223] : memref<2x4x1xf32, #tpu.memory_space<vmem>>, vector<1x4x1xf32>
    %265 = vector.shape_cast %264 : vector<1x4x1xf32> to vector<4x1xf32>
    %266 = vector.broadcast %265 : vector<4x1xf32> to vector<4x512xf32>
    %267 = arith.addf %263, %266 : vector<4x512xf32>
    %cst_224 = arith.constant 0.000000e+00 : f32
    %268 = vector.broadcast %cst_224 : f32 to vector<4x512xf32>
    %269 = arith.maximumf %267, %268 : vector<4x512xf32>
    %270 = arith.addf %269, %5 : vector<4x512xf32>
    %271 = vector.shape_cast %270 : vector<4x512xf32> to vector<1x4x512xf32>
    %c0_225 = arith.constant 0 : index
    %c0_226 = arith.constant 0 : index
    %c0_227 = arith.constant 0 : index
    %272 = vector.load %arg5[%c0_225, %c0_226, %c0_227] : memref<1x4x512xf32, #tpu.memory_space<vmem>>, vector<1x4x512xf32>
    tpu.vector_store %arg5[%c0_225, %c0_226, %c0_227], %271 {strides = array<i32>} : memref<1x4x512xf32, #tpu.memory_space<vmem>>, vector<1x4x512xf32>,
    return
  }
  func.func @transform_0(%arg0: i32) -> (i32, i32, i32) {
    %c0_i32 = arith.constant 0 : i32
    %c0_i32_0 = arith.constant 0 : i32
    %c0_i32_1 = arith.constant 0 : i32
    return %arg0, %c0_i32, %c0_i32_0 : i32, i32, i32
  }
  func.func @transform_1(%arg0: i32) -> (i32, i32, i32) {
    %c0_i32 = arith.constant 0 : i32
    %c0_i32_0 = arith.constant 0 : i32
    %c0_i32_1 = arith.constant 0 : i32
    %c0_i32_2 = arith.constant 0 : i32
    return %c0_i32, %c0_i32_0, %c0_i32_1 : i32, i32, i32
  }
  func.func @transform_2(%arg0: i32) -> (i32, i32, i32) {
    %c0_i32 = arith.constant 0 : i32
    %c0_i32_0 = arith.constant 0 : i32
    %c0_i32_1 = arith.constant 0 : i32
    %c0_i32_2 = arith.constant 0 : i32
    return %c0_i32, %c0_i32_0, %c0_i32_1 : i32, i32, i32
  }
  func.func @transform_3(%arg0: i32) -> (i32, i32) {
    %c0_i32 = arith.constant 0 : i32
    %c0_i32_0 = arith.constant 0 : i32
    %c0_i32_1 = arith.constant 0 : i32
    return %c0_i32, %c0_i32_0 : i32, i32
  }
  func.func @transform_4(%arg0: i32) -> (i32, i32, i32) {
    %c0_i32 = arith.constant 0 : i32
    %c0_i32_0 = arith.constant 0 : i32
    %c0_i32_1 = arith.constant 0 : i32
    return %arg0, %c0_i32, %c0_i32_0 : i32, i32, i32
  }
}

</mosaic_0001>

<llo_original>
// kernel: tpu_custom_call.1
$region0: #{tpu_custom_call.1}
  #allocation0 [shape = 'u32[]', space=smem, size = 0x4, offset = 0x4, fixed_abs, tag = 'smem constant byte address 0x4 - core index']
  #allocation1 [shape = 'u32[144,128]{1,0:T(1,128)}', space=vmem, size = 0x12000, scoped, tag = 'internal scratch']
  #allocation2 [shape = 'f32[4,768]{1,0:T(4,128)}', space=vmem, size = 0x3000, scoped, tag = 'scratch operand']
  #allocation3 [shape = 'bf16[112,512]{1,0:T(16,128)(2,1)}', space=vmem, size = 0x1c000, scoped, tag = 'scratch operand']
  %s0 = inlined_call_operand.hbm [shape: f32[2,4,512], index: 0, kind: input, shape index: {}]
  %s1 = inlined_call_operand.vmem [shape: bf16[2,4,112], index: 1, kind: input, shape index: {}]
  %s2 = inlined_call_operand.vmem [shape: f32[2,4,1], index: 2, kind: input, shape index: {}]
  %s3 = inlined_call_operand.hbm [shape: f32[9,512], index: 3, kind: input, shape index: {}]
  %s4 = inlined_call_operand.hbm [shape: f32[2,4,512], index: 4, kind: output, shape index: {}]
  %s5 = sld [smem:[#allocation0]]
  $region57: #{tpu_custom_call.1} parent=0
    _
  %s7 = ssub.s32 1, %s5
  %s8 = scalar_select 0, %s7, %s5
  $region1: #{tpu_custom_call.1} parent=0
    #allocation4 [shape = 'u8[16384]{0}', space=vmem, size = 0x4000, scoped, tag = 'input window, operand 0']
    #allocation5 [shape = 's32[2]{0}', space=sflag, size = 0x8, scoped, tag = 'scoped memory for tpu_custom_call.1']
    #allocation6 [shape = 's32[2]{0}', space=sflag, size = 0x8, scoped, tag = 'scoped memory for tpu_custom_call.1']
    #allocation7 [shape = 'u8[32768]{0}', space=vmem, size = 0x8000, scoped, tag = 'input window, operand 3, single buffered']
    #allocation8 [shape = 's32[1]{0}', space=sflag, size = 0x4, scoped, tag = 'scoped memory for tpu_custom_call.1']
    #allocation9 [shape = 'u8[16384]{0}', space=vmem, size = 0x4000, scoped, tag = 'output window, operand 0']
    %9 = vsyncpa [#allocation5], 0
    %s10 = scalar_lea.sflag [#allocation5], 1
    %11 = vsyncpa %s10, 0
    %12 = vsyncpa [#allocation8], 0
    %13 = vsyncpa [#allocation6], 0
    %s14 = scalar_lea.sflag [#allocation6], 1
    %15 = vsyncpa %s14, 0
    loop: start=0, step=1, limit=4
    $region2: #{tpu_custom_call.1} parent=1 // loop_pre_header
      _
    $region3: #{tpu_custom_call.1} parent=1 // loop_header
      %s17 = sphi 0, %s21
      %p18 = scmp.ge.s32.totalorder %s17, 4
      %s27 = sphi 0, %s29
      %s30 = sphi 0, %s27
      %s31 = sphi 0, %s30
      %s47 = sphi 0, %s31
      %s51 = sphi 0, %s51
      %s53 = sphi 0, %s51
      %s54 = sphi 0, %s53
      %s68 = sphi 0, %s54
      %s72 = sphi 0, %s72
      %s74 = sphi 0, %s72
      %s75 = sphi 0, %s74
      %s89 = sphi 0, %s75
      %s93 = sphi 0, %s93
      %s95 = sphi 0, %s93
      %s96 = sphi 0, %s95
      %s110 = sphi 0, %s96
      %s116 = sphi 0, %s118
      %s119 = sphi 0, %s116
      %s120 = sphi 0, %s119
      %s136 = sphi 0, %s120
    $region4: #{tpu_custom_call.1} parent=1 // loop_header_branch
      %20 = sbr.rel (%p18) target = $region8
    $region5: #{tpu_custom_call.1} parent=1 // loop_body
      %s22 = ssub.s32 %s17, 1
      %s23 = ssub.s32 %s17, 2
      %s24 = sadd.s32 %s17, 1
      %s25 = ssub.s32 %s17, %s24
      %p26 = scmp.eq.s32.totalorder %s25, 0
      %s28 = sadd.s32 %s27, 1
      %s29 = scalar_select %p26, %s27, %s28
      %p32 = pneg %p26
      %p33 = scmp.eq.s32.totalorder %s17, 1
      %p34 = por %p32, %p33
      %p35 = scmp.ne.s32.totalorder %s27, %s30
      %p36 = scmp.eq.s32.totalorder %s17, 0
      %p37 = por %p35, %p36
      %p38 = scmp.ne.s32.totalorder %s27, %s30
      %p39 = scmp.eq.s32.totalorder %s22, 1
      %p40 = por %p38, %p39
      %p41 = scmp.ne.s32.totalorder %s30, %s31
      %p42 = scmp.eq.s32.totalorder %s22, 0
      %p43 = por %p41, %p42
      %p44 = scmp.ne.s32.totalorder %s30, %s31
      %p45 = scmp.eq.s32.totalorder %s23, 1
      %p46 = por %p44, %p45
      %p48 = scmp.ne.s32.totalorder %s31, %s47
      %p49 = scmp.eq.s32.totalorder %s23, 0
      %p50 = por %p48, %p49
      %s52 = sadd.s32 %s51, 1
      %p55 = scmp.eq.s32.totalorder %s17, 1
      %p56 = scmp.ne.s32.totalorder %s51, %s53
      %p57 = scmp.eq.s32.totalorder %s17, 0
      %p58 = por %p56, %p57
      %p59 = scmp.ne.s32.totalorder %s51, %s53
      %p60 = scmp.eq.s32.totalorder %s22, 1
      %p61 = por %p59, %p60
      %p62 = scmp.ne.s32.totalorder %s53, %s54
      %p63 = scmp.eq.s32.totalorder %s22, 0
      %p64 = por %p62, %p63
      %p65 = scmp.ne.s32.totalorder %s53, %s54
      %p66 = scmp.eq.s32.totalorder %s23, 1
      %p67 = por %p65, %p66
      %p69 = scmp.ne.s32.totalorder %s54, %s68
      %p70 = scmp.eq.s32.totalorder %s23, 0
      %p71 = por %p69, %p70
      %s73 = sadd.s32 %s72, 1
      %p76 = scmp.eq.s32.totalorder %s17, 1
      %p77 = scmp.ne.s32.totalorder %s72, %s74
      %p78 = scmp.eq.s32.totalorder %s17, 0
      %p79 = por %p77, %p78
      %p80 = scmp.ne.s32.totalorder %s72, %s74
      %p81 = scmp.eq.s32.totalorder %s22, 1
      %p82 = por %p80, %p81
      %p83 = scmp.ne.s32.totalorder %s74, %s75
      %p84 = scmp.eq.s32.totalorder %s22, 0
      %p85 = por %p83, %p84
      %p86 = scmp.ne.s32.totalorder %s74, %s75
      %p87 = scmp.eq.s32.totalorder %s23, 1
      %p88 = por %p86, %p87
      %p90 = scmp.ne.s32.totalorder %s75, %s89
      %p91 = scmp.eq.s32.totalorder %s23, 0
      %p92 = por %p90, %p91
      %s94 = sadd.s32 %s93, 1
      %p97 = scmp.eq.s32.totalorder %s17, 1
      %p98 = scmp.ne.s32.totalorder %s93, %s95
      %p99 = scmp.eq.s32.totalorder %s17, 0
      %p100 = por %p98, %p99
      %p101 = scmp.ne.s32.totalorder %s93, %s95
      %p102 = scmp.eq.s32.totalorder %s22, 1
      %p103 = por %p101, %p102
      %p104 = scmp.ne.s32.totalorder %s95, %s96
      %p105 = scmp.eq.s32.totalorder %s22, 0
      %p106 = por %p104, %p105
      %p107 = scmp.ne.s32.totalorder %s95, %s96
      %p108 = scmp.eq.s32.totalorder %s23, 1
      %p109 = por %p107, %p108
      %p111 = scmp.ne.s32.totalorder %s96, %s110
      %p112 = scmp.eq.s32.totalorder %s23, 0
      %p113 = por %p111, %p112
      %s114 = ssub.s32 %s17, %s24
      %p115 = scmp.eq.s32.totalorder %s114, 0
      %s117 = sadd.s32 %s116, 1
      %s118 = scalar_select %p115, %s116, %s117
      %p121 = pneg %p115
      %p122 = scmp.eq.s32.totalorder %s17, 1
      %p123 = por %p121, %p122
      %p124 = scmp.ne.s32.totalorder %s116, %s119
      %p125 = scmp.eq.s32.totalorder %s17, 0
      %p126 = por %p124, %p125
      %p127 = scmp.ne.s32.totalorder %s116, %s119
      %p128 = scmp.eq.s32.totalorder %s22, 1
      %p129 = por %p127, %p128
      %p130 = scmp.ne.s32.totalorder %s119, %s120
      %p131 = scmp.eq.s32.totalorder %s22, 0
      %p132 = por %p130, %p131
      %p133 = scmp.ne.s32.totalorder %s119, %s120
      %p134 = scmp.eq.s32.totalorder %s23, 1
      %p135 = por %p133, %p134
      %p137 = scmp.ne.s32.totalorder %s120, %s136
      %p138 = scmp.eq.s32.totalorder %s23, 0
      %p139 = por %p137, %p138
      %p140 = scmp.le.s32.totalorder 1, %s17
      %p141 = scmp.lt.s32.totalorder %s17, 3
      %p142 = pnand %p140, %p141
      %p143 = pneg %p142
      // Predicated region
      $region9: #{tpu_custom_call.1} parent=5 // pred_check
        _
      $region10: #{tpu_custom_call.1} parent=5 // pred_check_branch
        %145 = sbr.rel (%p142) target = $region12
      $region11: #{tpu_custom_call.1} parent=5 // pred_region
        %s146 = ssub.s32 %s17, 1
        // Predicated region
        $region13: #{tpu_custom_call.1} parent=11 // pred_check
          %p147 = pneg %p64
        $region14: #{tpu_custom_call.1} parent=11 // pred_check_branch
          %149 = sbr.rel (%p147) target = $region16
        $region15: #{tpu_custom_call.1} parent=11 // pred_region
          _
        $region16: #{tpu_custom_call.1} parent=11 // pred_fallthru
          _
        // Predicated region
        $region17: #{tpu_custom_call.1} parent=11 // pred_check
          %p150 = pneg %p85
        $region18: #{tpu_custom_call.1} parent=11 // pred_check_branch
          %152 = sbr.rel (%p150) target = $region20
        $region19: #{tpu_custom_call.1} parent=11 // pred_region
          _
        $region20: #{tpu_custom_call.1} parent=11 // pred_fallthru
          _
        // Predicated region
        $region21: #{tpu_custom_call.1} parent=11 // pred_check
          %p153 = pneg %p106
        $region22: #{tpu_custom_call.1} parent=11 // pred_check_branch
          %155 = sbr.rel (%p153) target = $region24
        $region23: #{tpu_custom_call.1} parent=11 // pred_region
          %s157 = ssub.s32 1024, 1024
          %158 = vsyncadd [#allocation8], %s157
          %s159 = sshll.u32 [#allocation7], 4
          %s160 = int_to_ptr.vmem [resolvable:$true] %s159
          %165 = dma.hbm_to_vmem [thread:$0]  %s3, 1024, %s160, [#allocation8], 512, 512, 32
        $region24: #{tpu_custom_call.1} parent=11 // pred_fallthru
          _
      $region12: #{tpu_custom_call.1} parent=5 // pred_fallthru
        _
      %p166 = scmp.lt.s32.totalorder %s17, 2
      // Predicated region
      $region25: #{tpu_custom_call.1} parent=5 // pred_check
        %p167 = pneg %p166
      $region26: #{tpu_custom_call.1} parent=5 // pred_check_branch
        %169 = sbr.rel (%p167) target = $region28
      $region27: #{tpu_custom_call.1} parent=5 // pred_region
        // Predicated region
        $region29: #{tpu_custom_call.1} parent=27 // pred_check
          %p170 = pneg %p37
        $region30: #{tpu_custom_call.1} parent=27 // pred_check_branch
          %172 = sbr.rel (%p170) target = $region32
        $region31: #{tpu_custom_call.1} parent=27 // pred_region
          %s173 = sand.u32 %s27, 1
          %s174 = scalar_lea.sflag [#allocation5], %s173
          %s175 = sand.u32 %s27, 1
          %s176 = smul.addr %s175, 16
          %s177 = scalar_lea.vmem [#allocation4], %s176
          %s179 = ssub.s32 256, 256
          %180 = vsyncadd %s174, %s179
          %s181 = smul.addr %s17, 4
          %s182 = smul.addr %s181, 64
          %s183 = scalar_lea.hbm %s0, %s182
          %s185 = sshll.u32 %s177, 4
          %s186 = int_to_ptr.vmem [resolvable:$true] %s185
          %188 = dma.hbm_to_vmem [thread:$0]  %s183, 256, %s186, %s174
        $region32: #{tpu_custom_call.1} parent=27 // pred_fallthru
          _
      $region28: #{tpu_custom_call.1} parent=5 // pred_fallthru
        _
      %p189 = scmp.le.s32.totalorder 1, %s17
      %p190 = scmp.lt.s32.totalorder %s17, 3
      %p191 = pnand %p189, %p190
      %p192 = pneg %p191
      // Predicated region
      $region33: #{tpu_custom_call.1} parent=5 // pred_check
        _
      $region34: #{tpu_custom_call.1} parent=5 // pred_check_branch
        %194 = sbr.rel (%p191) target = $region36
      $region35: #{tpu_custom_call.1} parent=5 // pred_region
        %s195 = ssub.s32 %s17, 1
        %s196 = sand.u32 %s30, 1
        %s197 = scalar_lea.sflag [#allocation5], %s196
        %s198 = sand.u32 %s30, 1
        %s199 = smul.addr %s198, 16
        %s200 = scalar_lea.vmem [#allocation4], %s199
        // Predicated region
        $region37: #{tpu_custom_call.1} parent=35 // pred_check
          %p201 = pneg %p43
        $region38: #{tpu_custom_call.1} parent=35 // pred_check_branch
          %203 = sbr.rel (%p201) target = $region40
        $region39: #{tpu_custom_call.1} parent=35 // pred_region
          %204 = dma.done %s197, 256
        $region40: #{tpu_custom_call.1} parent=35 // pred_fallthru
          _
        // Predicated region
        $region41: #{tpu_custom_call.1} parent=35 // pred_check
          %p205 = pneg %p106
        $region42: #{tpu_custom_call.1} parent=35 // pred_check_branch
          %207 = sbr.rel (%p205) target = $region44
        $region43: #{tpu_custom_call.1} parent=35 // pred_region
          %208 = dma.done [#allocation8], 1024
        $region44: #{tpu_custom_call.1} parent=35 // pred_fallthru
          _
        %s209 = sand.u32 %s30, 1
        %s210 = scalar_lea.sflag [#allocation5], %s209
        %s211 = sand.u32 %s30, 1
        %s212 = smul.addr %s211, 16
        %s213 = scalar_lea.vmem [#allocation4], %s212
        %p214 = pneg %p43
        %p215 = pneg %p40
        %p216 = pneg %p64
        %p217 = pneg %p61
        %p218 = pneg %p85
        %p219 = pneg %p82
        %p220 = pneg %p106
        %p221 = pneg %p103
        %p222 = pneg %p132
        %p223 = pneg %p129
        %s224 = sand.u32 %s119, 1
        %s225 = scalar_lea.sflag [#allocation6], %s224
        %s226 = sand.u32 %s119, 1
        %s227 = smul.addr %s226, 16
        %s228 = scalar_lea.vmem [#allocation9], %s227
        %230 = vst [vmem:[#allocation2] sm:$0xf] 0.0
        %231 = vst [vmem:[#allocation2 + $0x14] sm:$0xf] 0.0
        %v232 = vld [vmem:[%s200] sm:$0xff]
        %v233 = vld [vmem:[%s200 + $0x8] sm:$0xff]
        %234 = vst [vmem:[#allocation2 + $0x4] sm:$0xff] %v232
        %235 = vst [vmem:[#allocation2 + $0xc] sm:$0xff] %v233
        %v236 = vld [vmem:[#allocation2] sm:$0xff]
        %v237 = vld [vmem:[#allocation2 + $0x8] sm:$0xff]
        %v238 = vld [vmem:[#allocation2 + $0x10] sm:$0xf]
        %v239 = vld [vmem:[#allocation7] ss:$8 sm:$0xf]
        %v241 = vlaneseq
        %v242 = vshrl.u32 %v241, 7
        %v243 = vsub.s32 0, %v242
        %v244 = vrot.slane %v239, %v243
        %v245 = vlaneseq
        %v246 = vshrl.u32 %v245, 7
        %v247 = vsub.s32 1, %v246
        %v248 = vrot.slane %v239, %v247
        %v249 = vlaneseq
        %v250 = vshrl.u32 %v249, 7
        %v251 = vsub.s32 2, %v250
        %v252 = vrot.slane %v239, %v251
        %v253 = vlaneseq
        %v254 = vshrl.u32 %v253, 7
        %v255 = vsub.s32 3, %v254
        %v256 = vrot.slane %v239, %v255
        %v257 = vcombine.low %v244, %v248
        %v258 = vcombine.low %v252, %v256
        %259 = vrot.lane.b32.xlu0 %v257, 55
        %v260 = vpop.permute.xlu0 %259
        %261 = vrot.lane.b32.xlu0 %v258, 55
        %v262 = vpop.permute.xlu0 %261
        %v263 = vrot.slane %v260, 4
        %v264 = vrot.slane %v262, 4
        %vm265 = vcmask 449536
        %v266 = vsel %vm265, %v263, %v260
        %vm267 = vcmask 1043456
        %v268 = vsel %vm267, %v263, %v264
        %v269 = vsel %vm265, %v268, %v262
        %v273 = vmul.f32 %v236, %v266
        %v274 = vmul.f32 %v237, %v269
        %v275 = vmul.f32 %v238, %v264
        %s276 = scalar_lea.vmem [#allocation7], 1
        %v277 = vld [vmem:[%s276] ss:$8 sm:$0xf]
        %v279 = vlaneseq
        %v280 = vshrl.u32 %v279, 7
        %v281 = vsub.s32 0, %v280
        %v282 = vrot.slane %v277, %v281
        %v283 = vlaneseq
        %v284 = vshrl.u32 %v283, 7
        %v285 = vsub.s32 1, %v284
        %v286 = vrot.slane %v277, %v285
        %v287 = vlaneseq
        %v288 = vshrl.u32 %v287, 7
        %v289 = vsub.s32 2, %v288
        %v290 = vrot.slane %v277, %v289
        %v291 = vlaneseq
        %v292 = vshrl.u32 %v291, 7
        %v293 = vsub.s32 3, %v292
        %v294 = vrot.slane %v277, %v293
        %v295 = vcombine.low %v282, %v286
        %v296 = vcombine.low %v290, %v294
        %297 = vrot.lane.b32.xlu0 %v295, 56
        %v298 = vpop.permute.xlu0 %297
        %299 = vrot.lane.b32.xlu0 %v296, 56
        %v300 = vpop.permute.xlu0 %299
        %v301 = vrot.slane %v298, 4
        %v302 = vrot.slane %v300, 4
        %vm303 = vcmask 457728
        %v304 = vsel %vm303, %v301, %v298
        %v305 = vsel %vm267, %v301, %v302
        %v306 = vsel %vm303, %v305, %v300
        %v310 = vmul.f32 %v236, %v304
        %v311 = vmul.f32 %v237, %v306
        %v312 = vmul.f32 %v238, %v302
        %s313 = scalar_lea.vmem [#allocation7], 2
        %v314 = vld [vmem:[%s313] ss:$8 sm:$0xf]
        %v316 = vlaneseq
        %v317 = vshrl.u32 %v316, 7
        %v318 = vsub.s32 0, %v317
        %v319 = vrot.slane %v314, %v318
        %v320 = vlaneseq
        %v321 = vshrl.u32 %v320, 7
        %v322 = vsub.s32 1, %v321
        %v323 = vrot.slane %v314, %v322
        %v324 = vlaneseq
        %v325 = vshrl.u32 %v324, 7
        %v326 = vsub.s32 2, %v325
        %v327 = vrot.slane %v314, %v326
        %v328 = vlaneseq
        %v329 = vshrl.u32 %v328, 7
        %v330 = vsub.s32 3, %v329
        %v331 = vrot.slane %v314, %v330
        %v332 = vcombine.low %v319, %v323
        %v333 = vcombine.low %v327, %v331
        %334 = vrot.lane.b32.xlu0 %v332, 57
        %v335 = vpop.permute.xlu0 %334
        %336 = vrot.lane.b32.xlu0 %v333, 57
        %v337 = vpop.permute.xlu0 %336
        %v338 = vrot.slane %v335, 4
        %v339 = vrot.slane %v337, 4
        %vm340 = vcmask 465920
        %v341 = vsel %vm340, %v338, %v335
        %v342 = vsel %vm267, %v338, %v339
        %v343 = vsel %vm340, %v342, %v337
        %v347 = vmul.f32 %v236, %v341
        %v348 = vmul.f32 %v237, %v343
        %v349 = vmul.f32 %v238, %v339
        %s350 = scalar_lea.vmem [#allocation7], 3
        %v351 = vld [vmem:[%s350] ss:$8 sm:$0xf]
        %v353 = vlaneseq
        %v354 = vshrl.u32 %v353, 7
        %v355 = vsub.s32 0, %v354
        %v356 = vrot.slane %v351, %v355
        %v357 = vlaneseq
        %v358 = vshrl.u32 %v357, 7
        %v359 = vsub.s32 1, %v358
        %v360 = vrot.slane %v351, %v359
        %v361 = vlaneseq
        %v362 = vshrl.u32 %v361, 7
        %v363 = vsub.s32 2, %v362
        %v364 = vrot.slane %v351, %v363
        %v365 = vlaneseq
        %v366 = vshrl.u32 %v365, 7
        %v367 = vsub.s32 3, %v366
        %v368 = vrot.slane %v351, %v367
        %v369 = vcombine.low %v356, %v360
        %v370 = vcombine.low %v364, %v368
        %371 = vrot.lane.b32.xlu0 %v369, 63
        %v372 = vpop.permute.xlu0 %371
        %373 = vrot.lane.b32.xlu0 %v370, 63
        %v374 = vpop.permute.xlu0 %373
        %v375 = vrot.slane %v372, 4
        %v376 = vrot.slane %v374, 4
        %vm377 = vcmask 515072
        %v378 = vsel %vm377, %v375, %v372
        %v379 = vsel %vm267, %v375, %v376
        %v380 = vsel %vm377, %v379, %v374
        %v384 = vmul.f32 %v236, %v378
        %v385 = vmul.f32 %v237, %v380
        %v386 = vmul.f32 %v238, %v376
        %v389 = vcombine.high %v273, %v273
        %v390 = vcombine.high %v274, %v274
        %v396 = vcombine.low %v310, %v310
        %v397 = vcombine.low %v311, %v311
        %v398 = vcombine.low %v312, %v312
        %399 = vrot.lane.b32.xlu0 %v396, 127
        %v400 = vpop.permute.xlu0 %399
        %401 = vrot.lane.b32.xlu0 %v310, 127
        %v402 = vpop.permute.xlu0 %401
        %403 = vrot.lane.b32.xlu0 %v397, 127
        %v404 = vpop.permute.xlu0 %403
        %405 = vrot.lane.b32.xlu0 %v311, 127
        %v406 = vpop.permute.xlu0 %405
        %407 = vrot.lane.b32.xlu0 %v398, 127
        %v408 = vpop.permute.xlu0 %407
        %vm409 = vcmask 1039360
        %v410 = vsel %vm409, %v400, %v402
        %v411 = vsel %vm409, %v402, %v404
        %v412 = vsel %vm409, %v404, %v406
        %v413 = vsel %vm409, %v406, %v408
        %v422 = vcombine.high %v347, %v347
        %v423 = vcombine.high %v348, %v348
        %424 = vrot.lane.b32.xlu0 %v347, 126
        %v425 = vpop.permute.xlu0 %424
        %426 = vrot.lane.b32.xlu0 %v422, 126
        %v427 = vpop.permute.xlu0 %426
        %428 = vrot.lane.b32.xlu0 %v348, 126
        %v429 = vpop.permute.xlu0 %428
        %430 = vrot.lane.b32.xlu0 %v423, 126
        %v431 = vpop.permute.xlu0 %430
        %432 = vrot.lane.b32.xlu0 %v349, 126
        %v433 = vpop.permute.xlu0 %432
        %vm434 = vcmask 1031168
        %v435 = vsel %vm434, %v425, %v427
        %v436 = vsel %vm434, %v427, %v429
        %v437 = vsel %vm434, %v429, %v431
        %v438 = vsel %vm434, %v431, %v433
        %v447 = vcombine.low %v384, %v384
        %v448 = vcombine.low %v385, %v385
        %v449 = vcombine.low %v386, %v386
        %450 = vrot.lane.b32.xlu0 %v447, 120
        %v451 = vpop.permute.xlu0 %450
        %452 = vrot.lane.b32.xlu0 %v384, 120
        %v453 = vpop.permute.xlu0 %452
        %454 = vrot.lane.b32.xlu0 %v448, 120
        %v455 = vpop.permute.xlu0 %454
        %456 = vrot.lane.b32.xlu0 %v385, 120
        %v457 = vpop.permute.xlu0 %456
        %458 = vrot.lane.b32.xlu0 %v449, 120
        %v459 = vpop.permute.xlu0 %458
        %vm460 = vcmask 982016
        %v461 = vsel %vm460, %v451, %v453
        %v462 = vsel %vm460, %v453, %v455
        %v463 = vsel %vm460, %v455, %v457
        %v464 = vsel %vm460, %v457, %v459
        %v470 = vsel %vm267, %v273, %v410
        %v471 = vsel %vm267, %v389, %v411
        %v472 = vsel %vm267, %v274, %v412
        %v473 = vsel %vm267, %v390, %v413
        %v474 = vsel %vm267, %v275, %v408
        %v475 = vsel %vm267, %v435, %v461
        %v476 = vsel %vm267, %v436, %v462
        %v477 = vsel %vm267, %v437, %v463
        %v478 = vsel %vm267, %v438, %v464
        %v479 = vsel %vm267, %v433, %v459
        %v480 = vpack.c.bf16 %v475, %v470
        %v481 = vpack.c.bf16 %v476, %v471
        %v482 = vpack.c.bf16 %v477, %v472
        %v483 = vpack.c.bf16 %v478, %v473
        %v484 = vpack.c.bf16 %v479, %v474
        %490 = vrot.lane.b32.xlu0 %v480, 73
        %v491 = vpop.permute.xlu0 %490
        %492 = vrot.lane.b32.xlu0 %v481, 73
        %v493 = vpop.permute.xlu0 %492
        %494 = vrot.lane.b32.xlu0 %v482, 73
        %v495 = vpop.permute.xlu0 %494
        %496 = vrot.lane.b32.xlu0 %v483, 73
        %v497 = vpop.permute.xlu0 %496
        %498 = vrot.lane.b32.xlu0 %v484, 73
        %v499 = vpop.permute.xlu0 %498
        %vm500 = vcmask 596992
        %v501 = vsel %vm500, %v491, %v493
        %v502 = vsel %vm500, %v493, %v495
        %v503 = vsel %vm500, %v495, %v497
        %v504 = vsel %vm500, %v497, %v499
        %509 = vst [vmem:[#allocation3] sm:$0xff] %v501
        %510 = vst [vmem:[#allocation3 + $0x8] sm:$0xff] %v502
        %511 = vst [vmem:[#allocation3 + $0x10] sm:$0xff] %v503
        %512 = vst [vmem:[#allocation3 + $0x18] sm:$0xff] %v504
        %v513 = vld [vmem:[#allocation2] sm:$0xff]
        %v514 = vld [vmem:[#allocation2 + $0x8] sm:$0xff]
        %v515 = vld [vmem:[#allocation2 + $0x10] sm:$0xf]
        %s516 = scalar_lea.vmem [#allocation7], 5
        %v517 = vld [vmem:[%s516] ss:$8 sm:$0xf]
        %v519 = vlaneseq
        %v520 = vshrl.u32 %v519, 7
        %v521 = vsub.s32 0, %v520
        %v522 = vrot.slane %v517, %v521
        %v523 = vlaneseq
        %v524 = vshrl.u32 %v523, 7
        %v525 = vsub.s32 1, %v524
        %v526 = vrot.slane %v517, %v525
        %v527 = vlaneseq
        %v528 = vshrl.u32 %v527, 7
        %v529 = vsub.s32 2, %v528
        %v530 = vrot.slane %v517, %v529
        %v531 = vlaneseq
        %v532 = vshrl.u32 %v531, 7
        %v533 = vsub.s32 3, %v532
        %v534 = vrot.slane %v517, %v533
        %v535 = vcombine.low %v522, %v526
        %v536 = vcombine.low %v530, %v534
        %537 = vrot.lane.b32.xlu0 %v535, 65
        %v538 = vpop.permute.xlu0 %537
        %539 = vrot.lane.b32.xlu0 %v536, 65
        %v540 = vpop.permute.xlu0 %539
        %v541 = vrot.slane %v538, 4
        %v542 = vrot.slane %v540, 4
        %vm543 = vcmask 531456
        %v544 = vsel %vm543, %v541, %v538
        %v545 = vsel %vm267, %v541, %v542
        %v546 = vsel %vm543, %v545, %v540
        %v550 = vmul.f32 %v513, %v544
        %v551 = vmul.f32 %v514, %v546
        %v552 = vmul.f32 %v515, %v542
        %s553 = scalar_lea.vmem [#allocation7], 6
        %v554 = vld [vmem:[%s553] ss:$8 sm:$0xf]
        %v556 = vlaneseq
        %v557 = vshrl.u32 %v556, 7
        %v558 = vsub.s32 0, %v557
        %v559 = vrot.slane %v554, %v558
        %v560 = vlaneseq
        %v561 = vshrl.u32 %v560, 7
        %v562 = vsub.s32 1, %v561
        %v563 = vrot.slane %v554, %v562
        %v564 = vlaneseq
        %v565 = vshrl.u32 %v564, 7
        %v566 = vsub.s32 2, %v565
        %v567 = vrot.slane %v554, %v566
        %v568 = vlaneseq
        %v569 = vshrl.u32 %v568, 7
        %v570 = vsub.s32 3, %v569
        %v571 = vrot.slane %v554, %v570
        %v572 = vcombine.low %v559, %v563
        %v573 = vcombine.low %v567, %v571
        %574 = vrot.lane.b32.xlu0 %v572, 71
        %v575 = vpop.permute.xlu0 %574
        %576 = vrot.lane.b32.xlu0 %v573, 71
        %v577 = vpop.permute.xlu0 %576
        %v578 = vrot.slane %v575, 4
        %v579 = vrot.slane %v577, 4
        %vm580 = vcmask 580608
        %v581 = vsel %vm580, %v578, %v575
        %v582 = vsel %vm267, %v578, %v579
        %v583 = vsel %vm580, %v582, %v577
        %v587 = vmul.f32 %v513, %v581
        %v588 = vmul.f32 %v514, %v583
        %v589 = vmul.f32 %v515, %v579
        %s590 = scalar_lea.vmem [#allocation7], 7
        %v591 = vld [vmem:[%s590] ss:$8 sm:$0xf]
        %v593 = vlaneseq
        %v594 = vshrl.u32 %v593, 7
        %v595 = vsub.s32 0, %v594
        %v596 = vrot.slane %v591, %v595
        %v597 = vlaneseq
        %v598 = vshrl.u32 %v597, 7
        %v599 = vsub.s32 1, %v598
        %v600 = vrot.slane %v591, %v599
        %v601 = vlaneseq
        %v602 = vshrl.u32 %v601, 7
        %v603 = vsub.s32 2, %v602
        %v604 = vrot.slane %v591, %v603
        %v605 = vlaneseq
        %v606 = vshrl.u32 %v605, 7
        %v607 = vsub.s32 3, %v606
        %v608 = vrot.slane %v591, %v607
        %v609 = vcombine.low %v596, %v600
        %v610 = vcombine.low %v604, %v608
        %611 = vrot.lane.b32.xlu0 %v609, 72
        %v612 = vpop.permute.xlu0 %611
        %613 = vrot.lane.b32.xlu0 %v610, 72
        %v614 = vpop.permute.xlu0 %613
        %v615 = vrot.slane %v612, 4
        %v616 = vrot.slane %v614, 4
        %vm617 = vcmask 588800
        %v618 = vsel %vm617, %v615, %v612
        %v619 = vsel %vm267, %v615, %v616
        %v620 = vsel %vm617, %v619, %v614
        %v624 = vmul.f32 %v513, %v618
        %v625 = vmul.f32 %v514, %v620
        %v626 = vmul.f32 %v515, %v616
        %v629 = vcombine.high %v513, %v513
        %v630 = vcombine.high %v514, %v514
        %v636 = vcombine.low %v550, %v550
        %v637 = vcombine.low %v551, %v551
        %v638 = vcombine.low %v552, %v552
        %639 = vrot.lane.b32.xlu0 %v636, 127
        %v640 = vpop.permute.xlu0 %639
        %641 = vrot.lane.b32.xlu0 %v550, 127
        %v642 = vpop.permute.xlu0 %641
        %643 = vrot.lane.b32.xlu0 %v637, 127
        %v644 = vpop.permute.xlu0 %643
        %645 = vrot.lane.b32.xlu0 %v551, 127
        %v646 = vpop.permute.xlu0 %645
        %647 = vrot.lane.b32.xlu0 %v638, 127
        %v648 = vpop.permute.xlu0 %647
        %v649 = vsel %vm409, %v640, %v642
        %v650 = vsel %vm409, %v642, %v644
        %v651 = vsel %vm409, %v644, %v646
        %v652 = vsel %vm409, %v646, %v648
        %v661 = vcombine.high %v587, %v587
        %v662 = vcombine.high %v588, %v588
        %663 = vrot.lane.b32.xlu0 %v587, 121
        %v664 = vpop.permute.xlu0 %663
        %665 = vrot.lane.b32.xlu0 %v661, 121
        %v666 = vpop.permute.xlu0 %665
        %667 = vrot.lane.b32.xlu0 %v588, 121
        %v668 = vpop.permute.xlu0 %667
        %669 = vrot.lane.b32.xlu0 %v662, 121
        %v670 = vpop.permute.xlu0 %669
        %671 = vrot.lane.b32.xlu0 %v589, 121
        %v672 = vpop.permute.xlu0 %671
        %vm673 = vcmask 990208
        %v674 = vsel %vm673, %v664, %v666
        %v675 = vsel %vm673, %v666, %v668
        %v676 = vsel %vm673, %v668, %v670
        %v677 = vsel %vm673, %v670, %v672
        %v686 = vcombine.low %v624, %v624
        %v687 = vcombine.low %v625, %v625
        %v688 = vcombine.low %v626, %v626
        %689 = vrot.lane.b32.xlu0 %v686, 120
        %v690 = vpop.permute.xlu0 %689
        %691 = vrot.lane.b32.xlu0 %v624, 120
        %v692 = vpop.permute.xlu0 %691
        %693 = vrot.lane.b32.xlu0 %v687, 120
        %v694 = vpop.permute.xlu0 %693
        %695 = vrot.lane.b32.xlu0 %v625, 120
        %v696 = vpop.permute.xlu0 %695
        %697 = vrot.lane.b32.xlu0 %v688, 120
        %v698 = vpop.permute.xlu0 %697
        %v699 = vsel %vm460, %v690, %v692
        %v700 = vsel %vm460, %v692, %v694
        %v701 = vsel %vm460, %v694, %v696
        %v702 = vsel %vm460, %v696, %v698
        %v708 = vsel %vm267, %v513, %v649
        %v709 = vsel %vm267, %v629, %v650
        %v710 = vsel %vm267, %v514, %v651
        %v711 = vsel %vm267, %v630, %v652
        %v712 = vsel %vm267, %v515, %v648
        %v713 = vsel %vm267, %v674, %v699
        %v714 = vsel %vm267, %v675, %v700
        %v715 = vsel %vm267, %v676, %v701
        %v716 = vsel %vm267, %v677, %v702
        %v717 = vsel %vm267, %v672, %v698
        %v718 = vpack.c.bf16 %v713, %v708
        %v719 = vpack.c.bf16 %v714, %v709
        %v720 = vpack.c.bf16 %v715, %v710
        %v721 = vpack.c.bf16 %v716, %v711
        %v722 = vpack.c.bf16 %v717, %v712
        %728 = vrot.lane.b32.xlu0 %v718, 64
        %v729 = vpop.permute.xlu0 %728
        %730 = vrot.lane.b32.xlu0 %v719, 64
        %v731 = vpop.permute.xlu0 %730
        %732 = vrot.lane.b32.xlu0 %v720, 64
        %v733 = vpop.permute.xlu0 %732
        %734 = vrot.lane.b32.xlu0 %v721, 64
        %v735 = vpop.permute.xlu0 %734
        %736 = vrot.lane.b32.xlu0 %v722, 64
        %v737 = vpop.permute.xlu0 %736
        %vm738 = vcmask 523264
        %v739 = vsel %vm738, %v729, %v731
        %v740 = vsel %vm738, %v731, %v733
        %v741 = vsel %vm738, %v733, %v735
        %v742 = vsel %vm738, %v735, %v737
        %747 = vst [vmem:[#allocation3 + $0x20] sm:$0xff] %v739
        %748 = vst [vmem:[#allocation3 + $0x28] sm:$0xff] %v740
        %749 = vst [vmem:[#allocation3 + $0x30] sm:$0xff] %v741
        %750 = vst [vmem:[#allocation3 + $0x38] sm:$0xff] %v742
        %v751 = vld [vmem:[#allocation2] sm:$0xff]
        %v752 = vld [vmem:[#allocation2 + $0x8] sm:$0xff]
        %v753 = vld [vmem:[#allocation2 + $0x10] sm:$0xf]
        %s754 = scalar_lea.vmem [#allocation7], 32
        %v755 = vld [vmem:[%s754] ss:$8 sm:$0xf]
        %v757 = vlaneseq
        %v758 = vshrl.u32 %v757, 7
        %v759 = vsub.s32 0, %v758
        %v760 = vrot.slane %v755, %v759
        %v761 = vlaneseq
        %v762 = vshrl.u32 %v761, 7
        %v763 = vsub.s32 1, %v762
        %v764 = vrot.slane %v755, %v763
        %v765 = vlaneseq
        %v766 = vshrl.u32 %v765, 7
        %v767 = vsub.s32 2, %v766
        %v768 = vrot.slane %v755, %v767
        %v769 = vlaneseq
        %v770 = vshrl.u32 %v769, 7
        %v771 = vsub.s32 3, %v770
        %v772 = vrot.slane %v755, %v771
        %v773 = vcombine.low %v760, %v764
        %v774 = vcombine.low %v768, %v772
        %775 = vrot.lane.b32.xlu0 %v773, 73
        %v776 = vpop.permute.xlu0 %775
        %777 = vrot.lane.b32.xlu0 %v774, 73
        %v778 = vpop.permute.xlu0 %777
        %v779 = vrot.slane %v776, 4
        %v780 = vrot.slane %v778, 4
        %vm781 = vcmask 596992
        %v782 = vsel %vm781, %v779, %v776
        %v783 = vsel %vm267, %v779, %v780
        %v784 = vsel %vm781, %v783, %v778
        %v788 = vmul.f32 %v751, %v782
        %v789 = vmul.f32 %v752, %v784
        %v790 = vmul.f32 %v753, %v780
        %v791 = vld [vmem:[#allocation7] ss:$8 sm:$0xf]
        %v793 = vlaneseq
        %v794 = vshrl.u32 %v793, 7
        %v795 = vsub.s32 0, %v794
        %v796 = vrot.slane %v791, %v795
        %v797 = vlaneseq
        %v798 = vshrl.u32 %v797, 7
        %v799 = vsub.s32 1, %v798
        %v800 = vrot.slane %v791, %v799
        %v801 = vlaneseq
        %v802 = vshrl.u32 %v801, 7
        %v803 = vsub.s32 2, %v802
        %v804 = vrot.slane %v791, %v803
        %v805 = vlaneseq
        %v806 = vshrl.u32 %v805, 7
        %v807 = vsub.s32 3, %v806
        %v808 = vrot.slane %v791, %v807
        %v809 = vcombine.low %v796, %v800
        %v810 = vcombine.low %v804, %v808
        %811 = vrot.lane.b32.xlu0 %v809, 119
        %v812 = vpop.permute.xlu0 %811
        %813 = vrot.lane.b32.xlu0 %v810, 119
        %v814 = vpop.permute.xlu0 %813
        %v815 = vrot.slane %v812, 4
        %v816 = vrot.slane %v814, 4
        %vm817 = vcmask 973824
        %v818 = vsel %vm817, %v815, %v812
        %v819 = vsel %vm267, %v815, %v816
        %v820 = vsel %vm817, %v819, %v814
        %v824 = vmul.f32 %v751, %v818
        %v825 = vmul.f32 %v752, %v820
        %v826 = vmul.f32 %v753, %v816
        %v827 = vld [vmem:[%s276] ss:$8 sm:$0xf]
        %v829 = vlaneseq
        %v830 = vshrl.u32 %v829, 7
        %v831 = vsub.s32 0, %v830
        %v832 = vrot.slane %v827, %v831
        %v833 = vlaneseq
        %v834 = vshrl.u32 %v833, 7
        %v835 = vsub.s32 1, %v834
        %v836 = vrot.slane %v827, %v835
        %v837 = vlaneseq
        %v838 = vshrl.u32 %v837, 7
        %v839 = vsub.s32 2, %v838
        %v840 = vrot.slane %v827, %v839
        %v841 = vlaneseq
        %v842 = vshrl.u32 %v841, 7
        %v843 = vsub.s32 3, %v842
        %v844 = vrot.slane %v827, %v843
        %v845 = vcombine.low %v832, %v836
        %v846 = vcombine.low %v840, %v844
        %847 = vrot.lane.b32.xlu0 %v845, 120
        %v848 = vpop.permute.xlu0 %847
        %849 = vrot.lane.b32.xlu0 %v846, 120
        %v850 = vpop.permute.xlu0 %849
        %v851 = vrot.slane %v848, 4
        %v852 = vrot.slane %v850, 4
        %v853 = vsel %vm460, %v851, %v848
        %v854 = vsel %vm267, %v851, %v852
        %v855 = vsel %vm460, %v854, %v850
        %v859 = vmul.f32 %v751, %v853
        %v860 = vmul.f32 %v752, %v855
        %v861 = vmul.f32 %v753, %v852
        %v862 = vld [vmem:[%s313] ss:$8 sm:$0xf]
        %v864 = vlaneseq
        %v865 = vshrl.u32 %v864, 7
        %v866 = vsub.s32 0, %v865
        %v867 = vrot.slane %v862, %v866
        %v868 = vlaneseq
        %v869 = vshrl.u32 %v868, 7
        %v870 = vsub.s32 1, %v869
        %v871 = vrot.slane %v862, %v870
        %v872 = vlaneseq
        %v873 = vshrl.u32 %v872, 7
        %v874 = vsub.s32 2, %v873
        %v875 = vrot.slane %v862, %v874
        %v876 = vlaneseq
        %v877 = vshrl.u32 %v876, 7
        %v878 = vsub.s32 3, %v877
        %v879 = vrot.slane %v862, %v878
        %v880 = vcombine.low %v867, %v871
        %v881 = vcombine.low %v875, %v879
        %882 = vrot.lane.b32.xlu0 %v880, 121
        %v883 = vpop.permute.xlu0 %882
        %884 = vrot.lane.b32.xlu0 %v881, 121
        %v885 = vpop.permute.xlu0 %884
        %v886 = vrot.slane %v883, 4
        %v887 = vrot.slane %v885, 4
        %v888 = vsel %vm673, %v886, %v883
        %v889 = vsel %vm267, %v886, %v887
        %v890 = vsel %vm673, %v889, %v885
        %v894 = vmul.f32 %v751, %v888
        %v895 = vmul.f32 %v752, %v890
        %v896 = vmul.f32 %v753, %v887
        %v899 = vcombine.high %v788, %v788
        %v900 = vcombine.high %v789, %v789
        %v906 = vcombine.low %v824, %v824
        %v907 = vcombine.low %v825, %v825
        %v908 = vcombine.low %v826, %v826
        %909 = vrot.lane.b32.xlu0 %v906, 82
        %v910 = vpop.permute.xlu0 %909
        %911 = vrot.lane.b32.xlu0 %v824, 82
        %v912 = vpop.permute.xlu0 %911
        %913 = vrot.lane.b32.xlu0 %v907, 82
        %v914 = vpop.permute.xlu0 %913
        %915 = vrot.lane.b32.xlu0 %v825, 82
        %v916 = vpop.permute.xlu0 %915
        %917 = vrot.lane.b32.xlu0 %v908, 82
        %v918 = vpop.permute.xlu0 %917
        %vm919 = vcmask 670720
        %v920 = vsel %vm919, %v910, %v912
        %v921 = vsel %vm919, %v912, %v914
        %v922 = vsel %vm919, %v914, %v916
        %v923 = vsel %vm919, %v916, %v918
        %v932 = vcombine.high %v859, %v859
        %v933 = vcombine.high %v860, %v860
        %934 = vrot.lane.b32.xlu0 %v859, 81
        %v935 = vpop.permute.xlu0 %934
        %936 = vrot.lane.b32.xlu0 %v932, 81
        %v937 = vpop.permute.xlu0 %936
        %938 = vrot.lane.b32.xlu0 %v860, 81
        %v939 = vpop.permute.xlu0 %938
        %940 = vrot.lane.b32.xlu0 %v933, 81
        %v941 = vpop.permute.xlu0 %940
        %942 = vrot.lane.b32.xlu0 %v861, 81
        %v943 = vpop.permute.xlu0 %942
        %vm944 = vcmask 662528
        %v945 = vsel %vm944, %v935, %v937
        %v946 = vsel %vm944, %v937, %v939
        %v947 = vsel %vm944, %v939, %v941
        %v948 = vsel %vm944, %v941, %v943
        %v957 = vcombine.low %v894, %v894
        %v958 = vcombine.low %v895, %v895
        %v959 = vcombine.low %v896, %v896
        %960 = vrot.lane.b32.xlu0 %v957, 80
        %v961 = vpop.permute.xlu0 %960
        %962 = vrot.lane.b32.xlu0 %v894, 80
        %v963 = vpop.permute.xlu0 %962
        %964 = vrot.lane.b32.xlu0 %v958, 80
        %v965 = vpop.permute.xlu0 %964
        %966 = vrot.lane.b32.xlu0 %v895, 80
        %v967 = vpop.permute.xlu0 %966
        %968 = vrot.lane.b32.xlu0 %v959, 80
        %v969 = vpop.permute.xlu0 %968
        %vm970 = vcmask 654336
        %v971 = vsel %vm970, %v961, %v963
        %v972 = vsel %vm970, %v963, %v965
        %v973 = vsel %vm970, %v965, %v967
        %v974 = vsel %vm970, %v967, %v969
        %v980 = vsel %vm267, %v788, %v920
        %v981 = vsel %vm267, %v899, %v921
        %v982 = vsel %vm267, %v789, %v922
        %v983 = vsel %vm267, %v900, %v923
        %v984 = vsel %vm267, %v790, %v918
        %v985 = vsel %vm267, %v945, %v971
        %v986 = vsel %vm267, %v946, %v972
        %v987 = vsel %vm267, %v947, %v973
        %v988 = vsel %vm267, %v948, %v974
        %v989 = vsel %vm267, %v943, %v969
        %v990 = vpack.c.bf16 %v985, %v980
        %v991 = vpack.c.bf16 %v986, %v981
        %v992 = vpack.c.bf16 %v987, %v982
        %v993 = vpack.c.bf16 %v988, %v983
        %v994 = vpack.c.bf16 %v989, %v984
        %1000 = vrot.lane.b32.xlu0 %v990, 55
        %v1001 = vpop.permute.xlu0 %1000
        %1002 = vrot.lane.b32.xlu0 %v991, 55
        %v1003 = vpop.permute.xlu0 %1002
        %1004 = vrot.lane.b32.xlu0 %v992, 55
        %v1005 = vpop.permute.xlu0 %1004
        %1006 = vrot.lane.b32.xlu0 %v993, 55
        %v1007 = vpop.permute.xlu0 %1006
        %1008 = vrot.lane.b32.xlu0 %v994, 55
        %v1009 = vpop.permute.xlu0 %1008
        %vm1010 = vcmask 449536
        %v1011 = vsel %vm1010, %v1001, %v1003
        %v1012 = vsel %vm1010, %v1003, %v1005
        %v1013 = vsel %vm1010, %v1005, %v1007
        %v1014 = vsel %vm1010, %v1007, %v1009
        %1019 = vst [vmem:[#allocation3 + $0x40] sm:$0xff] %v1011
        %1020 = vst [vmem:[#allocation3 + $0x48] sm:$0xff] %v1012
        %1021 = vst [vmem:[#allocation3 + $0x50] sm:$0xff] %v1013
        %1022 = vst [vmem:[#allocation3 + $0x58] sm:$0xff] %v1014
        %v1023 = vld [vmem:[#allocation2] sm:$0xff]
        %v1024 = vld [vmem:[#allocation2 + $0x8] sm:$0xff]
        %v1025 = vld [vmem:[#allocation2 + $0x10] sm:$0xf]
        %v1026 = vld [vmem:[%s350] ss:$8 sm:$0xf]
        %v1028 = vlaneseq
        %v1029 = vshrl.u32 %v1028, 7
        %v1030 = vsub.s32 0, %v1029
        %v1031 = vrot.slane %v1026, %v1030
        %v1032 = vlaneseq
        %v1033 = vshrl.u32 %v1032, 7
        %v1034 = vsub.s32 1, %v1033
        %v1035 = vrot.slane %v1026, %v1034
        %v1036 = vlaneseq
        %v1037 = vshrl.u32 %v1036, 7
        %v1038 = vsub.s32 2, %v1037
        %v1039 = vrot.slane %v1026, %v1038
        %v1040 = vlaneseq
        %v1041 = vshrl.u32 %v1040, 7
        %v1042 = vsub.s32 3, %v1041
        %v1043 = vrot.slane %v1026, %v1042
        %v1044 = vcombine.low %v1031, %v1035
        %v1045 = vcombine.low %v1039, %v1043
        %1046 = vrot.lane.b32.xlu0 %v1044, 127
        %v1047 = vpop.permute.xlu0 %1046
        %1048 = vrot.lane.b32.xlu0 %v1045, 127
        %v1049 = vpop.permute.xlu0 %1048
        %v1050 = vrot.slane %v1047, 4
        %v1051 = vrot.slane %v1049, 4
        %v1052 = vsel %vm409, %v1050, %v1047
        %v1053 = vsel %vm267, %v1050, %v1051
        %v1054 = vsel %vm409, %v1053, %v1049
        %v1058 = vmul.f32 %v1023, %v1052
        %v1059 = vmul.f32 %v1024, %v1054
        %v1060 = vmul.f32 %v1025, %v1051
        %v1061 = vld [vmem:[#allocation2 + $0x4] sm:$0xff]
        %v1062 = vld [vmem:[#allocation2 + $0xc] sm:$0xff]
        %v1063 = vld [vmem:[#allocation2 + $0x4] sm:$0xff]
        %v1064 = vld [vmem:[#allocation2 + $0xc] sm:$0xff]
        %v1065 = vld [vmem:[#allocation2 + $0x14] sm:$0xf]
        %v1066 = vld [vmem:[%s516] ss:$8 sm:$0xf]
        %v1068 = vlaneseq
        %v1069 = vshrl.u32 %v1068, 7
        %v1070 = vsub.s32 0, %v1069
        %v1071 = vrot.slane %v1066, %v1070
        %v1072 = vlaneseq
        %v1073 = vshrl.u32 %v1072, 7
        %v1074 = vsub.s32 1, %v1073
        %v1075 = vrot.slane %v1066, %v1074
        %v1076 = vlaneseq
        %v1077 = vshrl.u32 %v1076, 7
        %v1078 = vsub.s32 2, %v1077
        %v1079 = vrot.slane %v1066, %v1078
        %v1080 = vlaneseq
        %v1081 = vshrl.u32 %v1080, 7
        %v1082 = vsub.s32 3, %v1081
        %v1083 = vrot.slane %v1066, %v1082
        %v1084 = vcombine.low %v1071, %v1075
        %v1085 = vcombine.low %v1079, %v1083
        %1086 = vrot.lane.b32.xlu0 %v1084, 1
        %v1087 = vpop.permute.xlu0 %1086
        %1088 = vrot.lane.b32.xlu0 %v1085, 1
        %v1089 = vpop.permute.xlu0 %1088
        %v1090 = vrot.slane %v1087, 4
        %v1091 = vrot.slane %v1089, 4
        %vm1092 = vcmask 7168
        %v1093 = vsel %vm1092, %v1090, %v1087
        %v1094 = vsel %vm267, %v1090, %v1091
        %v1095 = vsel %vm1092, %v1094, %v1089
        %v1099 = vmul.f32 %v1063, %v1093
        %v1100 = vmul.f32 %v1064, %v1095
        %v1101 = vmul.f32 %v1065, %v1091
        %v1102 = vld [vmem:[%s553] ss:$8 sm:$0xf]
        %v1104 = vlaneseq
        %v1105 = vshrl.u32 %v1104, 7
        %v1106 = vsub.s32 0, %v1105
        %v1107 = vrot.slane %v1102, %v1106
        %v1108 = vlaneseq
        %v1109 = vshrl.u32 %v1108, 7
        %v1110 = vsub.s32 1, %v1109
        %v1111 = vrot.slane %v1102, %v1110
        %v1112 = vlaneseq
        %v1113 = vshrl.u32 %v1112, 7
        %v1114 = vsub.s32 2, %v1113
        %v1115 = vrot.slane %v1102, %v1114
        %v1116 = vlaneseq
        %v1117 = vshrl.u32 %v1116, 7
        %v1118 = vsub.s32 3, %v1117
        %v1119 = vrot.slane %v1102, %v1118
        %v1120 = vcombine.low %v1107, %v1111
        %v1121 = vcombine.low %v1115, %v1119
        %1122 = vrot.lane.b32.xlu0 %v1120, 7
        %v1123 = vpop.permute.xlu0 %1122
        %1124 = vrot.lane.b32.xlu0 %v1121, 7
        %v1125 = vpop.permute.xlu0 %1124
        %v1126 = vrot.slane %v1123, 4
        %v1127 = vrot.slane %v1125, 4
        %vm1128 = vcmask 56320
        %v1129 = vsel %vm1128, %v1126, %v1123
        %v1130 = vsel %vm267, %v1126, %v1127
        %v1131 = vsel %vm1128, %v1130, %v1125
        %v1135 = vmul.f32 %v1063, %v1129
        %v1136 = vmul.f32 %v1064, %v1131
        %v1137 = vmul.f32 %v1065, %v1127
        %v1140 = vcombine.high %v1058, %v1058
        %v1141 = vcombine.high %v1059, %v1059
        %v1146 = vcombine.low %v1061, %v1061
        %v1147 = vcombine.low %v1062, %v1062
        %1148 = vrot.lane.b32.xlu0 %v1146, 127
        %v1149 = vpop.permute.xlu0 %1148
        %1150 = vrot.lane.b32.xlu0 %v1061, 127
        %v1151 = vpop.permute.xlu0 %1150
        %1152 = vrot.lane.b32.xlu0 %v1147, 127
        %v1153 = vpop.permute.xlu0 %1152
        %1154 = vrot.lane.b32.xlu0 %v1062, 127
        %v1155 = vpop.permute.xlu0 %1154
        %v1156 = vsel %vm409, %v1149, %v1151
        %v1157 = vsel %vm409, %v1151, %v1153
        %v1158 = vsel %vm409, %v1153, %v1155
        %v1167 = vcombine.high %v1099, %v1099
        %v1168 = vcombine.high %v1100, %v1100
        %1169 = vrot.lane.b32.xlu0 %v1099, 126
        %v1170 = vpop.permute.xlu0 %1169
        %1171 = vrot.lane.b32.xlu0 %v1167, 126
        %v1172 = vpop.permute.xlu0 %1171
        %1173 = vrot.lane.b32.xlu0 %v1100, 126
        %v1174 = vpop.permute.xlu0 %1173
        %1175 = vrot.lane.b32.xlu0 %v1168, 126
        %v1176 = vpop.permute.xlu0 %1175
        %1177 = vrot.lane.b32.xlu0 %v1101, 126
        %v1178 = vpop.permute.xlu0 %1177
        %v1179 = vsel %vm434, %v1170, %v1172
        %v1180 = vsel %vm434, %v1172, %v1174
        %v1181 = vsel %vm434, %v1174, %v1176
        %v1182 = vsel %vm434, %v1176, %v1178
        %v1191 = vcombine.low %v1135, %v1135
        %v1192 = vcombine.low %v1136, %v1136
        %v1193 = vcombine.low %v1137, %v1137
        %1194 = vrot.lane.b32.xlu0 %v1191, 120
        %v1195 = vpop.permute.xlu0 %1194
        %1196 = vrot.lane.b32.xlu0 %v1135, 120
        %v1197 = vpop.permute.xlu0 %1196
        %1198 = vrot.lane.b32.xlu0 %v1192, 120
        %v1199 = vpop.permute.xlu0 %1198
        %1200 = vrot.lane.b32.xlu0 %v1136, 120
        %v1201 = vpop.permute.xlu0 %1200
        %1202 = vrot.lane.b32.xlu0 %v1193, 120
        %v1203 = vpop.permute.xlu0 %1202
        %v1204 = vsel %vm460, %v1195, %v1197
        %v1205 = vsel %vm460, %v1197, %v1199
        %v1206 = vsel %vm460, %v1199, %v1201
        %v1207 = vsel %vm460, %v1201, %v1203
        %v1213 = vsel %vm267, %v1058, %v1149
        %v1214 = vsel %vm267, %v1140, %v1156
        %v1215 = vsel %vm267, %v1059, %v1157
        %v1216 = vsel %vm267, %v1141, %v1158
        %v1217 = vsel %vm267, %v1060, %v1155
        %v1218 = vsel %vm267, %v1170, %v1195
        %v1219 = vsel %vm267, %v1179, %v1204
        %v1220 = vsel %vm267, %v1180, %v1205
        %v1221 = vsel %vm267, %v1181, %v1206
        %v1222 = vsel %vm267, %v1182, %v1207
        %v1223 = vpack.c.bf16 %v1218, %v1213
        %v1224 = vpack.c.bf16 %v1219, %v1214
        %v1225 = vpack.c.bf16 %v1220, %v1215
        %v1226 = vpack.c.bf16 %v1221, %v1216
        %v1227 = vpack.c.bf16 %v1222, %v1217
        %1233 = vrot.lane.b32.xlu0 %v1223, 1
        %v1234 = vpop.permute.xlu0 %1233
        %1235 = vrot.lane.b32.xlu0 %v1224, 1
        %v1236 = vpop.permute.xlu0 %1235
        %1237 = vrot.lane.b32.xlu0 %v1225, 1
        %v1238 = vpop.permute.xlu0 %1237
        %1239 = vrot.lane.b32.xlu0 %v1226, 1
        %v1240 = vpop.permute.xlu0 %1239
        %1241 = vrot.lane.b32.xlu0 %v1227, 1
        %v1242 = vpop.permute.xlu0 %1241
        %vm1243 = vcmask 7168
        %v1244 = vsel %vm1243, %v1234, %v1236
        %v1245 = vsel %vm1243, %v1236, %v1238
        %v1246 = vsel %vm1243, %v1238, %v1240
        %v1247 = vsel %vm1243, %v1240, %v1242
        %1252 = vst [vmem:[#allocation3 + $0x60] sm:$0xff] %v1244
        %1253 = vst [vmem:[#allocation3 + $0x68] sm:$0xff] %v1245
        %1254 = vst [vmem:[#allocation3 + $0x70] sm:$0xff] %v1246
        %1255 = vst [vmem:[#allocation3 + $0x78] sm:$0xff] %v1247
        %v1256 = vld [vmem:[#allocation2 + $0x4] sm:$0xff]
        %v1257 = vld [vmem:[#allocation2 + $0xc] sm:$0xff]
        %v1258 = vld [vmem:[#allocation2 + $0x14] sm:$0xf]
        %v1259 = vld [vmem:[%s590] ss:$8 sm:$0xf]
        %v1261 = vlaneseq
        %v1262 = vshrl.u32 %v1261, 7
        %v1263 = vsub.s32 0, %v1262
        %v1264 = vrot.slane %v1259, %v1263
        %v1265 = vlaneseq
        %v1266 = vshrl.u32 %v1265, 7
        %v1267 = vsub.s32 1, %v1266
        %v1268 = vrot.slane %v1259, %v1267
        %v1269 = vlaneseq
        %v1270 = vshrl.u32 %v1269, 7
        %v1271 = vsub.s32 2, %v1270
        %v1272 = vrot.slane %v1259, %v1271
        %v1273 = vlaneseq
        %v1274 = vshrl.u32 %v1273, 7
        %v1275 = vsub.s32 3, %v1274
        %v1276 = vrot.slane %v1259, %v1275
        %v1277 = vcombine.low %v1264, %v1268
        %v1278 = vcombine.low %v1272, %v1276
        %1279 = vrot.lane.b32.xlu0 %v1277, 8
        %v1280 = vpop.permute.xlu0 %1279
        %1281 = vrot.lane.b32.xlu0 %v1278, 8
        %v1282 = vpop.permute.xlu0 %1281
        %v1283 = vrot.slane %v1280, 4
        %v1284 = vrot.slane %v1282, 4
        %vm1285 = vcmask 64512
        %v1286 = vsel %vm1285, %v1283, %v1280
        %v1287 = vsel %vm267, %v1283, %v1284
        %v1288 = vsel %vm1285, %v1287, %v1282
        %v1292 = vmul.f32 %v1256, %v1286
        %v1293 = vmul.f32 %v1257, %v1288
        %v1294 = vmul.f32 %v1258, %v1284
        %v1295 = vld [vmem:[%s754] ss:$8 sm:$0xf]
        %v1297 = vlaneseq
        %v1298 = vshrl.u32 %v1297, 7
        %v1299 = vsub.s32 0, %v1298
        %v1300 = vrot.slane %v1295, %v1299
        %v1301 = vlaneseq
        %v1302 = vshrl.u32 %v1301, 7
        %v1303 = vsub.s32 1, %v1302
        %v1304 = vrot.slane %v1295, %v1303
        %v1305 = vlaneseq
        %v1306 = vshrl.u32 %v1305, 7
        %v1307 = vsub.s32 2, %v1306
        %v1308 = vrot.slane %v1295, %v1307
        %v1309 = vlaneseq
        %v1310 = vshrl.u32 %v1309, 7
        %v1311 = vsub.s32 3, %v1310
        %v1312 = vrot.slane %v1295, %v1311
        %v1313 = vcombine.low %v1300, %v1304
        %v1314 = vcombine.low %v1308, %v1312
        %1315 = vrot.lane.b32.xlu0 %v1313, 9
        %v1316 = vpop.permute.xlu0 %1315
        %1317 = vrot.lane.b32.xlu0 %v1314, 9
        %v1318 = vpop.permute.xlu0 %1317
        %v1319 = vrot.slane %v1316, 4
        %v1320 = vrot.slane %v1318, 4
        %vm1321 = vcmask 72704
        %v1322 = vsel %vm1321, %v1319, %v1316
        %v1323 = vsel %vm267, %v1319, %v1320
        %v1324 = vsel %vm1321, %v1323, %v1318
        %v1328 = vmul.f32 %v1256, %v1322
        %v1329 = vmul.f32 %v1257, %v1324
        %v1330 = vmul.f32 %v1258, %v1320
        %v1331 = vld [vmem:[#allocation7] ss:$8 sm:$0xf]
        %v1333 = vlaneseq
        %v1334 = vshrl.u32 %v1333, 7
        %v1335 = vsub.s32 0, %v1334
        %v1336 = vrot.slane %v1331, %v1335
        %v1337 = vlaneseq
        %v1338 = vshrl.u32 %v1337, 7
        %v1339 = vsub.s32 1, %v1338
        %v1340 = vrot.slane %v1331, %v1339
        %v1341 = vlaneseq
        %v1342 = vshrl.u32 %v1341, 7
        %v1343 = vsub.s32 2, %v1342
        %v1344 = vrot.slane %v1331, %v1343
        %v1345 = vlaneseq
        %v1346 = vshrl.u32 %v1345, 7
        %v1347 = vsub.s32 3, %v1346
        %v1348 = vrot.slane %v1331, %v1347
        %v1349 = vcombine.low %v1336, %v1340
        %v1350 = vcombine.low %v1344, %v1348
        %1351 = vrot.lane.b32.xlu0 %v1349, 55
        %v1352 = vpop.permute.xlu0 %1351
        %1353 = vrot.lane.b32.xlu0 %v1350, 55
        %v1354 = vpop.permute.xlu0 %1353
        %v1355 = vrot.slane %v1352, 4
        %v1356 = vrot.slane %v1354, 4
        %v1357 = vsel %vm265, %v1355, %v1352
        %v1358 = vsel %vm267, %v1355, %v1356
        %v1359 = vsel %vm265, %v1358, %v1354
        %v1363 = vmul.f32 %v1256, %v1357
        %v1364 = vmul.f32 %v1257, %v1359
        %v1365 = vmul.f32 %v1258, %v1356
        %v1366 = vld [vmem:[%s276] ss:$8 sm:$0xf]
        %v1368 = vlaneseq
        %v1369 = vshrl.u32 %v1368, 7
        %v1370 = vsub.s32 0, %v1369
        %v1371 = vrot.slane %v1366, %v1370
        %v1372 = vlaneseq
        %v1373 = vshrl.u32 %v1372, 7
        %v1374 = vsub.s32 1, %v1373
        %v1375 = vrot.slane %v1366, %v1374
        %v1376 = vlaneseq
        %v1377 = vshrl.u32 %v1376, 7
        %v1378 = vsub.s32 2, %v1377
        %v1379 = vrot.slane %v1366, %v1378
        %v1380 = vlaneseq
        %v1381 = vshrl.u32 %v1380, 7
        %v1382 = vsub.s32 3, %v1381
        %v1383 = vrot.slane %v1366, %v1382
        %v1384 = vcombine.low %v1371, %v1375
        %v1385 = vcombine.low %v1379, %v1383
        %1386 = vrot.lane.b32.xlu0 %v1384, 56
        %v1387 = vpop.permute.xlu0 %1386
        %1388 = vrot.lane.b32.xlu0 %v1385, 56
        %v1389 = vpop.permute.xlu0 %1388
        %v1390 = vrot.slane %v1387, 4
        %v1391 = vrot.slane %v1389, 4
        %v1392 = vsel %vm303, %v1390, %v1387
        %v1393 = vsel %vm267, %v1390, %v1391
        %v1394 = vsel %vm303, %v1393, %v1389
        %v1398 = vmul.f32 %v1256, %v1392
        %v1399 = vmul.f32 %v1257, %v1394
        %v1400 = vmul.f32 %v1258, %v1391
        %v1403 = vcombine.high %v1292, %v1292
        %v1404 = vcombine.high %v1293, %v1293
        %v1410 = vcombine.low %v1328, %v1328
        %v1411 = vcombine.low %v1329, %v1329
        %v1412 = vcombine.low %v1330, %v1330
        %1413 = vrot.lane.b32.xlu0 %v1410, 127
        %v1414 = vpop.permute.xlu0 %1413
        %1415 = vrot.lane.b32.xlu0 %v1328, 127
        %v1416 = vpop.permute.xlu0 %1415
        %1417 = vrot.lane.b32.xlu0 %v1411, 127
        %v1418 = vpop.permute.xlu0 %1417
        %1419 = vrot.lane.b32.xlu0 %v1329, 127
        %v1420 = vpop.permute.xlu0 %1419
        %1421 = vrot.lane.b32.xlu0 %v1412, 127
        %v1422 = vpop.permute.xlu0 %1421
        %v1423 = vsel %vm409, %v1414, %v1416
        %v1424 = vsel %vm409, %v1416, %v1418
        %v1425 = vsel %vm409, %v1418, %v1420
        %v1426 = vsel %vm409, %v1420, %v1422
        %v1435 = vcombine.high %v1363, %v1363
        %v1436 = vcombine.high %v1364, %v1364
        %1437 = vrot.lane.b32.xlu0 %v1363, 81
        %v1438 = vpop.permute.xlu0 %1437
        %1439 = vrot.lane.b32.xlu0 %v1435, 81
        %v1440 = vpop.permute.xlu0 %1439
        %1441 = vrot.lane.b32.xlu0 %v1364, 81
        %v1442 = vpop.permute.xlu0 %1441
        %1443 = vrot.lane.b32.xlu0 %v1436, 81
        %v1444 = vpop.permute.xlu0 %1443
        %1445 = vrot.lane.b32.xlu0 %v1365, 81
        %v1446 = vpop.permute.xlu0 %1445
        %v1447 = vsel %vm944, %v1438, %v1440
        %v1448 = vsel %vm944, %v1440, %v1442
        %v1449 = vsel %vm944, %v1442, %v1444
        %v1450 = vsel %vm944, %v1444, %v1446
        %v1459 = vcombine.low %v1398, %v1398
        %v1460 = vcombine.low %v1399, %v1399
        %v1461 = vcombine.low %v1400, %v1400
        %1462 = vrot.lane.b32.xlu0 %v1459, 80
        %v1463 = vpop.permute.xlu0 %1462
        %1464 = vrot.lane.b32.xlu0 %v1398, 80
        %v1465 = vpop.permute.xlu0 %1464
        %1466 = vrot.lane.b32.xlu0 %v1460, 80
        %v1467 = vpop.permute.xlu0 %1466
        %1468 = vrot.lane.b32.xlu0 %v1399, 80
        %v1469 = vpop.permute.xlu0 %1468
        %1470 = vrot.lane.b32.xlu0 %v1461, 80
        %v1471 = vpop.permute.xlu0 %1470
        %v1472 = vsel %vm970, %v1463, %v1465
        %v1473 = vsel %vm970, %v1465, %v1467
        %v1474 = vsel %vm970, %v1467, %v1469
        %v1475 = vsel %vm970, %v1469, %v1471
        %v1481 = vsel %vm267, %v1292, %v1423
        %v1482 = vsel %vm267, %v1403, %v1424
        %v1483 = vsel %vm267, %v1293, %v1425
        %v1484 = vsel %vm267, %v1404, %v1426
        %v1485 = vsel %vm267, %v1294, %v1422
        %v1486 = vsel %vm267, %v1447, %v1472
        %v1487 = vsel %vm267, %v1448, %v1473
        %v1488 = vsel %vm267, %v1449, %v1474
        %v1489 = vsel %vm267, %v1450, %v1475
        %v1490 = vsel %vm267, %v1446, %v1471
        %v1491 = vpack.c.bf16 %v1486, %v1481
        %v1492 = vpack.c.bf16 %v1487, %v1482
        %v1493 = vpack.c.bf16 %v1488, %v1483
        %v1494 = vpack.c.bf16 %v1489, %v1484
        %v1495 = vpack.c.bf16 %v1490, %v1485
        %1501 = vrot.lane.b32.xlu0 %v1491, 120
        %v1502 = vpop.permute.xlu0 %1501
        %1503 = vrot.lane.b32.xlu0 %v1492, 120
        %v1504 = vpop.permute.xlu0 %1503
        %1505 = vrot.lane.b32.xlu0 %v1493, 120
        %v1506 = vpop.permute.xlu0 %1505
        %1507 = vrot.lane.b32.xlu0 %v1494, 120
        %v1508 = vpop.permute.xlu0 %1507
        %1509 = vrot.lane.b32.xlu0 %v1495, 120
        %v1510 = vpop.permute.xlu0 %1509
        %vm1511 = vcmask 982016
        %v1512 = vsel %vm1511, %v1502, %v1504
        %v1513 = vsel %vm1511, %v1504, %v1506
        %v1514 = vsel %vm1511, %v1506, %v1508
        %v1515 = vsel %vm1511, %v1508, %v1510
        %1520 = vst [vmem:[#allocation3 + $0x80] sm:$0xff] %v1512
        %1521 = vst [vmem:[#allocation3 + $0x88] sm:$0xff] %v1513
        %1522 = vst [vmem:[#allocation3 + $0x90] sm:$0xff] %v1514
        %1523 = vst [vmem:[#allocation3 + $0x98] sm:$0xff] %v1515
        %v1524 = vld [vmem:[#allocation2 + $0x4] sm:$0xff]
        %v1525 = vld [vmem:[#allocation2 + $0xc] sm:$0xff]
        %v1526 = vld [vmem:[#allocation2 + $0x14] sm:$0xf]
        %v1527 = vld [vmem:[%s313] ss:$8 sm:$0xf]
        %v1529 = vlaneseq
        %v1530 = vshrl.u32 %v1529, 7
        %v1531 = vsub.s32 0, %v1530
        %v1532 = vrot.slane %v1527, %v1531
        %v1533 = vlaneseq
        %v1534 = vshrl.u32 %v1533, 7
        %v1535 = vsub.s32 1, %v1534
        %v1536 = vrot.slane %v1527, %v1535
        %v1537 = vlaneseq
        %v1538 = vshrl.u32 %v1537, 7
        %v1539 = vsub.s32 2, %v1538
        %v1540 = vrot.slane %v1527, %v1539
        %v1541 = vlaneseq
        %v1542 = vshrl.u32 %v1541, 7
        %v1543 = vsub.s32 3, %v1542
        %v1544 = vrot.slane %v1527, %v1543
        %v1545 = vcombine.low %v1532, %v1536
        %v1546 = vcombine.low %v1540, %v1544
        %1547 = vrot.lane.b32.xlu0 %v1545, 57
        %v1548 = vpop.permute.xlu0 %1547
        %1549 = vrot.lane.b32.xlu0 %v1546, 57
        %v1550 = vpop.permute.xlu0 %1549
        %v1551 = vrot.slane %v1548, 4
        %v1552 = vrot.slane %v1550, 4
        %v1553 = vsel %vm340, %v1551, %v1548
        %v1554 = vsel %vm267, %v1551, %v1552
        %v1555 = vsel %vm340, %v1554, %v1550
        %v1559 = vmul.f32 %v1524, %v1553
        %v1560 = vmul.f32 %v1525, %v1555
        %v1561 = vmul.f32 %v1526, %v1552
        %v1562 = vld [vmem:[%s350] ss:$8 sm:$0xf]
        %v1564 = vlaneseq
        %v1565 = vshrl.u32 %v1564, 7
        %v1566 = vsub.s32 0, %v1565
        %v1567 = vrot.slane %v1562, %v1566
        %v1568 = vlaneseq
        %v1569 = vshrl.u32 %v1568, 7
        %v1570 = vsub.s32 1, %v1569
        %v1571 = vrot.slane %v1562, %v1570
        %v1572 = vlaneseq
        %v1573 = vshrl.u32 %v1572, 7
        %v1574 = vsub.s32 2, %v1573
        %v1575 = vrot.slane %v1562, %v1574
        %v1576 = vlaneseq
        %v1577 = vshrl.u32 %v1576, 7
        %v1578 = vsub.s32 3, %v1577
        %v1579 = vrot.slane %v1562, %v1578
        %v1580 = vcombine.low %v1567, %v1571
        %v1581 = vcombine.low %v1575, %v1579
        %1582 = vrot.lane.b32.xlu0 %v1580, 63
        %v1583 = vpop.permute.xlu0 %1582
        %1584 = vrot.lane.b32.xlu0 %v1581, 63
        %v1585 = vpop.permute.xlu0 %1584
        %v1586 = vrot.slane %v1583, 4
        %v1587 = vrot.slane %v1585, 4
        %v1588 = vsel %vm377, %v1586, %v1583
        %v1589 = vsel %vm267, %v1586, %v1587
        %v1590 = vsel %vm377, %v1589, %v1585
        %v1594 = vmul.f32 %v1524, %v1588
        %v1595 = vmul.f32 %v1525, %v1590
        %v1596 = vmul.f32 %v1526, %v1587
        %v1597 = vld [vmem:[%s516] ss:$8 sm:$0xf]
        %v1599 = vlaneseq
        %v1600 = vshrl.u32 %v1599, 7
        %v1601 = vsub.s32 0, %v1600
        %v1602 = vrot.slane %v1597, %v1601
        %v1603 = vlaneseq
        %v1604 = vshrl.u32 %v1603, 7
        %v1605 = vsub.s32 1, %v1604
        %v1606 = vrot.slane %v1597, %v1605
        %v1607 = vlaneseq
        %v1608 = vshrl.u32 %v1607, 7
        %v1609 = vsub.s32 2, %v1608
        %v1610 = vrot.slane %v1597, %v1609
        %v1611 = vlaneseq
        %v1612 = vshrl.u32 %v1611, 7
        %v1613 = vsub.s32 3, %v1612
        %v1614 = vrot.slane %v1597, %v1613
        %v1615 = vcombine.low %v1602, %v1606
        %v1616 = vcombine.low %v1610, %v1614
        %1617 = vrot.lane.b32.xlu0 %v1615, 65
        %v1618 = vpop.permute.xlu0 %1617
        %1619 = vrot.lane.b32.xlu0 %v1616, 65
        %v1620 = vpop.permute.xlu0 %1619
        %v1621 = vrot.slane %v1618, 4
        %v1622 = vrot.slane %v1620, 4
        %v1623 = vsel %vm543, %v1621, %v1618
        %v1624 = vsel %vm267, %v1621, %v1622
        %v1625 = vsel %vm543, %v1624, %v1620
        %v1629 = vmul.f32 %v1524, %v1623
        %v1630 = vmul.f32 %v1525, %v1625
        %v1631 = vmul.f32 %v1526, %v1622
        %v1634 = vcombine.high %v1559, %v1559
        %v1635 = vcombine.high %v1560, %v1560
        %v1641 = vcombine.low %v1594, %v1594
        %v1642 = vcombine.low %v1595, %v1595
        %v1643 = vcombine.low %v1596, %v1596
        %1644 = vrot.lane.b32.xlu0 %v1641, 122
        %v1645 = vpop.permute.xlu0 %1644
        %1646 = vrot.lane.b32.xlu0 %v1594, 122
        %v1647 = vpop.permute.xlu0 %1646
        %1648 = vrot.lane.b32.xlu0 %v1642, 122
        %v1649 = vpop.permute.xlu0 %1648
        %1650 = vrot.lane.b32.xlu0 %v1595, 122
        %v1651 = vpop.permute.xlu0 %1650
        %1652 = vrot.lane.b32.xlu0 %v1643, 122
        %v1653 = vpop.permute.xlu0 %1652
        %vm1654 = vcmask 998400
        %v1655 = vsel %vm1654, %v1645, %v1647
        %v1656 = vsel %vm1654, %v1647, %v1649
        %v1657 = vsel %vm1654, %v1649, %v1651
        %v1658 = vsel %vm1654, %v1651, %v1653
        %v1667 = vcombine.high %v1524, %v1524
        %v1668 = vcombine.high %v1525, %v1525
        %1669 = vrot.lane.b32.xlu0 %v1524, 121
        %v1670 = vpop.permute.xlu0 %1669
        %1671 = vrot.lane.b32.xlu0 %v1667, 121
        %v1672 = vpop.permute.xlu0 %1671
        %1673 = vrot.lane.b32.xlu0 %v1525, 121
        %v1674 = vpop.permute.xlu0 %1673
        %1675 = vrot.lane.b32.xlu0 %v1668, 121
        %v1676 = vpop.permute.xlu0 %1675
        %1677 = vrot.lane.b32.xlu0 %v1526, 121
        %v1678 = vpop.permute.xlu0 %1677
        %v1679 = vsel %vm673, %v1670, %v1672
        %v1680 = vsel %vm673, %v1672, %v1674
        %v1681 = vsel %vm673, %v1674, %v1676
        %v1682 = vsel %vm673, %v1676, %v1678
        %v1691 = vcombine.low %v1629, %v1629
        %v1692 = vcombine.low %v1630, %v1630
        %v1693 = vcombine.low %v1631, %v1631
        %1694 = vrot.lane.b32.xlu0 %v1691, 120
        %v1695 = vpop.permute.xlu0 %1694
        %1696 = vrot.lane.b32.xlu0 %v1629, 120
        %v1697 = vpop.permute.xlu0 %1696
        %1698 = vrot.lane.b32.xlu0 %v1692, 120
        %v1699 = vpop.permute.xlu0 %1698
        %1700 = vrot.lane.b32.xlu0 %v1630, 120
        %v1701 = vpop.permute.xlu0 %1700
        %1702 = vrot.lane.b32.xlu0 %v1693, 120
        %v1703 = vpop.permute.xlu0 %1702
        %v1704 = vsel %vm460, %v1695, %v1697
        %v1705 = vsel %vm460, %v1697, %v1699
        %v1706 = vsel %vm460, %v1699, %v1701
        %v1707 = vsel %vm460, %v1701, %v1703
        %v1713 = vsel %vm267, %v1559, %v1655
        %v1714 = vsel %vm267, %v1634, %v1656
        %v1715 = vsel %vm267, %v1560, %v1657
        %v1716 = vsel %vm267, %v1635, %v1658
        %v1717 = vsel %vm267, %v1561, %v1653
        %v1718 = vsel %vm267, %v1679, %v1704
        %v1719 = vsel %vm267, %v1680, %v1705
        %v1720 = vsel %vm267, %v1681, %v1706
        %v1721 = vsel %vm267, %v1682, %v1707
        %v1722 = vsel %vm267, %v1678, %v1703
        %v1723 = vpack.c.bf16 %v1718, %v1713
        %v1724 = vpack.c.bf16 %v1719, %v1714
        %v1725 = vpack.c.bf16 %v1720, %v1715
        %v1726 = vpack.c.bf16 %v1721, %v1716
        %v1727 = vpack.c.bf16 %v1722, %v1717
        %1733 = vrot.lane.b32.xlu0 %v1723, 71
        %v1734 = vpop.permute.xlu0 %1733
        %1735 = vrot.lane.b32.xlu0 %v1724, 71
        %v1736 = vpop.permute.xlu0 %1735
        %1737 = vrot.lane.b32.xlu0 %v1725, 71
        %v1738 = vpop.permute.xlu0 %1737
        %1739 = vrot.lane.b32.xlu0 %v1726, 71
        %v1740 = vpop.permute.xlu0 %1739
        %1741 = vrot.lane.b32.xlu0 %v1727, 71
        %v1742 = vpop.permute.xlu0 %1741
        %vm1743 = vcmask 580608
        %v1744 = vsel %vm1743, %v1734, %v1736
        %v1745 = vsel %vm1743, %v1736, %v1738
        %v1746 = vsel %vm1743, %v1738, %v1740
        %v1747 = vsel %vm1743, %v1740, %v1742
        %1752 = vst [vmem:[#allocation3 + $0xa0] sm:$0xff] %v1744
        %1753 = vst [vmem:[#allocation3 + $0xa8] sm:$0xff] %v1745
        %1754 = vst [vmem:[#allocation3 + $0xb0] sm:$0xff] %v1746
        %1755 = vst [vmem:[#allocation3 + $0xb8] sm:$0xff] %v1747
        %v1756 = vld [vmem:[#allocation2 + $0x4] sm:$0xff]
        %v1757 = vld [vmem:[#allocation2 + $0xc] sm:$0xff]
        %v1758 = vld [vmem:[#allocation2 + $0x14] sm:$0xf]
        %v1759 = vld [vmem:[%s553] ss:$8 sm:$0xf]
        %v1761 = vlaneseq
        %v1762 = vshrl.u32 %v1761, 7
        %v1763 = vsub.s32 0, %v1762
        %v1764 = vrot.slane %v1759, %v1763
        %v1765 = vlaneseq
        %v1766 = vshrl.u32 %v1765, 7
        %v1767 = vsub.s32 1, %v1766
        %v1768 = vrot.slane %v1759, %v1767
        %v1769 = vlaneseq
        %v1770 = vshrl.u32 %v1769, 7
        %v1771 = vsub.s32 2, %v1770
        %v1772 = vrot.slane %v1759, %v1771
        %v1773 = vlaneseq
        %v1774 = vshrl.u32 %v1773, 7
        %v1775 = vsub.s32 3, %v1774
        %v1776 = vrot.slane %v1759, %v1775
        %v1777 = vcombine.low %v1764, %v1768
        %v1778 = vcombine.low %v1772, %v1776
        %1779 = vrot.lane.b32.xlu0 %v1777, 71
        %v1780 = vpop.permute.xlu0 %1779
        %1781 = vrot.lane.b32.xlu0 %v1778, 71
        %v1782 = vpop.permute.xlu0 %1781
        %v1783 = vrot.slane %v1780, 4
        %v1784 = vrot.slane %v1782, 4
        %v1785 = vsel %vm580, %v1783, %v1780
        %v1786 = vsel %vm267, %v1783, %v1784
        %v1787 = vsel %vm580, %v1786, %v1782
        %v1791 = vmul.f32 %v1756, %v1785
        %v1792 = vmul.f32 %v1757, %v1787
        %v1793 = vmul.f32 %v1758, %v1784
        %v1794 = vld [vmem:[%s590] ss:$8 sm:$0xf]
        %v1796 = vlaneseq
        %v1797 = vshrl.u32 %v1796, 7
        %v1798 = vsub.s32 0, %v1797
        %v1799 = vrot.slane %v1794, %v1798
        %v1800 = vlaneseq
        %v1801 = vshrl.u32 %v1800, 7
        %v1802 = vsub.s32 1, %v1801
        %v1803 = vrot.slane %v1794, %v1802
        %v1804 = vlaneseq
        %v1805 = vshrl.u32 %v1804, 7
        %v1806 = vsub.s32 2, %v1805
        %v1807 = vrot.slane %v1794, %v1806
        %v1808 = vlaneseq
        %v1809 = vshrl.u32 %v1808, 7
        %v1810 = vsub.s32 3, %v1809
        %v1811 = vrot.slane %v1794, %v1810
        %v1812 = vcombine.low %v1799, %v1803
        %v1813 = vcombine.low %v1807, %v1811
        %1814 = vrot.lane.b32.xlu0 %v1812, 72
        %v1815 = vpop.permute.xlu0 %1814
        %1816 = vrot.lane.b32.xlu0 %v1813, 72
        %v1817 = vpop.permute.xlu0 %1816
        %v1818 = vrot.slane %v1815, 4
        %v1819 = vrot.slane %v1817, 4
        %v1820 = vsel %vm617, %v1818, %v1815
        %v1821 = vsel %vm267, %v1818, %v1819
        %v1822 = vsel %vm617, %v1821, %v1817
        %v1826 = vmul.f32 %v1756, %v1820
        %v1827 = vmul.f32 %v1757, %v1822
        %v1828 = vmul.f32 %v1758, %v1819
        %v1829 = vld [vmem:[%s754] ss:$8 sm:$0xf]
        %v1831 = vlaneseq
        %v1832 = vshrl.u32 %v1831, 7
        %v1833 = vsub.s32 0, %v1832
        %v1834 = vrot.slane %v1829, %v1833
        %v1835 = vlaneseq
        %v1836 = vshrl.u32 %v1835, 7
        %v1837 = vsub.s32 1, %v1836
        %v1838 = vrot.slane %v1829, %v1837
        %v1839 = vlaneseq
        %v1840 = vshrl.u32 %v1839, 7
        %v1841 = vsub.s32 2, %v1840
        %v1842 = vrot.slane %v1829, %v1841
        %v1843 = vlaneseq
        %v1844 = vshrl.u32 %v1843, 7
        %v1845 = vsub.s32 3, %v1844
        %v1846 = vrot.slane %v1829, %v1845
        %v1847 = vcombine.low %v1834, %v1838
        %v1848 = vcombine.low %v1842, %v1846
        %1849 = vrot.lane.b32.xlu0 %v1847, 73
        %v1850 = vpop.permute.xlu0 %1849
        %1851 = vrot.lane.b32.xlu0 %v1848, 73
        %v1852 = vpop.permute.xlu0 %1851
        %v1853 = vrot.slane %v1850, 4
        %v1854 = vrot.slane %v1852, 4
        %v1855 = vsel %vm781, %v1853, %v1850
        %v1856 = vsel %vm267, %v1853, %v1854
        %v1857 = vsel %vm781, %v1856, %v1852
        %v1861 = vmul.f32 %v1756, %v1855
        %v1862 = vmul.f32 %v1757, %v1857
        %v1863 = vmul.f32 %v1758, %v1854
        %v1866 = vcombine.high %v1791, %v1791
        %v1867 = vcombine.high %v1792, %v1792
        %v1873 = vcombine.low %v1826, %v1826
        %v1874 = vcombine.low %v1827, %v1827
        %v1875 = vcombine.low %v1828, %v1828
        %1876 = vrot.lane.b32.xlu0 %v1873, 127
        %v1877 = vpop.permute.xlu0 %1876
        %1878 = vrot.lane.b32.xlu0 %v1826, 127
        %v1879 = vpop.permute.xlu0 %1878
        %1880 = vrot.lane.b32.xlu0 %v1874, 127
        %v1881 = vpop.permute.xlu0 %1880
        %1882 = vrot.lane.b32.xlu0 %v1827, 127
        %v1883 = vpop.permute.xlu0 %1882
        %1884 = vrot.lane.b32.xlu0 %v1875, 127
        %v1885 = vpop.permute.xlu0 %1884
        %v1886 = vsel %vm409, %v1877, %v1879
        %v1887 = vsel %vm409, %v1879, %v1881
        %v1888 = vsel %vm409, %v1881, %v1883
        %v1889 = vsel %vm409, %v1883, %v1885
        %v1898 = vcombine.high %v1861, %v1861
        %v1899 = vcombine.high %v1862, %v1862
        %1900 = vrot.lane.b32.xlu0 %v1861, 126
        %v1901 = vpop.permute.xlu0 %1900
        %1902 = vrot.lane.b32.xlu0 %v1898, 126
        %v1903 = vpop.permute.xlu0 %1902
        %1904 = vrot.lane.b32.xlu0 %v1862, 126
        %v1905 = vpop.permute.xlu0 %1904
        %1906 = vrot.lane.b32.xlu0 %v1899, 126
        %v1907 = vpop.permute.xlu0 %1906
        %1908 = vrot.lane.b32.xlu0 %v1863, 126
        %v1909 = vpop.permute.xlu0 %1908
        %v1910 = vsel %vm434, %v1901, %v1903
        %v1911 = vsel %vm434, %v1903, %v1905
        %v1912 = vsel %vm434, %v1905, %v1907
        %v1913 = vsel %vm434, %v1907, %v1909
        %v1919 = vsel %vm267, %v1791, %v1886
        %v1920 = vsel %vm267, %v1866, %v1887
        %v1921 = vsel %vm267, %v1792, %v1888
        %v1922 = vsel %vm267, %v1867, %v1889
        %v1923 = vsel %vm267, %v1793, %v1885
        %v1924 = vsel %vm267, %v1910, 0.0
        %v1925 = vsel %vm267, %v1911, 0.0
        %v1926 = vsel %vm267, %v1912, 0.0
        %v1927 = vsel %vm267, %v1913, 0.0
        %v1928 = vsel %vm267, %v1909, 0.0
        %v1929 = vpack.c.bf16 %v1924, %v1919
        %v1930 = vpack.c.bf16 %v1925, %v1920
        %v1931 = vpack.c.bf16 %v1926, %v1921
        %v1932 = vpack.c.bf16 %v1927, %v1922
        %v1933 = vpack.c.bf16 %v1928, %v1923
        %1939 = vrot.lane.b32.xlu0 %v1929, 57
        %v1940 = vpop.permute.xlu0 %1939
        %1941 = vrot.lane.b32.xlu0 %v1930, 57
        %v1942 = vpop.permute.xlu0 %1941
        %1943 = vrot.lane.b32.xlu0 %v1931, 57
        %v1944 = vpop.permute.xlu0 %1943
        %1945 = vrot.lane.b32.xlu0 %v1932, 57
        %v1946 = vpop.permute.xlu0 %1945
        %1947 = vrot.lane.b32.xlu0 %v1933, 57
        %v1948 = vpop.permute.xlu0 %1947
        %vm1949 = vcmask 465920
        %v1950 = vsel %vm1949, %v1940, %v1942
        %v1951 = vsel %vm1949, %v1942, %v1944
        %v1952 = vsel %vm1949, %v1944, %v1946
        %v1953 = vsel %vm1949, %v1946, %v1948
        %1958 = vst [vmem:[#allocation3 + $0xc0] sm:$0xff] %v1950
        %1959 = vst [vmem:[#allocation3 + $0xc8] sm:$0xff] %v1951
        %1960 = vst [vmem:[#allocation3 + $0xd0] sm:$0xff] %v1952
        %1961 = vst [vmem:[#allocation3 + $0xd8] sm:$0xff] %v1953
        %v1962 = vld [vmem:[%s1] sm:$0x3]
        %v1963 = vld [vmem:[#allocation3] sm:$0xff]
        %v1964 = vld [vmem:[#allocation3 + $0x8] sm:$0xff]
        %v1965 = vld [vmem:[#allocation3 + $0x10] sm:$0xff]
        %v1966 = vld [vmem:[#allocation3 + $0x18] sm:$0xff]
        %v1967 = vld [vmem:[#allocation3 + $0x20] sm:$0xff]
        %v1968 = vld [vmem:[#allocation3 + $0x28] sm:$0xff]
        %v1969 = vld [vmem:[#allocation3 + $0x30] sm:$0xff]
        %v1970 = vld [vmem:[#allocation3 + $0x38] sm:$0xff]
        %v1971 = vld [vmem:[#allocation3 + $0x40] sm:$0xff]
        %v1972 = vld [vmem:[#allocation3 + $0x48] sm:$0xff]
        %v1973 = vld [vmem:[#allocation3 + $0x50] sm:$0xff]
        %v1974 = vld [vmem:[#allocation3 + $0x58] sm:$0xff]
        %v1975 = vld [vmem:[#allocation3 + $0x60] sm:$0xff]
        %v1976 = vld [vmem:[#allocation3 + $0x68] sm:$0xff]
        %v1977 = vld [vmem:[#allocation3 + $0x70] sm:$0xff]
        %v1978 = vld [vmem:[#allocation3 + $0x78] sm:$0xff]
        %v1979 = vld [vmem:[#allocation3 + $0x80] sm:$0xff]
        %v1980 = vld [vmem:[#allocation3 + $0x88] sm:$0xff]
        %v1981 = vld [vmem:[#allocation3 + $0x90] sm:$0xff]
        %v1982 = vld [vmem:[#allocation3 + $0x98] sm:$0xff]
        %v1983 = vld [vmem:[#allocation3 + $0xa0] sm:$0xff]
        %v1984 = vld [vmem:[#allocation3 + $0xa8] sm:$0xff]
        %v1985 = vld [vmem:[#allocation3 + $0xb0] sm:$0xff]
        %v1986 = vld [vmem:[#allocation3 + $0xb8] sm:$0xff]
        %v1987 = vld [vmem:[#allocation3 + $0xc0] sm:$0xff]
        %v1988 = vld [vmem:[#allocation3 + $0xc8] sm:$0xff]
        %v1989 = vld [vmem:[#allocation3 + $0xd0] sm:$0xff]
        %v1990 = vld [vmem:[#allocation3 + $0xd8] sm:$0xff]
        %v1991 = vld [vmem:[%s2] sm:$0xf]
        %1993 = vset.pattern.permute.xlu0 0
        %1994 = vperm.xlu0 %1993, %v1991
        %v1995 = vpop.permute.xlu0 %1994
        %vm1997 = vcmask 916480
        %v1999 = vsel %vm1997, %v1962, 0
        %2001 = vmatprep.subr.bf16.mxu0 %v1964
        %2002 = vmatpush1.bf16.msra.mxu0 %v1963
        %2003 = vmatprep.subr.bf16.mxu0 %v1968
        %2004 = vmatpush1.bf16.msra.mxu0 %v1967
        %2005 = vmatprep.subr.bf16.mxu0 %v1972
        %2006 = vmatpush1.bf16.msra.mxu0 %v1971
        %2007 = vmatprep.subr.bf16.mxu0 %v1976
        %2008 = vmatpush1.bf16.msra.mxu0 %v1975
        %2009 = vmatprep.subr.bf16.mxu0 %v1980
        %2010 = vmatpush1.bf16.msra.mxu0 %v1979
        %2011 = vmatprep.subr.bf16.mxu0 %v1984
        %2012 = vmatpush1.bf16.msra.mxu0 %v1983
        %2013 = vmatprep.subr.bf16.mxu0 %v1988
        %2014 = vmatpush1.bf16.msra.mxu0 %v1987
        %2015 = vmatprep.subr.bf16.mxu0 0
        %2016 = vmatpush1.bf16.msra.mxu0 0
        %2017 = vmatprep.subr.bf16.mxu0 0
        %2018 = vmatpush1.bf16.msra.mxu0 0
        %2019 = vmatprep.subr.bf16.mxu0 0
        %2020 = vmatpush1.bf16.msra.mxu0 0
        %2021 = vmatprep.subr.bf16.mxu0 0
        %2022 = vmatpush1.bf16.msra.mxu0 0
        %2023 = vmatprep.subr.bf16.mxu0 0
        %2024 = vmatpush1.bf16.msra.mxu0 0
        %2025 = vmatprep.subr.bf16.mxu0 0
        %2026 = vmatpush1.bf16.msra.mxu0 0
        %2027 = vmatprep.subr.bf16.mxu0 0
        %2028 = vmatpush1.bf16.msra.mxu0 0
        %2029 = vmatprep.subr.bf16.mxu0 0
        %2030 = vmatpush1.bf16.msra.mxu0 0
        %2031 = vmatprep.subr.bf16.mxu0 0
        %2032 = vmatpush1.bf16.msra.mxu0 0
        %2033 = vmatprep.mubr.bf16.mxu0 0
        %2034 = vmatmul.mubr.bf16.gmra.mrb[0].mxu0 %v1999
        %v2035 = vpop.f32.mrb[0].mxu0
        %v2036 = vadd.f32 %v1995, %v2035
        %v2037 = vpop.f32.mrb[0].mxu0
        %v2038 = vadd.f32 %v1995, %v2037
        %v2039 = vpop.f32.mrb[0].mxu0
        %v2040 = vpop.f32.mrb[0].mxu0
        %2041 = vdwg.mxu0
        %2042 = vmatprep.subr.bf16.mxu0 %v1966
        %2043 = vmatpush1.bf16.msra.mxu0 %v1965
        %2044 = vmatprep.subr.bf16.mxu0 %v1970
        %2045 = vmatpush1.bf16.msra.mxu0 %v1969
        %2046 = vmatprep.subr.bf16.mxu0 %v1974
        %2047 = vmatpush1.bf16.msra.mxu0 %v1973
        %2048 = vmatprep.subr.bf16.mxu0 %v1978
        %2049 = vmatpush1.bf16.msra.mxu0 %v1977
        %2050 = vmatprep.subr.bf16.mxu0 %v1982
        %2051 = vmatpush1.bf16.msra.mxu0 %v1981
        %2052 = vmatprep.subr.bf16.mxu0 %v1986
        %2053 = vmatpush1.bf16.msra.mxu0 %v1985
        %2054 = vmatprep.subr.bf16.mxu0 %v1990
        %2055 = vmatpush1.bf16.msra.mxu0 %v1989
        %2056 = vmatprep.subr.bf16.mxu0 0
        %2057 = vmatpush1.bf16.msra.mxu0 0
        %2058 = vmatprep.subr.bf16.mxu0 0
        %2059 = vmatpush1.bf16.msra.mxu0 0
        %2060 = vmatprep.subr.bf16.mxu0 0
        %2061 = vmatpush1.bf16.msra.mxu0 0
        %2062 = vmatprep.subr.bf16.mxu0 0
        %2063 = vmatpush1.bf16.msra.mxu0 0
        %2064 = vmatprep.subr.bf16.mxu0 0
        %2065 = vmatpush1.bf16.msra.mxu0 0
        %2066 = vmatprep.subr.bf16.mxu0 0
        %2067 = vmatpush1.bf16.msra.mxu0 0
        %2068 = vmatprep.subr.bf16.mxu0 0
        %2069 = vmatpush1.bf16.msra.mxu0 0
        %2070 = vmatprep.subr.bf16.mxu0 0
        %2071 = vmatpush1.bf16.msra.mxu0 0
        %2072 = vmatprep.subr.bf16.mxu0 0
        %2073 = vmatpush1.bf16.msra.mxu0 0
        %2074 = vmatprep.mubr.bf16.mxu0 0
        %2075 = vmatmul.mubr.bf16.gmra.mrb[0].mxu0 %v1999
        %v2076 = vpop.f32.mrb[0].mxu0
        %v2077 = vadd.f32 %v1995, %v2076
        %v2078 = vpop.f32.mrb[0].mxu0
        %v2079 = vadd.f32 %v1995, %v2078
        %v2080 = vpop.f32.mrb[0].mxu0
        %v2081 = vpop.f32.mrb[0].mxu0
        %2082 = vdwg.mxu0
        %v2083 = vmax.f32 %v2036, 0.0
        %v2084 = vmax.f32 %v2038, 0.0
        %v2085 = vmax.f32 %v2077, 0.0
        %v2086 = vmax.f32 %v2079, 0.0
        %v2091 = vcombine.low %v2083, %v2084
        %v2092 = vcombine.low %v2085, %v2086
        %2095 = vst [vmem:[#allocation2 + $0x4] sm:$0xff] %v2091
        %2096 = vst [vmem:[#allocation2 + $0xc] sm:$0xff] %v2092
        %v2097 = vld [vmem:[#allocation2] sm:$0xff]
        %v2098 = vld [vmem:[#allocation2 + $0x8] sm:$0xff]
        %v2099 = vld [vmem:[#allocation2 + $0x10] sm:$0xf]
        %v2100 = vld [vmem:[#allocation7] ss:$8 sm:$0xf]
        %v2102 = vlaneseq
        %v2103 = vshrl.u32 %v2102, 7
        %v2104 = vsub.s32 0, %v2103
        %v2105 = vrot.slane %v2100, %v2104
        %v2106 = vlaneseq
        %v2107 = vshrl.u32 %v2106, 7
        %v2108 = vsub.s32 1, %v2107
        %v2109 = vrot.slane %v2100, %v2108
        %v2110 = vlaneseq
        %v2111 = vshrl.u32 %v2110, 7
        %v2112 = vsub.s32 2, %v2111
        %v2113 = vrot.slane %v2100, %v2112
        %v2114 = vlaneseq
        %v2115 = vshrl.u32 %v2114, 7
        %v2116 = vsub.s32 3, %v2115
        %v2117 = vrot.slane %v2100, %v2116
        %v2118 = vcombine.low %v2105, %v2109
        %v2119 = vcombine.low %v2113, %v2117
        %2120 = vrot.lane.b32.xlu0 %v2118, 55
        %v2121 = vpop.permute.xlu0 %2120
        %2122 = vrot.lane.b32.xlu0 %v2119, 55
        %v2123 = vpop.permute.xlu0 %2122
        %v2124 = vrot.slane %v2121, 4
        %v2125 = vrot.slane %v2123, 4
        %v2126 = vsel %vm265, %v2124, %v2121
        %v2127 = vsel %vm267, %v2124, %v2125
        %v2128 = vsel %vm265, %v2127, %v2123
        %v2132 = vmul.f32 %v2097, %v2126
        %v2133 = vmul.f32 %v2098, %v2128
        %v2134 = vmul.f32 %v2099, %v2125
        %v2135 = vld [vmem:[%s276] ss:$8 sm:$0xf]
        %v2137 = vlaneseq
        %v2138 = vshrl.u32 %v2137, 7
        %v2139 = vsub.s32 0, %v2138
        %v2140 = vrot.slane %v2135, %v2139
        %v2141 = vlaneseq
        %v2142 = vshrl.u32 %v2141, 7
        %v2143 = vsub.s32 1, %v2142
        %v2144 = vrot.slane %v2135, %v2143
        %v2145 = vlaneseq
        %v2146 = vshrl.u32 %v2145, 7
        %v2147 = vsub.s32 2, %v2146
        %v2148 = vrot.slane %v2135, %v2147
        %v2149 = vlaneseq
        %v2150 = vshrl.u32 %v2149, 7
        %v2151 = vsub.s32 3, %v2150
        %v2152 = vrot.slane %v2135, %v2151
        %v2153 = vcombine.low %v2140, %v2144
        %v2154 = vcombine.low %v2148, %v2152
        %2155 = vrot.lane.b32.xlu0 %v2153, 56
        %v2156 = vpop.permute.xlu0 %2155
        %2157 = vrot.lane.b32.xlu0 %v2154, 56
        %v2158 = vpop.permute.xlu0 %2157
        %v2159 = vrot.slane %v2156, 4
        %v2160 = vrot.slane %v2158, 4
        %v2161 = vsel %vm303, %v2159, %v2156
        %v2162 = vsel %vm267, %v2159, %v2160
        %v2163 = vsel %vm303, %v2162, %v2158
        %v2167 = vmul.f32 %v2097, %v2161
        %v2168 = vmul.f32 %v2098, %v2163
        %v2169 = vmul.f32 %v2099, %v2160
        %v2170 = vld [vmem:[%s313] ss:$8 sm:$0xf]
        %v2172 = vlaneseq
        %v2173 = vshrl.u32 %v2172, 7
        %v2174 = vsub.s32 0, %v2173
        %v2175 = vrot.slane %v2170, %v2174
        %v2176 = vlaneseq
        %v2177 = vshrl.u32 %v2176, 7
        %v2178 = vsub.s32 1, %v2177
        %v2179 = vrot.slane %v2170, %v2178
        %v2180 = vlaneseq
        %v2181 = vshrl.u32 %v2180, 7
        %v2182 = vsub.s32 2, %v2181
        %v2183 = vrot.slane %v2170, %v2182
        %v2184 = vlaneseq
        %v2185 = vshrl.u32 %v2184, 7
        %v2186 = vsub.s32 3, %v2185
        %v2187 = vrot.slane %v2170, %v2186
        %v2188 = vcombine.low %v2175, %v2179
        %v2189 = vcombine.low %v2183, %v2187
        %2190 = vrot.lane.b32.xlu0 %v2188, 57
        %v2191 = vpop.permute.xlu0 %2190
        %2192 = vrot.lane.b32.xlu0 %v2189, 57
        %v2193 = vpop.permute.xlu0 %2192
        %v2194 = vrot.slane %v2191, 4
        %v2195 = vrot.slane %v2193, 4
        %v2196 = vsel %vm340, %v2194, %v2191
        %v2197 = vsel %vm267, %v2194, %v2195
        %v2198 = vsel %vm340, %v2197, %v2193
        %v2202 = vmul.f32 %v2097, %v2196
        %v2203 = vmul.f32 %v2098, %v2198
        %v2204 = vmul.f32 %v2099, %v2195
        %v2205 = vld [vmem:[%s350] ss:$8 sm:$0xf]
        %v2207 = vlaneseq
        %v2208 = vshrl.u32 %v2207, 7
        %v2209 = vsub.s32 0, %v2208
        %v2210 = vrot.slane %v2205, %v2209
        %v2211 = vlaneseq
        %v2212 = vshrl.u32 %v2211, 7
        %v2213 = vsub.s32 1, %v2212
        %v2214 = vrot.slane %v2205, %v2213
        %v2215 = vlaneseq
        %v2216 = vshrl.u32 %v2215, 7
        %v2217 = vsub.s32 2, %v2216
        %v2218 = vrot.slane %v2205, %v2217
        %v2219 = vlaneseq
        %v2220 = vshrl.u32 %v2219, 7
        %v2221 = vsub.s32 3, %v2220
        %v2222 = vrot.slane %v2205, %v2221
        %v2223 = vcombine.low %v2210, %v2214
        %v2224 = vcombine.low %v2218, %v2222
        %2225 = vrot.lane.b32.xlu0 %v2223, 63
        %v2226 = vpop.permute.xlu0 %2225
        %2227 = vrot.lane.b32.xlu0 %v2224, 63
        %v2228 = vpop.permute.xlu0 %2227
        %v2229 = vrot.slane %v2226, 4
        %v2230 = vrot.slane %v2228, 4
        %v2231 = vsel %vm377, %v2229, %v2226
        %v2232 = vsel %vm267, %v2229, %v2230
        %v2233 = vsel %vm377, %v2232, %v2228
        %v2237 = vmul.f32 %v2097, %v2231
        %v2238 = vmul.f32 %v2098, %v2233
        %v2239 = vmul.f32 %v2099, %v2230
        %v2242 = vcombine.high %v2132, %v2132
        %v2243 = vcombine.high %v2133, %v2133
        %v2249 = vcombine.low %v2167, %v2167
        %v2250 = vcombine.low %v2168, %v2168
        %v2251 = vcombine.low %v2169, %v2169
        %2252 = vrot.lane.b32.xlu0 %v2249, 127
        %v2253 = vpop.permute.xlu0 %2252
        %2254 = vrot.lane.b32.xlu0 %v2167, 127
        %v2255 = vpop.permute.xlu0 %2254
        %2256 = vrot.lane.b32.xlu0 %v2250, 127
        %v2257 = vpop.permute.xlu0 %2256
        %2258 = vrot.lane.b32.xlu0 %v2168, 127
        %v2259 = vpop.permute.xlu0 %2258
        %2260 = vrot.lane.b32.xlu0 %v2251, 127
        %v2261 = vpop.permute.xlu0 %2260
        %v2262 = vsel %vm409, %v2253, %v2255
        %v2263 = vsel %vm409, %v2255, %v2257
        %v2264 = vsel %vm409, %v2257, %v2259
        %v2265 = vsel %vm409, %v2259, %v2261
        %v2274 = vcombine.high %v2202, %v2202
        %v2275 = vcombine.high %v2203, %v2203
        %2276 = vrot.lane.b32.xlu0 %v2202, 126
        %v2277 = vpop.permute.xlu0 %2276
        %2278 = vrot.lane.b32.xlu0 %v2274, 126
        %v2279 = vpop.permute.xlu0 %2278
        %2280 = vrot.lane.b32.xlu0 %v2203, 126
        %v2281 = vpop.permute.xlu0 %2280
        %2282 = vrot.lane.b32.xlu0 %v2275, 126
        %v2283 = vpop.permute.xlu0 %2282
        %2284 = vrot.lane.b32.xlu0 %v2204, 126
        %v2285 = vpop.permute.xlu0 %2284
        %v2286 = vsel %vm434, %v2277, %v2279
        %v2287 = vsel %vm434, %v2279, %v2281
        %v2288 = vsel %vm434, %v2281, %v2283
        %v2289 = vsel %vm434, %v2283, %v2285
        %v2298 = vcombine.low %v2237, %v2237
        %v2299 = vcombine.low %v2238, %v2238
        %v2300 = vcombine.low %v2239, %v2239
        %2301 = vrot.lane.b32.xlu0 %v2298, 120
        %v2302 = vpop.permute.xlu0 %2301
        %2303 = vrot.lane.b32.xlu0 %v2237, 120
        %v2304 = vpop.permute.xlu0 %2303
        %2305 = vrot.lane.b32.xlu0 %v2299, 120
        %v2306 = vpop.permute.xlu0 %2305
        %2307 = vrot.lane.b32.xlu0 %v2238, 120
        %v2308 = vpop.permute.xlu0 %2307
        %2309 = vrot.lane.b32.xlu0 %v2300, 120
        %v2310 = vpop.permute.xlu0 %2309
        %v2311 = vsel %vm460, %v2302, %v2304
        %v2312 = vsel %vm460, %v2304, %v2306
        %v2313 = vsel %vm460, %v2306, %v2308
        %v2314 = vsel %vm460, %v2308, %v2310
        %v2320 = vsel %vm267, %v2132, %v2262
        %v2321 = vsel %vm267, %v2242, %v2263
        %v2322 = vsel %vm267, %v2133, %v2264
        %v2323 = vsel %vm267, %v2243, %v2265
        %v2324 = vsel %vm267, %v2134, %v2261
        %v2325 = vsel %vm267, %v2286, %v2311
        %v2326 = vsel %vm267, %v2287, %v2312
        %v2327 = vsel %vm267, %v2288, %v2313
        %v2328 = vsel %vm267, %v2289, %v2314
        %v2329 = vsel %vm267, %v2285, %v2310
        %v2330 = vpack.c.bf16 %v2325, %v2320
        %v2331 = vpack.c.bf16 %v2326, %v2321
        %v2332 = vpack.c.bf16 %v2327, %v2322
        %v2333 = vpack.c.bf16 %v2328, %v2323
        %v2334 = vpack.c.bf16 %v2329, %v2324
        %2340 = vrot.lane.b32.xlu0 %v2330, 73
        %v2341 = vpop.permute.xlu0 %2340
        %2342 = vrot.lane.b32.xlu0 %v2331, 73
        %v2343 = vpop.permute.xlu0 %2342
        %2344 = vrot.lane.b32.xlu0 %v2332, 73
        %v2345 = vpop.permute.xlu0 %2344
        %2346 = vrot.lane.b32.xlu0 %v2333, 73
        %v2347 = vpop.permute.xlu0 %2346
        %2348 = vrot.lane.b32.xlu0 %v2334, 73
        %v2349 = vpop.permute.xlu0 %2348
        %v2350 = vsel %vm500, %v2341, %v2343
        %v2351 = vsel %vm500, %v2343, %v2345
        %v2352 = vsel %vm500, %v2345, %v2347
        %v2353 = vsel %vm500, %v2347, %v2349
        %2358 = vst [vmem:[#allocation3] sm:$0xff] %v2350
        %2359 = vst [vmem:[#allocation3 + $0x8] sm:$0xff] %v2351
        %2360 = vst [vmem:[#allocation3 + $0x10] sm:$0xff] %v2352
        %2361 = vst [vmem:[#allocation3 + $0x18] sm:$0xff] %v2353
        %v2362 = vld [vmem:[#allocation2] sm:$0xff]
        %v2363 = vld [vmem:[#allocation2 + $0x8] sm:$0xff]
        %v2364 = vld [vmem:[#allocation2 + $0x10] sm:$0xf]
        %v2365 = vld [vmem:[%s516] ss:$8 sm:$0xf]
        %v2367 = vlaneseq
        %v2368 = vshrl.u32 %v2367, 7
        %v2369 = vsub.s32 0, %v2368
        %v2370 = vrot.slane %v2365, %v2369
        %v2371 = vlaneseq
        %v2372 = vshrl.u32 %v2371, 7
        %v2373 = vsub.s32 1, %v2372
        %v2374 = vrot.slane %v2365, %v2373
        %v2375 = vlaneseq
        %v2376 = vshrl.u32 %v2375, 7
        %v2377 = vsub.s32 2, %v2376
        %v2378 = vrot.slane %v2365, %v2377
        %v2379 = vlaneseq
        %v2380 = vshrl.u32 %v2379, 7
        %v2381 = vsub.s32 3, %v2380
        %v2382 = vrot.slane %v2365, %v2381
        %v2383 = vcombine.low %v2370, %v2374
        %v2384 = vcombine.low %v2378, %v2382
        %2385 = vrot.lane.b32.xlu0 %v2383, 65
        %v2386 = vpop.permute.xlu0 %2385
        %2387 = vrot.lane.b32.xlu0 %v2384, 65
        %v2388 = vpop.permute.xlu0 %2387
        %v2389 = vrot.slane %v2386, 4
        %v2390 = vrot.slane %v2388, 4
        %v2391 = vsel %vm543, %v2389, %v2386
        %v2392 = vsel %vm267, %v2389, %v2390
        %v2393 = vsel %vm543, %v2392, %v2388
        %v2397 = vmul.f32 %v2362, %v2391
        %v2398 = vmul.f32 %v2363, %v2393
        %v2399 = vmul.f32 %v2364, %v2390
        %v2400 = vld [vmem:[%s553] ss:$8 sm:$0xf]
        %v2402 = vlaneseq
        %v2403 = vshrl.u32 %v2402, 7
        %v2404 = vsub.s32 0, %v2403
        %v2405 = vrot.slane %v2400, %v2404
        %v2406 = vlaneseq
        %v2407 = vshrl.u32 %v2406, 7
        %v2408 = vsub.s32 1, %v2407
        %v2409 = vrot.slane %v2400, %v2408
        %v2410 = vlaneseq
        %v2411 = vshrl.u32 %v2410, 7
        %v2412 = vsub.s32 2, %v2411
        %v2413 = vrot.slane %v2400, %v2412
        %v2414 = vlaneseq
        %v2415 = vshrl.u32 %v2414, 7
        %v2416 = vsub.s32 3, %v2415
        %v2417 = vrot.slane %v2400, %v2416
        %v2418 = vcombine.low %v2405, %v2409
        %v2419 = vcombine.low %v2413, %v2417
        %2420 = vrot.lane.b32.xlu0 %v2418, 71
        %v2421 = vpop.permute.xlu0 %2420
        %2422 = vrot.lane.b32.xlu0 %v2419, 71
        %v2423 = vpop.permute.xlu0 %2422
        %v2424 = vrot.slane %v2421, 4
        %v2425 = vrot.slane %v2423, 4
        %v2426 = vsel %vm580, %v2424, %v2421
        %v2427 = vsel %vm267, %v2424, %v2425
        %v2428 = vsel %vm580, %v2427, %v2423
        %v2432 = vmul.f32 %v2362, %v2426
        %v2433 = vmul.f32 %v2363, %v2428
        %v2434 = vmul.f32 %v2364, %v2425
        %v2435 = vld [vmem:[%s590] ss:$8 sm:$0xf]
        %v2437 = vlaneseq
        %v2438 = vshrl.u32 %v2437, 7
        %v2439 = vsub.s32 0, %v2438
        %v2440 = vrot.slane %v2435, %v2439
        %v2441 = vlaneseq
        %v2442 = vshrl.u32 %v2441, 7
        %v2443 = vsub.s32 1, %v2442
        %v2444 = vrot.slane %v2435, %v2443
        %v2445 = vlaneseq
        %v2446 = vshrl.u32 %v2445, 7
        %v2447 = vsub.s32 2, %v2446
        %v2448 = vrot.slane %v2435, %v2447
        %v2449 = vlaneseq
        %v2450 = vshrl.u32 %v2449, 7
        %v2451 = vsub.s32 3, %v2450
        %v2452 = vrot.slane %v2435, %v2451
        %v2453 = vcombine.low %v2440, %v2444
        %v2454 = vcombine.low %v2448, %v2452
        %2455 = vrot.lane.b32.xlu0 %v2453, 72
        %v2456 = vpop.permute.xlu0 %2455
        %2457 = vrot.lane.b32.xlu0 %v2454, 72
        %v2458 = vpop.permute.xlu0 %2457
        %v2459 = vrot.slane %v2456, 4
        %v2460 = vrot.slane %v2458, 4
        %v2461 = vsel %vm617, %v2459, %v2456
        %v2462 = vsel %vm267, %v2459, %v2460
        %v2463 = vsel %vm617, %v2462, %v2458
        %v2467 = vmul.f32 %v2362, %v2461
        %v2468 = vmul.f32 %v2363, %v2463
        %v2469 = vmul.f32 %v2364, %v2460
        %v2472 = vcombine.high %v2362, %v2362
        %v2473 = vcombine.high %v2363, %v2363
        %v2479 = vcombine.low %v2397, %v2397
        %v2480 = vcombine.low %v2398, %v2398
        %v2481 = vcombine.low %v2399, %v2399
        %2482 = vrot.lane.b32.xlu0 %v2479, 127
        %v2483 = vpop.permute.xlu0 %2482
        %2484 = vrot.lane.b32.xlu0 %v2397, 127
        %v2485 = vpop.permute.xlu0 %2484
        %2486 = vrot.lane.b32.xlu0 %v2480, 127
        %v2487 = vpop.permute.xlu0 %2486
        %2488 = vrot.lane.b32.xlu0 %v2398, 127
        %v2489 = vpop.permute.xlu0 %2488
        %2490 = vrot.lane.b32.xlu0 %v2481, 127
        %v2491 = vpop.permute.xlu0 %2490
        %v2492 = vsel %vm409, %v2483, %v2485
        %v2493 = vsel %vm409, %v2485, %v2487
        %v2494 = vsel %vm409, %v2487, %v2489
        %v2495 = vsel %vm409, %v2489, %v2491
        %v2504 = vcombine.high %v2432, %v2432
        %v2505 = vcombine.high %v2433, %v2433
        %2506 = vrot.lane.b32.xlu0 %v2432, 121
        %v2507 = vpop.permute.xlu0 %2506
        %2508 = vrot.lane.b32.xlu0 %v2504, 121
        %v2509 = vpop.permute.xlu0 %2508
        %2510 = vrot.lane.b32.xlu0 %v2433, 121
        %v2511 = vpop.permute.xlu0 %2510
        %2512 = vrot.lane.b32.xlu0 %v2505, 121
        %v2513 = vpop.permute.xlu0 %2512
        %2514 = vrot.lane.b32.xlu0 %v2434, 121
        %v2515 = vpop.permute.xlu0 %2514
        %v2516 = vsel %vm673, %v2507, %v2509
        %v2517 = vsel %vm673, %v2509, %v2511
        %v2518 = vsel %vm673, %v2511, %v2513
        %v2519 = vsel %vm673, %v2513, %v2515
        %v2528 = vcombine.low %v2467, %v2467
        %v2529 = vcombine.low %v2468, %v2468
        %v2530 = vcombine.low %v2469, %v2469
        %2531 = vrot.lane.b32.xlu0 %v2528, 120
        %v2532 = vpop.permute.xlu0 %2531
        %2533 = vrot.lane.b32.xlu0 %v2467, 120
        %v2534 = vpop.permute.xlu0 %2533
        %2535 = vrot.lane.b32.xlu0 %v2529, 120
        %v2536 = vpop.permute.xlu0 %2535
        %2537 = vrot.lane.b32.xlu0 %v2468, 120
        %v2538 = vpop.permute.xlu0 %2537
        %2539 = vrot.lane.b32.xlu0 %v2530, 120
        %v2540 = vpop.permute.xlu0 %2539
        %v2541 = vsel %vm460, %v2532, %v2534
        %v2542 = vsel %vm460, %v2534, %v2536
        %v2543 = vsel %vm460, %v2536, %v2538
        %v2544 = vsel %vm460, %v2538, %v2540
        %v2550 = vsel %vm267, %v2362, %v2492
        %v2551 = vsel %vm267, %v2472, %v2493
        %v2552 = vsel %vm267, %v2363, %v2494
        %v2553 = vsel %vm267, %v2473, %v2495
        %v2554 = vsel %vm267, %v2364, %v2491
        %v2555 = vsel %vm267, %v2516, %v2541
        %v2556 = vsel %vm267, %v2517, %v2542
        %v2557 = vsel %vm267, %v2518, %v2543
        %v2558 = vsel %vm267, %v2519, %v2544
        %v2559 = vsel %vm267, %v2515, %v2540
        %v2560 = vpack.c.bf16 %v2555, %v2550
        %v2561 = vpack.c.bf16 %v2556, %v2551
        %v2562 = vpack.c.bf16 %v2557, %v2552
        %v2563 = vpack.c.bf16 %v2558, %v2553
        %v2564 = vpack.c.bf16 %v2559, %v2554
        %2570 = vrot.lane.b32.xlu0 %v2560, 64
        %v2571 = vpop.permute.xlu0 %2570
        %2572 = vrot.lane.b32.xlu0 %v2561, 64
        %v2573 = vpop.permute.xlu0 %2572
        %2574 = vrot.lane.b32.xlu0 %v2562, 64
        %v2575 = vpop.permute.xlu0 %2574
        %2576 = vrot.lane.b32.xlu0 %v2563, 64
        %v2577 = vpop.permute.xlu0 %2576
        %2578 = vrot.lane.b32.xlu0 %v2564, 64
        %v2579 = vpop.permute.xlu0 %2578
        %v2580 = vsel %vm738, %v2571, %v2573
        %v2581 = vsel %vm738, %v2573, %v2575
        %v2582 = vsel %vm738, %v2575, %v2577
        %v2583 = vsel %vm738, %v2577, %v2579
        %2588 = vst [vmem:[#allocation3 + $0x20] sm:$0xff] %v2580
        %2589 = vst [vmem:[#allocation3 + $0x28] sm:$0xff] %v2581
        %2590 = vst [vmem:[#allocation3 + $0x30] sm:$0xff] %v2582
        %2591 = vst [vmem:[#allocation3 + $0x38] sm:$0xff] %v2583
        %v2592 = vld [vmem:[#allocation2] sm:$0xff]
        %v2593 = vld [vmem:[#allocation2 + $0x8] sm:$0xff]
        %v2594 = vld [vmem:[#allocation2 + $0x10] sm:$0xf]
        %v2595 = vld [vmem:[%s754] ss:$8 sm:$0xf]
        %v2597 = vlaneseq
        %v2598 = vshrl.u32 %v2597, 7
        %v2599 = vsub.s32 0, %v2598
        %v2600 = vrot.slane %v2595, %v2599
        %v2601 = vlaneseq
        %v2602 = vshrl.u32 %v2601, 7
        %v2603 = vsub.s32 1, %v2602
        %v2604 = vrot.slane %v2595, %v2603
        %v2605 = vlaneseq
        %v2606 = vshrl.u32 %v2605, 7
        %v2607 = vsub.s32 2, %v2606
        %v2608 = vrot.slane %v2595, %v2607
        %v2609 = vlaneseq
        %v2610 = vshrl.u32 %v2609, 7
        %v2611 = vsub.s32 3, %v2610
        %v2612 = vrot.slane %v2595, %v2611
        %v2613 = vcombine.low %v2600, %v2604
        %v2614 = vcombine.low %v2608, %v2612
        %2615 = vrot.lane.b32.xlu0 %v2613, 73
        %v2616 = vpop.permute.xlu0 %2615
        %2617 = vrot.lane.b32.xlu0 %v2614, 73
        %v2618 = vpop.permute.xlu0 %2617
        %v2619 = vrot.slane %v2616, 4
        %v2620 = vrot.slane %v2618, 4
        %v2621 = vsel %vm781, %v2619, %v2616
        %v2622 = vsel %vm267, %v2619, %v2620
        %v2623 = vsel %vm781, %v2622, %v2618
        %v2627 = vmul.f32 %v2592, %v2621
        %v2628 = vmul.f32 %v2593, %v2623
        %v2629 = vmul.f32 %v2594, %v2620
        %v2630 = vld [vmem:[#allocation7] ss:$8 sm:$0xf]
        %v2632 = vlaneseq
        %v2633 = vshrl.u32 %v2632, 7
        %v2634 = vsub.s32 0, %v2633
        %v2635 = vrot.slane %v2630, %v2634
        %v2636 = vlaneseq
        %v2637 = vshrl.u32 %v2636, 7
        %v2638 = vsub.s32 1, %v2637
        %v2639 = vrot.slane %v2630, %v2638
        %v2640 = vlaneseq
        %v2641 = vshrl.u32 %v2640, 7
        %v2642 = vsub.s32 2, %v2641
        %v2643 = vrot.slane %v2630, %v2642
        %v2644 = vlaneseq
        %v2645 = vshrl.u32 %v2644, 7
        %v2646 = vsub.s32 3, %v2645
        %v2647 = vrot.slane %v2630, %v2646
        %v2648 = vcombine.low %v2635, %v2639
        %v2649 = vcombine.low %v2643, %v2647
        %2650 = vrot.lane.b32.xlu0 %v2648, 119
        %v2651 = vpop.permute.xlu0 %2650
        %2652 = vrot.lane.b32.xlu0 %v2649, 119
        %v2653 = vpop.permute.xlu0 %2652
        %v2654 = vrot.slane %v2651, 4
        %v2655 = vrot.slane %v2653, 4
        %v2656 = vsel %vm817, %v2654, %v2651
        %v2657 = vsel %vm267, %v2654, %v2655
        %v2658 = vsel %vm817, %v2657, %v2653
        %v2662 = vmul.f32 %v2592, %v2656
        %v2663 = vmul.f32 %v2593, %v2658
        %v2664 = vmul.f32 %v2594, %v2655
        %v2665 = vld [vmem:[%s276] ss:$8 sm:$0xf]
        %v2667 = vlaneseq
        %v2668 = vshrl.u32 %v2667, 7
        %v2669 = vsub.s32 0, %v2668
        %v2670 = vrot.slane %v2665, %v2669
        %v2671 = vlaneseq
        %v2672 = vshrl.u32 %v2671, 7
        %v2673 = vsub.s32 1, %v2672
        %v2674 = vrot.slane %v2665, %v2673
        %v2675 = vlaneseq
        %v2676 = vshrl.u32 %v2675, 7
        %v2677 = vsub.s32 2, %v2676
        %v2678 = vrot.slane %v2665, %v2677
        %v2679 = vlaneseq
        %v2680 = vshrl.u32 %v2679, 7
        %v2681 = vsub.s32 3, %v2680
        %v2682 = vrot.slane %v2665, %v2681
        %v2683 = vcombine.low %v2670, %v2674
        %v2684 = vcombine.low %v2678, %v2682
        %2685 = vrot.lane.b32.xlu0 %v2683, 120
        %v2686 = vpop.permute.xlu0 %2685
        %2687 = vrot.lane.b32.xlu0 %v2684, 120
        %v2688 = vpop.permute.xlu0 %2687
        %v2689 = vrot.slane %v2686, 4
        %v2690 = vrot.slane %v2688, 4
        %v2691 = vsel %vm460, %v2689, %v2686
        %v2692 = vsel %vm267, %v2689, %v2690
        %v2693 = vsel %vm460, %v2692, %v2688
        %v2697 = vmul.f32 %v2592, %v2691
        %v2698 = vmul.f32 %v2593, %v2693
        %v2699 = vmul.f32 %v2594, %v2690
        %v2700 = vld [vmem:[%s313] ss:$8 sm:$0xf]
        %v2702 = vlaneseq
        %v2703 = vshrl.u32 %v2702, 7
        %v2704 = vsub.s32 0, %v2703
        %v2705 = vrot.slane %v2700, %v2704
        %v2706 = vlaneseq
        %v2707 = vshrl.u32 %v2706, 7
        %v2708 = vsub.s32 1, %v2707
        %v2709 = vrot.slane %v2700, %v2708
        %v2710 = vlaneseq
        %v2711 = vshrl.u32 %v2710, 7
        %v2712 = vsub.s32 2, %v2711
        %v2713 = vrot.slane %v2700, %v2712
        %v2714 = vlaneseq
        %v2715 = vshrl.u32 %v2714, 7
        %v2716 = vsub.s32 3, %v2715
        %v2717 = vrot.slane %v2700, %v2716
        %v2718 = vcombine.low %v2705, %v2709
        %v2719 = vcombine.low %v2713, %v2717
        %2720 = vrot.lane.b32.xlu0 %v2718, 121
        %v2721 = vpop.permute.xlu0 %2720
        %2722 = vrot.lane.b32.xlu0 %v2719, 121
        %v2723 = vpop.permute.xlu0 %2722
        %v2724 = vrot.slane %v2721, 4
        %v2725 = vrot.slane %v2723, 4
        %v2726 = vsel %vm673, %v2724, %v2721
        %v2727 = vsel %vm267, %v2724, %v2725
        %v2728 = vsel %vm673, %v2727, %v2723
        %v2732 = vmul.f32 %v2592, %v2726
        %v2733 = vmul.f32 %v2593, %v2728
        %v2734 = vmul.f32 %v2594, %v2725
        %v2737 = vcombine.high %v2627, %v2627
        %v2738 = vcombine.high %v2628, %v2628
        %v2744 = vcombine.low %v2662, %v2662
        %v2745 = vcombine.low %v2663, %v2663
        %v2746 = vcombine.low %v2664, %v2664
        %2747 = vrot.lane.b32.xlu0 %v2744, 82
        %v2748 = vpop.permute.xlu0 %2747
        %2749 = vrot.lane.b32.xlu0 %v2662, 82
        %v2750 = vpop.permute.xlu0 %2749
        %2751 = vrot.lane.b32.xlu0 %v2745, 82
        %v2752 = vpop.permute.xlu0 %2751
        %2753 = vrot.lane.b32.xlu0 %v2663, 82
        %v2754 = vpop.permute.xlu0 %2753
        %2755 = vrot.lane.b32.xlu0 %v2746, 82
        %v2756 = vpop.permute.xlu0 %2755
        %v2757 = vsel %vm919, %v2748, %v2750
        %v2758 = vsel %vm919, %v2750, %v2752
        %v2759 = vsel %vm919, %v2752, %v2754
        %v2760 = vsel %vm919, %v2754, %v2756
        %v2769 = vcombine.high %v2697, %v2697
        %v2770 = vcombine.high %v2698, %v2698
        %2771 = vrot.lane.b32.xlu0 %v2697, 81
        %v2772 = vpop.permute.xlu0 %2771
        %2773 = vrot.lane.b32.xlu0 %v2769, 81
        %v2774 = vpop.permute.xlu0 %2773
        %2775 = vrot.lane.b32.xlu0 %v2698, 81
        %v2776 = vpop.permute.xlu0 %2775
        %2777 = vrot.lane.b32.xlu0 %v2770, 81
        %v2778 = vpop.permute.xlu0 %2777
        %2779 = vrot.lane.b32.xlu0 %v2699, 81
        %v2780 = vpop.permute.xlu0 %2779
        %v2781 = vsel %vm944, %v2772, %v2774
        %v2782 = vsel %vm944, %v2774, %v2776
        %v2783 = vsel %vm944, %v2776, %v2778
        %v2784 = vsel %vm944, %v2778, %v2780
        %v2793 = vcombine.low %v2732, %v2732
        %v2794 = vcombine.low %v2733, %v2733
        %v2795 = vcombine.low %v2734, %v2734
        %2796 = vrot.lane.b32.xlu0 %v2793, 80
        %v2797 = vpop.permute.xlu0 %2796
        %2798 = vrot.lane.b32.xlu0 %v2732, 80
        %v2799 = vpop.permute.xlu0 %2798
        %2800 = vrot.lane.b32.xlu0 %v2794, 80
        %v2801 = vpop.permute.xlu0 %2800
        %2802 = vrot.lane.b32.xlu0 %v2733, 80
        %v2803 = vpop.permute.xlu0 %2802
        %2804 = vrot.lane.b32.xlu0 %v2795, 80
        %v2805 = vpop.permute.xlu0 %2804
        %v2806 = vsel %vm970, %v2797, %v2799
        %v2807 = vsel %vm970, %v2799, %v2801
        %v2808 = vsel %vm970, %v2801, %v2803
        %v2809 = vsel %vm970, %v2803, %v2805
        %v2815 = vsel %vm267, %v2627, %v2757
        %v2816 = vsel %vm267, %v2737, %v2758
        %v2817 = vsel %vm267, %v2628, %v2759
        %v2818 = vsel %vm267, %v2738, %v2760
        %v2819 = vsel %vm267, %v2629, %v2756
        %v2820 = vsel %vm267, %v2781, %v2806
        %v2821 = vsel %vm267, %v2782, %v2807
        %v2822 = vsel %vm267, %v2783, %v2808
        %v2823 = vsel %vm267, %v2784, %v2809
        %v2824 = vsel %vm267, %v2780, %v2805
        %v2825 = vpack.c.bf16 %v2820, %v2815
        %v2826 = vpack.c.bf16 %v2821, %v2816
        %v2827 = vpack.c.bf16 %v2822, %v2817
        %v2828 = vpack.c.bf16 %v2823, %v2818
        %v2829 = vpack.c.bf16 %v2824, %v2819
        %2835 = vrot.lane.b32.xlu0 %v2825, 55
        %v2836 = vpop.permute.xlu0 %2835
        %2837 = vrot.lane.b32.xlu0 %v2826, 55
        %v2838 = vpop.permute.xlu0 %2837
        %2839 = vrot.lane.b32.xlu0 %v2827, 55
        %v2840 = vpop.permute.xlu0 %2839
        %2841 = vrot.lane.b32.xlu0 %v2828, 55
        %v2842 = vpop.permute.xlu0 %2841
        %2843 = vrot.lane.b32.xlu0 %v2829, 55
        %v2844 = vpop.permute.xlu0 %2843
        %v2845 = vsel %vm1010, %v2836, %v2838
        %v2846 = vsel %vm1010, %v2838, %v2840
        %v2847 = vsel %vm1010, %v2840, %v2842
        %v2848 = vsel %vm1010, %v2842, %v2844
        %2853 = vst [vmem:[#allocation3 + $0x40] sm:$0xff] %v2845
        %2854 = vst [vmem:[#allocation3 + $0x48] sm:$0xff] %v2846
        %2855 = vst [vmem:[#allocation3 + $0x50] sm:$0xff] %v2847
        %2856 = vst [vmem:[#allocation3 + $0x58] sm:$0xff] %v2848
        %v2857 = vld [vmem:[#allocation2] sm:$0xff]
        %v2858 = vld [vmem:[#allocation2 + $0x8] sm:$0xff]
        %v2859 = vld [vmem:[#allocation2 + $0x10] sm:$0xf]
        %v2860 = vld [vmem:[%s350] ss:$8 sm:$0xf]
        %v2862 = vlaneseq
        %v2863 = vshrl.u32 %v2862, 7
        %v2864 = vsub.s32 0, %v2863
        %v2865 = vrot.slane %v2860, %v2864
        %v2866 = vlaneseq
        %v2867 = vshrl.u32 %v2866, 7
        %v2868 = vsub.s32 1, %v2867
        %v2869 = vrot.slane %v2860, %v2868
        %v2870 = vlaneseq
        %v2871 = vshrl.u32 %v2870, 7
        %v2872 = vsub.s32 2, %v2871
        %v2873 = vrot.slane %v2860, %v2872
        %v2874 = vlaneseq
        %v2875 = vshrl.u32 %v2874, 7
        %v2876 = vsub.s32 3, %v2875
        %v2877 = vrot.slane %v2860, %v2876
        %v2878 = vcombine.low %v2865, %v2869
        %v2879 = vcombine.low %v2873, %v2877
        %2880 = vrot.lane.b32.xlu0 %v2878, 127
        %v2881 = vpop.permute.xlu0 %2880
        %2882 = vrot.lane.b32.xlu0 %v2879, 127
        %v2883 = vpop.permute.xlu0 %2882
        %v2884 = vrot.slane %v2881, 4
        %v2885 = vrot.slane %v2883, 4
        %v2886 = vsel %vm409, %v2884, %v2881
        %v2887 = vsel %vm267, %v2884, %v2885
        %v2888 = vsel %vm409, %v2887, %v2883
        %v2892 = vmul.f32 %v2857, %v2886
        %v2893 = vmul.f32 %v2858, %v2888
        %v2894 = vmul.f32 %v2859, %v2885
        %v2895 = vld [vmem:[#allocation2 + $0x4] sm:$0xff]
        %v2896 = vld [vmem:[#allocation2 + $0xc] sm:$0xff]
        %v2897 = vld [vmem:[#allocation2 + $0x4] sm:$0xff]
        %v2898 = vld [vmem:[#allocation2 + $0xc] sm:$0xff]
        %v2899 = vld [vmem:[#allocation2 + $0x14] sm:$0xf]
        %v2900 = vld [vmem:[%s516] ss:$8 sm:$0xf]
        %v2902 = vlaneseq
        %v2903 = vshrl.u32 %v2902, 7
        %v2904 = vsub.s32 0, %v2903
        %v2905 = vrot.slane %v2900, %v2904
        %v2906 = vlaneseq
        %v2907 = vshrl.u32 %v2906, 7
        %v2908 = vsub.s32 1, %v2907
        %v2909 = vrot.slane %v2900, %v2908
        %v2910 = vlaneseq
        %v2911 = vshrl.u32 %v2910, 7
        %v2912 = vsub.s32 2, %v2911
        %v2913 = vrot.slane %v2900, %v2912
        %v2914 = vlaneseq
        %v2915 = vshrl.u32 %v2914, 7
        %v2916 = vsub.s32 3, %v2915
        %v2917 = vrot.slane %v2900, %v2916
        %v2918 = vcombine.low %v2905, %v2909
        %v2919 = vcombine.low %v2913, %v2917
        %2920 = vrot.lane.b32.xlu0 %v2918, 1
        %v2921 = vpop.permute.xlu0 %2920
        %2922 = vrot.lane.b32.xlu0 %v2919, 1
        %v2923 = vpop.permute.xlu0 %2922
        %v2924 = vrot.slane %v2921, 4
        %v2925 = vrot.slane %v2923, 4
        %v2926 = vsel %vm1092, %v2924, %v2921
        %v2927 = vsel %vm267, %v2924, %v2925
        %v2928 = vsel %vm1092, %v2927, %v2923
        %v2932 = vmul.f32 %v2897, %v2926
        %v2933 = vmul.f32 %v2898, %v2928
        %v2934 = vmul.f32 %v2899, %v2925
        %v2935 = vld [vmem:[%s553] ss:$8 sm:$0xf]
        %v2937 = vlaneseq
        %v2938 = vshrl.u32 %v2937, 7
        %v2939 = vsub.s32 0, %v2938
        %v2940 = vrot.slane %v2935, %v2939
        %v2941 = vlaneseq
        %v2942 = vshrl.u32 %v2941, 7
        %v2943 = vsub.s32 1, %v2942
        %v2944 = vrot.slane %v2935, %v2943
        %v2945 = vlaneseq
        %v2946 = vshrl.u32 %v2945, 7
        %v2947 = vsub.s32 2, %v2946
        %v2948 = vrot.slane %v2935, %v2947
        %v2949 = vlaneseq
        %v2950 = vshrl.u32 %v2949, 7
        %v2951 = vsub.s32 3, %v2950
        %v2952 = vrot.slane %v2935, %v2951
        %v2953 = vcombine.low %v2940, %v2944
        %v2954 = vcombine.low %v2948, %v2952
        %2955 = vrot.lane.b32.xlu0 %v2953, 7
        %v2956 = vpop.permute.xlu0 %2955
        %2957 = vrot.lane.b32.xlu0 %v2954, 7
        %v2958 = vpop.permute.xlu0 %2957
        %v2959 = vrot.slane %v2956, 4
        %v2960 = vrot.slane %v2958, 4
        %v2961 = vsel %vm1128, %v2959, %v2956
        %v2962 = vsel %vm267, %v2959, %v2960
        %v2963 = vsel %vm1128, %v2962, %v2958
        %v2967 = vmul.f32 %v2897, %v2961
        %v2968 = vmul.f32 %v2898, %v2963
        %v2969 = vmul.f32 %v2899, %v2960
        %v2972 = vcombine.high %v2892, %v2892
        %v2973 = vcombine.high %v2893, %v2893
        %v2978 = vcombine.low %v2895, %v2895
        %v2979 = vcombine.low %v2896, %v2896
        %2980 = vrot.lane.b32.xlu0 %v2978, 127
        %v2981 = vpop.permute.xlu0 %2980
        %2982 = vrot.lane.b32.xlu0 %v2895, 127
        %v2983 = vpop.permute.xlu0 %2982
        %2984 = vrot.lane.b32.xlu0 %v2979, 127
        %v2985 = vpop.permute.xlu0 %2984
        %2986 = vrot.lane.b32.xlu0 %v2896, 127
        %v2987 = vpop.permute.xlu0 %2986
        %v2988 = vsel %vm409, %v2981, %v2983
        %v2989 = vsel %vm409, %v2983, %v2985
        %v2990 = vsel %vm409, %v2985, %v2987
        %v2999 = vcombine.high %v2932, %v2932
        %v3000 = vcombine.high %v2933, %v2933
        %3001 = vrot.lane.b32.xlu0 %v2932, 126
        %v3002 = vpop.permute.xlu0 %3001
        %3003 = vrot.lane.b32.xlu0 %v2999, 126
        %v3004 = vpop.permute.xlu0 %3003
        %3005 = vrot.lane.b32.xlu0 %v2933, 126
        %v3006 = vpop.permute.xlu0 %3005
        %3007 = vrot.lane.b32.xlu0 %v3000, 126
        %v3008 = vpop.permute.xlu0 %3007
        %3009 = vrot.lane.b32.xlu0 %v2934, 126
        %v3010 = vpop.permute.xlu0 %3009
        %v3011 = vsel %vm434, %v3002, %v3004
        %v3012 = vsel %vm434, %v3004, %v3006
        %v3013 = vsel %vm434, %v3006, %v3008
        %v3014 = vsel %vm434, %v3008, %v3010
        %v3023 = vcombine.low %v2967, %v2967
        %v3024 = vcombine.low %v2968, %v2968
        %v3025 = vcombine.low %v2969, %v2969
        %3026 = vrot.lane.b32.xlu0 %v3023, 120
        %v3027 = vpop.permute.xlu0 %3026
        %3028 = vrot.lane.b32.xlu0 %v2967, 120
        %v3029 = vpop.permute.xlu0 %3028
        %3030 = vrot.lane.b32.xlu0 %v3024, 120
        %v3031 = vpop.permute.xlu0 %3030
        %3032 = vrot.lane.b32.xlu0 %v2968, 120
        %v3033 = vpop.permute.xlu0 %3032
        %3034 = vrot.lane.b32.xlu0 %v3025, 120
        %v3035 = vpop.permute.xlu0 %3034
        %v3036 = vsel %vm460, %v3027, %v3029
        %v3037 = vsel %vm460, %v3029, %v3031
        %v3038 = vsel %vm460, %v3031, %v3033
        %v3039 = vsel %vm460, %v3033, %v3035
        %v3045 = vsel %vm267, %v2892, %v2981
        %v3046 = vsel %vm267, %v2972, %v2988
        %v3047 = vsel %vm267, %v2893, %v2989
        %v3048 = vsel %vm267, %v2973, %v2990
        %v3049 = vsel %vm267, %v2894, %v2987
        %v3050 = vsel %vm267, %v3002, %v3027
        %v3051 = vsel %vm267, %v3011, %v3036
        %v3052 = vsel %vm267, %v3012, %v3037
        %v3053 = vsel %vm267, %v3013, %v3038
        %v3054 = vsel %vm267, %v3014, %v3039
        %v3055 = vpack.c.bf16 %v3050, %v3045
        %v3056 = vpack.c.bf16 %v3051, %v3046
        %v3057 = vpack.c.bf16 %v3052, %v3047
        %v3058 = vpack.c.bf16 %v3053, %v3048
        %v3059 = vpack.c.bf16 %v3054, %v3049
        %3065 = vrot.lane.b32.xlu0 %v3055, 1
        %v3066 = vpop.permute.xlu0 %3065
        %3067 = vrot.lane.b32.xlu0 %v3056, 1
        %v3068 = vpop.permute.xlu0 %3067
        %3069 = vrot.lane.b32.xlu0 %v3057, 1
        %v3070 = vpop.permute.xlu0 %3069
        %3071 = vrot.lane.b32.xlu0 %v3058, 1
        %v3072 = vpop.permute.xlu0 %3071
        %3073 = vrot.lane.b32.xlu0 %v3059, 1
        %v3074 = vpop.permute.xlu0 %3073
        %v3075 = vsel %vm1243, %v3066, %v3068
        %v3076 = vsel %vm1243, %v3068, %v3070
        %v3077 = vsel %vm1243, %v3070, %v3072
        %v3078 = vsel %vm1243, %v3072, %v3074
        %3083 = vst [vmem:[#allocation3 + $0x60] sm:$0xff] %v3075
        %3084 = vst [vmem:[#allocation3 + $0x68] sm:$0xff] %v3076
        %3085 = vst [vmem:[#allocation3 + $0x70] sm:$0xff] %v3077
        %3086 = vst [vmem:[#allocation3 + $0x78] sm:$0xff] %v3078
        %v3087 = vld [vmem:[#allocation2 + $0x4] sm:$0xff]
        %v3088 = vld [vmem:[#allocation2 + $0xc] sm:$0xff]
        %v3089 = vld [vmem:[#allocation2 + $0x14] sm:$0xf]
        %v3090 = vld [vmem:[%s590] ss:$8 sm:$0xf]
        %v3092 = vlaneseq
        %v3093 = vshrl.u32 %v3092, 7
        %v3094 = vsub.s32 0, %v3093
        %v3095 = vrot.slane %v3090, %v3094
        %v3096 = vlaneseq
        %v3097 = vshrl.u32 %v3096, 7
        %v3098 = vsub.s32 1, %v3097
        %v3099 = vrot.slane %v3090, %v3098
        %v3100 = vlaneseq
        %v3101 = vshrl.u32 %v3100, 7
        %v3102 = vsub.s32 2, %v3101
        %v3103 = vrot.slane %v3090, %v3102
        %v3104 = vlaneseq
        %v3105 = vshrl.u32 %v3104, 7
        %v3106 = vsub.s32 3, %v3105
        %v3107 = vrot.slane %v3090, %v3106
        %v3108 = vcombine.low %v3095, %v3099
        %v3109 = vcombine.low %v3103, %v3107
        %3110 = vrot.lane.b32.xlu0 %v3108, 8
        %v3111 = vpop.permute.xlu0 %3110
        %3112 = vrot.lane.b32.xlu0 %v3109, 8
        %v3113 = vpop.permute.xlu0 %3112
        %v3114 = vrot.slane %v3111, 4
        %v3115 = vrot.slane %v3113, 4
        %v3116 = vsel %vm1285, %v3114, %v3111
        %v3117 = vsel %vm267, %v3114, %v3115
        %v3118 = vsel %vm1285, %v3117, %v3113
        %v3122 = vmul.f32 %v3087, %v3116
        %v3123 = vmul.f32 %v3088, %v3118
        %v3124 = vmul.f32 %v3089, %v3115
        %v3125 = vld [vmem:[%s754] ss:$8 sm:$0xf]
        %v3127 = vlaneseq
        %v3128 = vshrl.u32 %v3127, 7
        %v3129 = vsub.s32 0, %v3128
        %v3130 = vrot.slane %v3125, %v3129
        %v3131 = vlaneseq
        %v3132 = vshrl.u32 %v3131, 7
        %v3133 = vsub.s32 1, %v3132
        %v3134 = vrot.slane %v3125, %v3133
        %v3135 = vlaneseq
        %v3136 = vshrl.u32 %v3135, 7
        %v3137 = vsub.s32 2, %v3136
        %v3138 = vrot.slane %v3125, %v3137
        %v3139 = vlaneseq
        %v3140 = vshrl.u32 %v3139, 7
        %v3141 = vsub.s32 3, %v3140
        %v3142 = vrot.slane %v3125, %v3141
        %v3143 = vcombine.low %v3130, %v3134
        %v3144 = vcombine.low %v3138, %v3142
        %3145 = vrot.lane.b32.xlu0 %v3143, 9
        %v3146 = vpop.permute.xlu0 %3145
        %3147 = vrot.lane.b32.xlu0 %v3144, 9
        %v3148 = vpop.permute.xlu0 %3147
        %v3149 = vrot.slane %v3146, 4
        %v3150 = vrot.slane %v3148, 4
        %v3151 = vsel %vm1321, %v3149, %v3146
        %v3152 = vsel %vm267, %v3149, %v3150
        %v3153 = vsel %vm1321, %v3152, %v3148
        %v3157 = vmul.f32 %v3087, %v3151
        %v3158 = vmul.f32 %v3088, %v3153
        %v3159 = vmul.f32 %v3089, %v3150
        %v3160 = vld [vmem:[#allocation7] ss:$8 sm:$0xf]
        %v3162 = vlaneseq
        %v3163 = vshrl.u32 %v3162, 7
        %v3164 = vsub.s32 0, %v3163
        %v3165 = vrot.slane %v3160, %v3164
        %v3166 = vlaneseq
        %v3167 = vshrl.u32 %v3166, 7
        %v3168 = vsub.s32 1, %v3167
        %v3169 = vrot.slane %v3160, %v3168
        %v3170 = vlaneseq
        %v3171 = vshrl.u32 %v3170, 7
        %v3172 = vsub.s32 2, %v3171
        %v3173 = vrot.slane %v3160, %v3172
        %v3174 = vlaneseq
        %v3175 = vshrl.u32 %v3174, 7
        %v3176 = vsub.s32 3, %v3175
        %v3177 = vrot.slane %v3160, %v3176
        %v3178 = vcombine.low %v3165, %v3169
        %v3179 = vcombine.low %v3173, %v3177
        %3180 = vrot.lane.b32.xlu0 %v3178, 55
        %v3181 = vpop.permute.xlu0 %3180
        %3182 = vrot.lane.b32.xlu0 %v3179, 55
        %v3183 = vpop.permute.xlu0 %3182
        %v3184 = vrot.slane %v3181, 4
        %v3185 = vrot.slane %v3183, 4
        %v3186 = vsel %vm265, %v3184, %v3181
        %v3187 = vsel %vm267, %v3184, %v3185
        %v3188 = vsel %vm265, %v3187, %v3183
        %v3192 = vmul.f32 %v3087, %v3186
        %v3193 = vmul.f32 %v3088, %v3188
        %v3194 = vmul.f32 %v3089, %v3185
        %v3195 = vld [vmem:[%s276] ss:$8 sm:$0xf]
        %v3197 = vlaneseq
        %v3198 = vshrl.u32 %v3197, 7
        %v3199 = vsub.s32 0, %v3198
        %v3200 = vrot.slane %v3195, %v3199
        %v3201 = vlaneseq
        %v3202 = vshrl.u32 %v3201, 7
        %v3203 = vsub.s32 1, %v3202
        %v3204 = vrot.slane %v3195, %v3203
        %v3205 = vlaneseq
        %v3206 = vshrl.u32 %v3205, 7
        %v3207 = vsub.s32 2, %v3206
        %v3208 = vrot.slane %v3195, %v3207
        %v3209 = vlaneseq
        %v3210 = vshrl.u32 %v3209, 7
        %v3211 = vsub.s32 3, %v3210
        %v3212 = vrot.slane %v3195, %v3211
        %v3213 = vcombine.low %v3200, %v3204
        %v3214 = vcombine.low %v3208, %v3212
        %3215 = vrot.lane.b32.xlu0 %v3213, 56
        %v3216 = vpop.permute.xlu0 %3215
        %3217 = vrot.lane.b32.xlu0 %v3214, 56
        %v3218 = vpop.permute.xlu0 %3217
        %v3219 = vrot.slane %v3216, 4
        %v3220 = vrot.slane %v3218, 4
        %v3221 = vsel %vm303, %v3219, %v3216
        %v3222 = vsel %vm267, %v3219, %v3220
        %v3223 = vsel %vm303, %v3222, %v3218
        %v3227 = vmul.f32 %v3087, %v3221
        %v3228 = vmul.f32 %v3088, %v3223
        %v3229 = vmul.f32 %v3089, %v3220
        %v3232 = vcombine.high %v3122, %v3122
        %v3233 = vcombine.high %v3123, %v3123
        %v3239 = vcombine.low %v3157, %v3157
        %v3240 = vcombine.low %v3158, %v3158
        %v3241 = vcombine.low %v3159, %v3159
        %3242 = vrot.lane.b32.xlu0 %v3239, 127
        %v3243 = vpop.permute.xlu0 %3242
        %3244 = vrot.lane.b32.xlu0 %v3157, 127
        %v3245 = vpop.permute.xlu0 %3244
        %3246 = vrot.lane.b32.xlu0 %v3240, 127
        %v3247 = vpop.permute.xlu0 %3246
        %3248 = vrot.lane.b32.xlu0 %v3158, 127
        %v3249 = vpop.permute.xlu0 %3248
        %3250 = vrot.lane.b32.xlu0 %v3241, 127
        %v3251 = vpop.permute.xlu0 %3250
        %v3252 = vsel %vm409, %v3243, %v3245
        %v3253 = vsel %vm409, %v3245, %v3247
        %v3254 = vsel %vm409, %v3247, %v3249
        %v3255 = vsel %vm409, %v3249, %v3251
        %v3264 = vcombine.high %v3192, %v3192
        %v3265 = vcombine.high %v3193, %v3193
        %3266 = vrot.lane.b32.xlu0 %v3192, 81
        %v3267 = vpop.permute.xlu0 %3266
        %3268 = vrot.lane.b32.xlu0 %v3264, 81
        %v3269 = vpop.permute.xlu0 %3268
        %3270 = vrot.lane.b32.xlu0 %v3193, 81
        %v3271 = vpop.permute.xlu0 %3270
        %3272 = vrot.lane.b32.xlu0 %v3265, 81
        %v3273 = vpop.permute.xlu0 %3272
        %3274 = vrot.lane.b32.xlu0 %v3194, 81
        %v3275 = vpop.permute.xlu0 %3274
        %v3276 = vsel %vm944, %v3267, %v3269
        %v3277 = vsel %vm944, %v3269, %v3271
        %v3278 = vsel %vm944, %v3271, %v3273
        %v3279 = vsel %vm944, %v3273, %v3275
        %v3288 = vcombine.low %v3227, %v3227
        %v3289 = vcombine.low %v3228, %v3228
        %v3290 = vcombine.low %v3229, %v3229
        %3291 = vrot.lane.b32.xlu0 %v3288, 80
        %v3292 = vpop.permute.xlu0 %3291
        %3293 = vrot.lane.b32.xlu0 %v3227, 80
        %v3294 = vpop.permute.xlu0 %3293
        %3295 = vrot.lane.b32.xlu0 %v3289, 80
        %v3296 = vpop.permute.xlu0 %3295
        %3297 = vrot.lane.b32.xlu0 %v3228, 80
        %v3298 = vpop.permute.xlu0 %3297
        %3299 = vrot.lane.b32.xlu0 %v3290, 80
        %v3300 = vpop.permute.xlu0 %3299
        %v3301 = vsel %vm970, %v3292, %v3294
        %v3302 = vsel %vm970, %v3294, %v3296
        %v3303 = vsel %vm970, %v3296, %v3298
        %v3304 = vsel %vm970, %v3298, %v3300
        %v3310 = vsel %vm267, %v3122, %v3252
        %v3311 = vsel %vm267, %v3232, %v3253
        %v3312 = vsel %vm267, %v3123, %v3254
        %v3313 = vsel %vm267, %v3233, %v3255
        %v3314 = vsel %vm267, %v3124, %v3251
        %v3315 = vsel %vm267, %v3276, %v3301
        %v3316 = vsel %vm267, %v3277, %v3302
        %v3317 = vsel %vm267, %v3278, %v3303
        %v3318 = vsel %vm267, %v3279, %v3304
        %v3319 = vsel %vm267, %v3275, %v3300
        %v3320 = vpack.c.bf16 %v3315, %v3310
        %v3321 = vpack.c.bf16 %v3316, %v3311
        %v3322 = vpack.c.bf16 %v3317, %v3312
        %v3323 = vpack.c.bf16 %v3318, %v3313
        %v3324 = vpack.c.bf16 %v3319, %v3314
        %3330 = vrot.lane.b32.xlu0 %v3320, 120
        %v3331 = vpop.permute.xlu0 %3330
        %3332 = vrot.lane.b32.xlu0 %v3321, 120
        %v3333 = vpop.permute.xlu0 %3332
        %3334 = vrot.lane.b32.xlu0 %v3322, 120
        %v3335 = vpop.permute.xlu0 %3334
        %3336 = vrot.lane.b32.xlu0 %v3323, 120
        %v3337 = vpop.permute.xlu0 %3336
        %3338 = vrot.lane.b32.xlu0 %v3324, 120
        %v3339 = vpop.permute.xlu0 %3338
        %v3340 = vsel %vm1511, %v3331, %v3333
        %v3341 = vsel %vm1511, %v3333, %v3335
        %v3342 = vsel %vm1511, %v3335, %v3337
        %v3343 = vsel %vm1511, %v3337, %v3339
        %3348 = vst [vmem:[#allocation3 + $0x80] sm:$0xff] %v3340
        %3349 = vst [vmem:[#allocation3 + $0x88] sm:$0xff] %v3341
        %3350 = vst [vmem:[#allocation3 + $0x90] sm:$0xff] %v3342
        %3351 = vst [vmem:[#allocation3 + $0x98] sm:$0xff] %v3343
        %v3352 = vld [vmem:[#allocation2 + $0x4] sm:$0xff]
        %v3353 = vld [vmem:[#allocation2 + $0xc] sm:$0xff]
        %v3354 = vld [vmem:[#allocation2 + $0x14] sm:$0xf]
        %v3355 = vld [vmem:[%s313] ss:$8 sm:$0xf]
        %v3357 = vlaneseq
        %v3358 = vshrl.u32 %v3357, 7
        %v3359 = vsub.s32 0, %v3358
        %v3360 = vrot.slane %v3355, %v3359
        %v3361 = vlaneseq
        %v3362 = vshrl.u32 %v3361, 7
        %v3363 = vsub.s32 1, %v3362
        %v3364 = vrot.slane %v3355, %v3363
        %v3365 = vlaneseq
        %v3366 = vshrl.u32 %v3365, 7
        %v3367 = vsub.s32 2, %v3366
        %v3368 = vrot.slane %v3355, %v3367
        %v3369 = vlaneseq
        %v3370 = vshrl.u32 %v3369, 7
        %v3371 = vsub.s32 3, %v3370
        %v3372 = vrot.slane %v3355, %v3371
        %v3373 = vcombine.low %v3360, %v3364
        %v3374 = vcombine.low %v3368, %v3372
        %3375 = vrot.lane.b32.xlu0 %v3373, 57
        %v3376 = vpop.permute.xlu0 %3375
        %3377 = vrot.lane.b32.xlu0 %v3374, 57
        %v3378 = vpop.permute.xlu0 %3377
        %v3379 = vrot.slane %v3376, 4
        %v3380 = vrot.slane %v3378, 4
        %v3381 = vsel %vm340, %v3379, %v3376
        %v3382 = vsel %vm267, %v3379, %v3380
        %v3383 = vsel %vm340, %v3382, %v3378
        %v3387 = vmul.f32 %v3352, %v3381
        %v3388 = vmul.f32 %v3353, %v3383
        %v3389 = vmul.f32 %v3354, %v3380
        %v3390 = vld [vmem:[%s350] ss:$8 sm:$0xf]
        %v3392 = vlaneseq
        %v3393 = vshrl.u32 %v3392, 7
        %v3394 = vsub.s32 0, %v3393
        %v3395 = vrot.slane %v3390, %v3394
        %v3396 = vlaneseq
        %v3397 = vshrl.u32 %v3396, 7
        %v3398 = vsub.s32 1, %v3397
        %v3399 = vrot.slane %v3390, %v3398
        %v3400 = vlaneseq
        %v3401 = vshrl.u32 %v3400, 7
        %v3402 = vsub.s32 2, %v3401
        %v3403 = vrot.slane %v3390, %v3402
        %v3404 = vlaneseq
        %v3405 = vshrl.u32 %v3404, 7
        %v3406 = vsub.s32 3, %v3405
        %v3407 = vrot.slane %v3390, %v3406
        %v3408 = vcombine.low %v3395, %v3399
        %v3409 = vcombine.low %v3403, %v3407
        %3410 = vrot.lane.b32.xlu0 %v3408, 63
        %v3411 = vpop.permute.xlu0 %3410
        %3412 = vrot.lane.b32.xlu0 %v3409, 63
        %v3413 = vpop.permute.xlu0 %3412
        %v3414 = vrot.slane %v3411, 4
        %v3415 = vrot.slane %v3413, 4
        %v3416 = vsel %vm377, %v3414, %v3411
        %v3417 = vsel %vm267, %v3414, %v3415
        %v3418 = vsel %vm377, %v3417, %v3413
        %v3422 = vmul.f32 %v3352, %v3416
        %v3423 = vmul.f32 %v3353, %v3418
        %v3424 = vmul.f32 %v3354, %v3415
        %v3425 = vld [vmem:[%s516] ss:$8 sm:$0xf]
        %v3427 = vlaneseq
        %v3428 = vshrl.u32 %v3427, 7
        %v3429 = vsub.s32 0, %v3428
        %v3430 = vrot.slane %v3425, %v3429
        %v3431 = vlaneseq
        %v3432 = vshrl.u32 %v3431, 7
        %v3433 = vsub.s32 1, %v3432
        %v3434 = vrot.slane %v3425, %v3433
        %v3435 = vlaneseq
        %v3436 = vshrl.u32 %v3435, 7
        %v3437 = vsub.s32 2, %v3436
        %v3438 = vrot.slane %v3425, %v3437
        %v3439 = vlaneseq
        %v3440 = vshrl.u32 %v3439, 7
        %v3441 = vsub.s32 3, %v3440
        %v3442 = vrot.slane %v3425, %v3441
        %v3443 = vcombine.low %v3430, %v3434
        %v3444 = vcombine.low %v3438, %v3442
        %3445 = vrot.lane.b32.xlu0 %v3443, 65
        %v3446 = vpop.permute.xlu0 %3445
        %3447 = vrot.lane.b32.xlu0 %v3444, 65
        %v3448 = vpop.permute.xlu0 %3447
        %v3449 = vrot.slane %v3446, 4
        %v3450 = vrot.slane %v3448, 4
        %v3451 = vsel %vm543, %v3449, %v3446
        %v3452 = vsel %vm267, %v3449, %v3450
        %v3453 = vsel %vm543, %v3452, %v3448
        %v3457 = vmul.f32 %v3352, %v3451
        %v3458 = vmul.f32 %v3353, %v3453
        %v3459 = vmul.f32 %v3354, %v3450
        %v3462 = vcombine.high %v3387, %v3387
        %v3463 = vcombine.high %v3388, %v3388
        %v3469 = vcombine.low %v3422, %v3422
        %v3470 = vcombine.low %v3423, %v3423
        %v3471 = vcombine.low %v3424, %v3424
        %3472 = vrot.lane.b32.xlu0 %v3469, 122
        %v3473 = vpop.permute.xlu0 %3472
        %3474 = vrot.lane.b32.xlu0 %v3422, 122
        %v3475 = vpop.permute.xlu0 %3474
        %3476 = vrot.lane.b32.xlu0 %v3470, 122
        %v3477 = vpop.permute.xlu0 %3476
        %3478 = vrot.lane.b32.xlu0 %v3423, 122
        %v3479 = vpop.permute.xlu0 %3478
        %3480 = vrot.lane.b32.xlu0 %v3471, 122
        %v3481 = vpop.permute.xlu0 %3480
        %v3482 = vsel %vm1654, %v3473, %v3475
        %v3483 = vsel %vm1654, %v3475, %v3477
        %v3484 = vsel %vm1654, %v3477, %v3479
        %v3485 = vsel %vm1654, %v3479, %v3481
        %v3494 = vcombine.high %v3352, %v3352
        %v3495 = vcombine.high %v3353, %v3353
        %3496 = vrot.lane.b32.xlu0 %v3352, 121
        %v3497 = vpop.permute.xlu0 %3496
        %3498 = vrot.lane.b32.xlu0 %v3494, 121
        %v3499 = vpop.permute.xlu0 %3498
        %3500 = vrot.lane.b32.xlu0 %v3353, 121
        %v3501 = vpop.permute.xlu0 %3500
        %3502 = vrot.lane.b32.xlu0 %v3495, 121
        %v3503 = vpop.permute.xlu0 %3502
        %3504 = vrot.lane.b32.xlu0 %v3354, 121
        %v3505 = vpop.permute.xlu0 %3504
        %v3506 = vsel %vm673, %v3497, %v3499
        %v3507 = vsel %vm673, %v3499, %v3501
        %v3508 = vsel %vm673, %v3501, %v3503
        %v3509 = vsel %vm673, %v3503, %v3505
        %v3518 = vcombine.low %v3457, %v3457
        %v3519 = vcombine.low %v3458, %v3458
        %v3520 = vcombine.low %v3459, %v3459
        %3521 = vrot.lane.b32.xlu0 %v3518, 120
        %v3522 = vpop.permute.xlu0 %3521
        %3523 = vrot.lane.b32.xlu0 %v3457, 120
        %v3524 = vpop.permute.xlu0 %3523
        %3525 = vrot.lane.b32.xlu0 %v3519, 120
        %v3526 = vpop.permute.xlu0 %3525
        %3527 = vrot.lane.b32.xlu0 %v3458, 120
        %v3528 = vpop.permute.xlu0 %3527
        %3529 = vrot.lane.b32.xlu0 %v3520, 120
        %v3530 = vpop.permute.xlu0 %3529
        %v3531 = vsel %vm460, %v3522, %v3524
        %v3532 = vsel %vm460, %v3524, %v3526
        %v3533 = vsel %vm460, %v3526, %v3528
        %v3534 = vsel %vm460, %v3528, %v3530
        %v3540 = vsel %vm267, %v3387, %v3482
        %v3541 = vsel %vm267, %v3462, %v3483
        %v3542 = vsel %vm267, %v3388, %v3484
        %v3543 = vsel %vm267, %v3463, %v3485
        %v3544 = vsel %vm267, %v3389, %v3481
        %v3545 = vsel %vm267, %v3506, %v3531
        %v3546 = vsel %vm267, %v3507, %v3532
        %v3547 = vsel %vm267, %v3508, %v3533
        %v3548 = vsel %vm267, %v3509, %v3534
        %v3549 = vsel %vm267, %v3505, %v3530
        %v3550 = vpack.c.bf16 %v3545, %v3540
        %v3551 = vpack.c.bf16 %v3546, %v3541
        %v3552 = vpack.c.bf16 %v3547, %v3542
        %v3553 = vpack.c.bf16 %v3548, %v3543
        %v3554 = vpack.c.bf16 %v3549, %v3544
        %3560 = vrot.lane.b32.xlu0 %v3550, 71
        %v3561 = vpop.permute.xlu0 %3560
        %3562 = vrot.lane.b32.xlu0 %v3551, 71
        %v3563 = vpop.permute.xlu0 %3562
        %3564 = vrot.lane.b32.xlu0 %v3552, 71
        %v3565 = vpop.permute.xlu0 %3564
        %3566 = vrot.lane.b32.xlu0 %v3553, 71
        %v3567 = vpop.permute.xlu0 %3566
        %3568 = vrot.lane.b32.xlu0 %v3554, 71
        %v3569 = vpop.permute.xlu0 %3568
        %v3570 = vsel %vm1743, %v3561, %v3563
        %v3571 = vsel %vm1743, %v3563, %v3565
        %v3572 = vsel %vm1743, %v3565, %v3567
        %v3573 = vsel %vm1743, %v3567, %v3569
        %3578 = vst [vmem:[#allocation3 + $0xa0] sm:$0xff] %v3570
        %3579 = vst [vmem:[#allocation3 + $0xa8] sm:$0xff] %v3571
        %3580 = vst [vmem:[#allocation3 + $0xb0] sm:$0xff] %v3572
        %3581 = vst [vmem:[#allocation3 + $0xb8] sm:$0xff] %v3573
        %v3582 = vld [vmem:[#allocation2 + $0x4] sm:$0xff]
        %v3583 = vld [vmem:[#allocation2 + $0xc] sm:$0xff]
        %v3584 = vld [vmem:[#allocation2 + $0x14] sm:$0xf]
        %v3585 = vld [vmem:[%s553] ss:$8 sm:$0xf]
        %v3587 = vlaneseq
        %v3588 = vshrl.u32 %v3587, 7
        %v3589 = vsub.s32 0, %v3588
        %v3590 = vrot.slane %v3585, %v3589
        %v3591 = vlaneseq
        %v3592 = vshrl.u32 %v3591, 7
        %v3593 = vsub.s32 1, %v3592
        %v3594 = vrot.slane %v3585, %v3593
        %v3595 = vlaneseq
        %v3596 = vshrl.u32 %v3595, 7
        %v3597 = vsub.s32 2, %v3596
        %v3598 = vrot.slane %v3585, %v3597
        %v3599 = vlaneseq
        %v3600 = vshrl.u32 %v3599, 7
        %v3601 = vsub.s32 3, %v3600
        %v3602 = vrot.slane %v3585, %v3601
        %v3603 = vcombine.low %v3590, %v3594
        %v3604 = vcombine.low %v3598, %v3602
        %3605 = vrot.lane.b32.xlu0 %v3603, 71
        %v3606 = vpop.permute.xlu0 %3605
        %3607 = vrot.lane.b32.xlu0 %v3604, 71
        %v3608 = vpop.permute.xlu0 %3607
        %v3609 = vrot.slane %v3606, 4
        %v3610 = vrot.slane %v3608, 4
        %v3611 = vsel %vm580, %v3609, %v3606
        %v3612 = vsel %vm267, %v3609, %v3610
        %v3613 = vsel %vm580, %v3612, %v3608
        %v3617 = vmul.f32 %v3582, %v3611
        %v3618 = vmul.f32 %v3583, %v3613
        %v3619 = vmul.f32 %v3584, %v3610
        %v3620 = vld [vmem:[%s590] ss:$8 sm:$0xf]
        %v3622 = vlaneseq
        %v3623 = vshrl.u32 %v3622, 7
        %v3624 = vsub.s32 0, %v3623
        %v3625 = vrot.slane %v3620, %v3624
        %v3626 = vlaneseq
        %v3627 = vshrl.u32 %v3626, 7
        %v3628 = vsub.s32 1, %v3627
        %v3629 = vrot.slane %v3620, %v3628
        %v3630 = vlaneseq
        %v3631 = vshrl.u32 %v3630, 7
        %v3632 = vsub.s32 2, %v3631
        %v3633 = vrot.slane %v3620, %v3632
        %v3634 = vlaneseq
        %v3635 = vshrl.u32 %v3634, 7
        %v3636 = vsub.s32 3, %v3635
        %v3637 = vrot.slane %v3620, %v3636
        %v3638 = vcombine.low %v3625, %v3629
        %v3639 = vcombine.low %v3633, %v3637
        %3640 = vrot.lane.b32.xlu0 %v3638, 72
        %v3641 = vpop.permute.xlu0 %3640
        %3642 = vrot.lane.b32.xlu0 %v3639, 72
        %v3643 = vpop.permute.xlu0 %3642
        %v3644 = vrot.slane %v3641, 4
        %v3645 = vrot.slane %v3643, 4
        %v3646 = vsel %vm617, %v3644, %v3641
        %v3647 = vsel %vm267, %v3644, %v3645
        %v3648 = vsel %vm617, %v3647, %v3643
        %v3652 = vmul.f32 %v3582, %v3646
        %v3653 = vmul.f32 %v3583, %v3648
        %v3654 = vmul.f32 %v3584, %v3645
        %v3655 = vld [vmem:[%s754] ss:$8 sm:$0xf]
        %v3657 = vlaneseq
        %v3658 = vshrl.u32 %v3657, 7
        %v3659 = vsub.s32 0, %v3658
        %v3660 = vrot.slane %v3655, %v3659
        %v3661 = vlaneseq
        %v3662 = vshrl.u32 %v3661, 7
        %v3663 = vsub.s32 1, %v3662
        %v3664 = vrot.slane %v3655, %v3663
        %v3665 = vlaneseq
        %v3666 = vshrl.u32 %v3665, 7
        %v3667 = vsub.s32 2, %v3666
        %v3668 = vrot.slane %v3655, %v3667
        %v3669 = vlaneseq
        %v3670 = vshrl.u32 %v3669, 7
        %v3671 = vsub.s32 3, %v3670
        %v3672 = vrot.slane %v3655, %v3671
        %v3673 = vcombine.low %v3660, %v3664
        %v3674 = vcombine.low %v3668, %v3672
        %3675 = vrot.lane.b32.xlu0 %v3673, 73
        %v3676 = vpop.permute.xlu0 %3675
        %3677 = vrot.lane.b32.xlu0 %v3674, 73
        %v3678 = vpop.permute.xlu0 %3677
        %v3679 = vrot.slane %v3676, 4
        %v3680 = vrot.slane %v3678, 4
        %v3681 = vsel %vm781, %v3679, %v3676
        %v3682 = vsel %vm267, %v3679, %v3680
        %v3683 = vsel %vm781, %v3682, %v3678
        %v3687 = vmul.f32 %v3582, %v3681
        %v3688 = vmul.f32 %v3583, %v3683
        %v3689 = vmul.f32 %v3584, %v3680
        %v3692 = vcombine.high %v3617, %v3617
        %v3693 = vcombine.high %v3618, %v3618
        %v3699 = vcombine.low %v3652, %v3652
        %v3700 = vcombine.low %v3653, %v3653
        %v3701 = vcombine.low %v3654, %v3654
        %3702 = vrot.lane.b32.xlu0 %v3699, 127
        %v3703 = vpop.permute.xlu0 %3702
        %3704 = vrot.lane.b32.xlu0 %v3652, 127
        %v3705 = vpop.permute.xlu0 %3704
        %3706 = vrot.lane.b32.xlu0 %v3700, 127
        %v3707 = vpop.permute.xlu0 %3706
        %3708 = vrot.lane.b32.xlu0 %v3653, 127
        %v3709 = vpop.permute.xlu0 %3708
        %3710 = vrot.lane.b32.xlu0 %v3701, 127
        %v3711 = vpop.permute.xlu0 %3710
        %v3712 = vsel %vm409, %v3703, %v3705
        %v3713 = vsel %vm409, %v3705, %v3707
        %v3714 = vsel %vm409, %v3707, %v3709
        %v3715 = vsel %vm409, %v3709, %v3711
        %v3724 = vcombine.high %v3687, %v3687
        %v3725 = vcombine.high %v3688, %v3688
        %3726 = vrot.lane.b32.xlu0 %v3687, 126
        %v3727 = vpop.permute.xlu0 %3726
        %3728 = vrot.lane.b32.xlu0 %v3724, 126
        %v3729 = vpop.permute.xlu0 %3728
        %3730 = vrot.lane.b32.xlu0 %v3688, 126
        %v3731 = vpop.permute.xlu0 %3730
        %3732 = vrot.lane.b32.xlu0 %v3725, 126
        %v3733 = vpop.permute.xlu0 %3732
        %3734 = vrot.lane.b32.xlu0 %v3689, 126
        %v3735 = vpop.permute.xlu0 %3734
        %v3736 = vsel %vm434, %v3727, %v3729
        %v3737 = vsel %vm434, %v3729, %v3731
        %v3738 = vsel %vm434, %v3731, %v3733
        %v3739 = vsel %vm434, %v3733, %v3735
        %v3745 = vsel %vm267, %v3617, %v3712
        %v3746 = vsel %vm267, %v3692, %v3713
        %v3747 = vsel %vm267, %v3618, %v3714
        %v3748 = vsel %vm267, %v3693, %v3715
        %v3749 = vsel %vm267, %v3619, %v3711
        %v3750 = vsel %vm267, %v3736, 0.0
        %v3751 = vsel %vm267, %v3737, 0.0
        %v3752 = vsel %vm267, %v3738, 0.0
        %v3753 = vsel %vm267, %v3739, 0.0
        %v3754 = vsel %vm267, %v3735, 0.0
        %v3755 = vpack.c.bf16 %v3750, %v3745
        %v3756 = vpack.c.bf16 %v3751, %v3746
        %v3757 = vpack.c.bf16 %v3752, %v3747
        %v3758 = vpack.c.bf16 %v3753, %v3748
        %v3759 = vpack.c.bf16 %v3754, %v3749
        %3765 = vrot.lane.b32.xlu0 %v3755, 57
        %v3766 = vpop.permute.xlu0 %3765
        %3767 = vrot.lane.b32.xlu0 %v3756, 57
        %v3768 = vpop.permute.xlu0 %3767
        %3769 = vrot.lane.b32.xlu0 %v3757, 57
        %v3770 = vpop.permute.xlu0 %3769
        %3771 = vrot.lane.b32.xlu0 %v3758, 57
        %v3772 = vpop.permute.xlu0 %3771
        %3773 = vrot.lane.b32.xlu0 %v3759, 57
        %v3774 = vpop.permute.xlu0 %3773
        %v3775 = vsel %vm1949, %v3766, %v3768
        %v3776 = vsel %vm1949, %v3768, %v3770
        %v3777 = vsel %vm1949, %v3770, %v3772
        %v3778 = vsel %vm1949, %v3772, %v3774
        %3783 = vst [vmem:[#allocation3 + $0xc0] sm:$0xff] %v3775
        %3784 = vst [vmem:[#allocation3 + $0xc8] sm:$0xff] %v3776
        %3785 = vst [vmem:[#allocation3 + $0xd0] sm:$0xff] %v3777
        %3786 = vst [vmem:[#allocation3 + $0xd8] sm:$0xff] %v3778
        %s3787 = scalar_lea.vmem %s1, 2
        %v3788 = vld [vmem:[%s3787] sm:$0x3]
        %v3789 = vld [vmem:[#allocation3] sm:$0xff]
        %v3790 = vld [vmem:[#allocation3 + $0x8] sm:$0xff]
        %v3791 = vld [vmem:[#allocation3 + $0x10] sm:$0xff]
        %v3792 = vld [vmem:[#allocation3 + $0x18] sm:$0xff]
        %v3793 = vld [vmem:[#allocation3 + $0x20] sm:$0xff]
        %v3794 = vld [vmem:[#allocation3 + $0x28] sm:$0xff]
        %v3795 = vld [vmem:[#allocation3 + $0x30] sm:$0xff]
        %v3796 = vld [vmem:[#allocation3 + $0x38] sm:$0xff]
        %v3797 = vld [vmem:[#allocation3 + $0x40] sm:$0xff]
        %v3798 = vld [vmem:[#allocation3 + $0x48] sm:$0xff]
        %v3799 = vld [vmem:[#allocation3 + $0x50] sm:$0xff]
        %v3800 = vld [vmem:[#allocation3 + $0x58] sm:$0xff]
        %v3801 = vld [vmem:[#allocation3 + $0x60] sm:$0xff]
        %v3802 = vld [vmem:[#allocation3 + $0x68] sm:$0xff]
        %v3803 = vld [vmem:[#allocation3 + $0x70] sm:$0xff]
        %v3804 = vld [vmem:[#allocation3 + $0x78] sm:$0xff]
        %v3805 = vld [vmem:[#allocation3 + $0x80] sm:$0xff]
        %v3806 = vld [vmem:[#allocation3 + $0x88] sm:$0xff]
        %v3807 = vld [vmem:[#allocation3 + $0x90] sm:$0xff]
        %v3808 = vld [vmem:[#allocation3 + $0x98] sm:$0xff]
        %v3809 = vld [vmem:[#allocation3 + $0xa0] sm:$0xff]
        %v3810 = vld [vmem:[#allocation3 + $0xa8] sm:$0xff]
        %v3811 = vld [vmem:[#allocation3 + $0xb0] sm:$0xff]
        %v3812 = vld [vmem:[#allocation3 + $0xb8] sm:$0xff]
        %v3813 = vld [vmem:[#allocation3 + $0xc0] sm:$0xff]
        %v3814 = vld [vmem:[#allocation3 + $0xc8] sm:$0xff]
        %v3815 = vld [vmem:[#allocation3 + $0xd0] sm:$0xff]
        %v3816 = vld [vmem:[#allocation3 + $0xd8] sm:$0xff]
        %s3817 = scalar_lea.vmem %s2, 4
        %v3818 = vld [vmem:[%s3817] sm:$0xf]
        %3820 = vset.pattern.permute.xlu0 0
        %3821 = vperm.xlu0 %3820, %v3818
        %v3822 = vpop.permute.xlu0 %3821
        %v3825 = vsel %vm1997, %v3788, 0
        %3827 = vmatprep.subr.bf16.mxu0 %v3790
        %3828 = vmatpush1.bf16.msra.mxu0 %v3789
        %3829 = vmatprep.subr.bf16.mxu0 %v3794
        %3830 = vmatpush1.bf16.msra.mxu0 %v3793
        %3831 = vmatprep.subr.bf16.mxu0 %v3798
        %3832 = vmatpush1.bf16.msra.mxu0 %v3797
        %3833 = vmatprep.subr.bf16.mxu0 %v3802
        %3834 = vmatpush1.bf16.msra.mxu0 %v3801
        %3835 = vmatprep.subr.bf16.mxu0 %v3806
        %3836 = vmatpush1.bf16.msra.mxu0 %v3805
        %3837 = vmatprep.subr.bf16.mxu0 %v3810
        %3838 = vmatpush1.bf16.msra.mxu0 %v3809
        %3839 = vmatprep.subr.bf16.mxu0 %v3814
        %3840 = vmatpush1.bf16.msra.mxu0 %v3813
        %3841 = vmatprep.subr.bf16.mxu0 0
        %3842 = vmatpush1.bf16.msra.mxu0 0
        %3843 = vmatprep.subr.bf16.mxu0 0
        %3844 = vmatpush1.bf16.msra.mxu0 0
        %3845 = vmatprep.subr.bf16.mxu0 0
        %3846 = vmatpush1.bf16.msra.mxu0 0
        %3847 = vmatprep.subr.bf16.mxu0 0
        %3848 = vmatpush1.bf16.msra.mxu0 0
        %3849 = vmatprep.subr.bf16.mxu0 0
        %3850 = vmatpush1.bf16.msra.mxu0 0
        %3851 = vmatprep.subr.bf16.mxu0 0
        %3852 = vmatpush1.bf16.msra.mxu0 0
        %3853 = vmatprep.subr.bf16.mxu0 0
        %3854 = vmatpush1.bf16.msra.mxu0 0
        %3855 = vmatprep.subr.bf16.mxu0 0
        %3856 = vmatpush1.bf16.msra.mxu0 0
        %3857 = vmatprep.subr.bf16.mxu0 0
        %3858 = vmatpush1.bf16.msra.mxu0 0
        %3859 = vmatprep.mubr.bf16.mxu0 0
        %3860 = vmatmul.mubr.bf16.gmra.mrb[0].mxu0 %v3825
        %v3861 = vpop.f32.mrb[0].mxu0
        %v3862 = vadd.f32 %v3822, %v3861
        %v3863 = vpop.f32.mrb[0].mxu0
        %v3864 = vadd.f32 %v3822, %v3863
        %v3865 = vpop.f32.mrb[0].mxu0
        %v3866 = vpop.f32.mrb[0].mxu0
        %3867 = vdwg.mxu0
        %3868 = vmatprep.subr.bf16.mxu0 %v3792
        %3869 = vmatpush1.bf16.msra.mxu0 %v3791
        %3870 = vmatprep.subr.bf16.mxu0 %v3796
        %3871 = vmatpush1.bf16.msra.mxu0 %v3795
        %3872 = vmatprep.subr.bf16.mxu0 %v3800
        %3873 = vmatpush1.bf16.msra.mxu0 %v3799
        %3874 = vmatprep.subr.bf16.mxu0 %v3804
        %3875 = vmatpush1.bf16.msra.mxu0 %v3803
        %3876 = vmatprep.subr.bf16.mxu0 %v3808
        %3877 = vmatpush1.bf16.msra.mxu0 %v3807
        %3878 = vmatprep.subr.bf16.mxu0 %v3812
        %3879 = vmatpush1.bf16.msra.mxu0 %v3811
        %3880 = vmatprep.subr.bf16.mxu0 %v3816
        %3881 = vmatpush1.bf16.msra.mxu0 %v3815
        %3882 = vmatprep.subr.bf16.mxu0 0
        %3883 = vmatpush1.bf16.msra.mxu0 0
        %3884 = vmatprep.subr.bf16.mxu0 0
        %3885 = vmatpush1.bf16.msra.mxu0 0
        %3886 = vmatprep.subr.bf16.mxu0 0
        %3887 = vmatpush1.bf16.msra.mxu0 0
        %3888 = vmatprep.subr.bf16.mxu0 0
        %3889 = vmatpush1.bf16.msra.mxu0 0
        %3890 = vmatprep.subr.bf16.mxu0 0
        %3891 = vmatpush1.bf16.msra.mxu0 0
        %3892 = vmatprep.subr.bf16.mxu0 0
        %3893 = vmatpush1.bf16.msra.mxu0 0
        %3894 = vmatprep.subr.bf16.mxu0 0
        %3895 = vmatpush1.bf16.msra.mxu0 0
        %3896 = vmatprep.subr.bf16.mxu0 0
        %3897 = vmatpush1.bf16.msra.mxu0 0
        %3898 = vmatprep.subr.bf16.mxu0 0
        %3899 = vmatpush1.bf16.msra.mxu0 0
        %3900 = vmatprep.mubr.bf16.mxu0 0
        %3901 = vmatmul.mubr.bf16.gmra.mrb[0].mxu0 %v3825
        %v3902 = vpop.f32.mrb[0].mxu0
        %v3903 = vadd.f32 %v3822, %v3902
        %v3904 = vpop.f32.mrb[0].mxu0
        %v3905 = vadd.f32 %v3822, %v3904
        %v3906 = vpop.f32.mrb[0].mxu0
        %v3907 = vpop.f32.mrb[0].mxu0
        %3908 = vdwg.mxu0
        %v3909 = vmax.f32 %v3862, 0.0
        %v3910 = vmax.f32 %v3864, 0.0
        %v3911 = vmax.f32 %v3903, 0.0
        %v3912 = vmax.f32 %v3905, 0.0
        %v3915 = vcombine.high %v232, %v232
        %v3916 = vcombine.high %v233, %v233
        %v3919 = vadd.f32 %v3909, %v232
        %v3920 = vadd.f32 %v3910, %v3915
        %v3921 = vadd.f32 %v3911, %v233
        %v3922 = vadd.f32 %v3912, %v3916
        %v3927 = vcombine.low %v3919, %v3920
        %v3928 = vcombine.low %v3921, %v3922
        %3931 = vst [vmem:[%s228] sm:$0xff] %v3927
        %3932 = vst [vmem:[%s228 + $0x8] sm:$0xff] %v3928
        %s3933 = sand.u32 %s119, 1
        %s3934 = scalar_lea.sflag [#allocation6], %s3933
        %s3935 = sand.u32 %s119, 1
        %s3936 = smul.addr %s3935, 16
        %s3937 = scalar_lea.vmem [#allocation9], %s3936
        // Predicated region
        $region45: #{tpu_custom_call.1} parent=35 // pred_check
          %p3938 = pneg %p129
        $region46: #{tpu_custom_call.1} parent=35 // pred_check_branch
          %3940 = sbr.rel (%p3938) target = $region48
        $region47: #{tpu_custom_call.1} parent=35 // pred_region
          %s3942 = ssub.s32 256, 256
          %3943 = vsyncadd %s3934, %s3942
          %s3944 = smul.addr %s22, 4
          %s3945 = smul.addr %s3944, 64
          %s3946 = scalar_lea.hbm %s4, %s3945
          %s3948 = sshll.u32 %s3937, 4
          %s3949 = int_to_ptr.vmem [resolvable:$true] %s3948
          %3951 = dma.vmem_to_hbm [thread:$0]  %s3949, 256, %s3946, %s3934
        $region48: #{tpu_custom_call.1} parent=35 // pred_fallthru
          _
      $region36: #{tpu_custom_call.1} parent=5 // pred_fallthru
        _
      %p3952 = scmp.le.s32.totalorder 2, %s17
      // Predicated region
      $region49: #{tpu_custom_call.1} parent=5 // pred_check
        %p3953 = pneg %p3952
      $region50: #{tpu_custom_call.1} parent=5 // pred_check_branch
        %3955 = sbr.rel (%p3953) target = $region52
      $region51: #{tpu_custom_call.1} parent=5 // pred_region
        %s3956 = ssub.s32 %s17, 2
        // Predicated region
        $region53: #{tpu_custom_call.1} parent=51 // pred_check
          %p3957 = pneg %p135
        $region54: #{tpu_custom_call.1} parent=51 // pred_check_branch
          %3959 = sbr.rel (%p3957) target = $region56
        $region55: #{tpu_custom_call.1} parent=51 // pred_region
          %s3960 = sand.u32 %s120, 1
          %s3961 = scalar_lea.sflag [#allocation6], %s3960
          %s3962 = sand.u32 %s120, 1
          %s3963 = smul.addr %s3962, 16
          %s3964 = scalar_lea.vmem [#allocation9], %s3963
          %3965 = dma.done %s3961, 256
        $region56: #{tpu_custom_call.1} parent=51 // pred_fallthru
          _
      $region52: #{tpu_custom_call.1} parent=5 // pred_fallthru
        _
    $region6: #{tpu_custom_call.1} parent=1 // loop_footer
      %s21 = sadd.s32 1, %s17
    $region7: #{tpu_custom_call.1} parent=1 // loop_footer_branch
      %16 = sbr.rel target = $region3
    $region8: #{tpu_custom_call.1} parent=1 // loop_exit
      _
    %3966 = vsyncpa [#allocation5], 1
    %s3967 = scalar_lea.sflag [#allocation5], 1
    %3968 = vsyncpa %s3967, 1
    %3969 = vsyncpa [#allocation8], 1
    %3970 = vsyncpa [#allocation6], 1
    %s3971 = scalar_lea.sflag [#allocation6], 1
    %3972 = vsyncpa %s3971, 1

</llo_original>
